<compile_context>
chip_gen: v5e
topology: v5e:2x2
jax: 0.10.0
libtpu: 0.0.40
codegen_flags: <defaults>
</compile_context>

<pallas_src>
import math

import numpy as np
import jax
import jax.numpy as jnp
from jax import lax
from jax.experimental import pallas as pl
from jax.experimental.pallas import tpu as pltpu

# dtype fed to the MXU for the dense matmuls inside the encoder stack.
# bf16 is MXU-native on v5e, v6e and v7x (f32 accumulation kept everywhere);
# softmax / LayerNorm math stays f32 on the VPU/EUP.
MATMUL_DTYPE = jnp.bfloat16


# ----------------------------------------------------------------------------
# Single fused kernel: embedding softmax-matmul + pad + NLAY encoder layers +
# inflate + dual projection.  grid=(NLAY,), activation resident in VMEM scratch.
# ----------------------------------------------------------------------------
def make_fused_kernel(B, T, D, H, F, NLAY):
    hd = D // H
    BT = B * T
    HB = H * B

    def layer_norm(v, g, b, eps=1e-5):       # two-pass stats (no cancellation)
        mu = jnp.mean(v, axis=-1, keepdims=True)
        c = v - mu
        var = jnp.mean(c * c, axis=-1, keepdims=True)
        return c * lax.rsqrt(var + eps) * g + b

    def kernel(logits_ref, csembs_ref, gpad_ref, ginf_ref, mask_ref, catsemb_ref,
               wqkv_ref, bqkv_ref, wo3_ref, bo_ref,
               w1_ref, b1_ref, w2_ref, b2_ref,
               g1_ref, be1_ref, g2_ref, be2_ref,
               out_ref, act_ref):
        layer = pl.program_id(0)

        # ---- prologue (layer 0): softmax @ sembs, pad_sequence as 0/1 matmul ----
        @pl.when(layer == 0)
        def _():
            x = logits_ref[...].astype(jnp.float32)                     # [N, Cc]
            m0 = jnp.max(x, axis=-1, keepdims=True)
            e0 = jnp.exp(x - m0)
            prob = e0 / jnp.sum(e0, axis=-1, keepdims=True)
            embs = jnp.dot(prob, csembs_ref[...],
                           preferred_element_type=jnp.float32)          # [N, D]
            act_ref[...] = jnp.dot(gpad_ref[...], embs,
                                   preferred_element_type=jnp.float32)  # [BT, D]

        x2 = act_ref[...]                                               # [BT, D]

        # ---- fused Q|K|V projection (1/sqrt(hd) pre-folded into Wq / bq) ----
        qkv = jnp.dot(x2.astype(MATMUL_DTYPE), wqkv_ref[...],
                      preferred_element_type=jnp.float32) + bqkv_ref[...]   # [BT, 3D]

        # ---- split heads: lane slices stacked along a NEW MAJOR axis (no lane
        #      concatenation), then tile-aligned reshapes to [H*B, T, hd]. ----
        def to_heads(base):
            sl = [qkv[:, base + h * hd: base + (h + 1) * hd].reshape(B, T, hd)
                  for h in range(H)]
            return jnp.stack(sl, axis=0).reshape(HB, T, hd).astype(MATMUL_DTYPE)

        qh = to_heads(0)
        kh = to_heads(D)
        vh = to_heads(2 * D)

        # ---- attention: ONE batched contraction over all (head, batch) pairs ----
        s = jnp.einsum('ntc,nsc->nts', qh, kh,
                       preferred_element_type=jnp.float32)              # [HB, T, T]
        s = s + mask_ref[...]                                           # [HB, 1, T] additive key mask
        m = jnp.max(s, axis=-1, keepdims=True)
        e = jnp.exp(s - m)
        p = e / jnp.sum(e, axis=-1, keepdims=True)
        o = jnp.einsum('nts,nsc->ntc', p.astype(MATMUL_DTYPE), vh,
                       preferred_element_type=jnp.float32)              # [HB, T, hd]
        o4 = o.reshape(H, B, T, hd)

        # ---- output projection: accumulate per-head [hd, D] slabs of Wo
        #      (avoids materializing the lane-concatenated attention tensor) ----
        attn = jnp.zeros((BT, D), jnp.float32)
        for h in range(H):
            attn = attn + jnp.dot(o4[h].reshape(BT, hd).astype(MATMUL_DTYPE),
                                  wo3_ref[h], preferred_element_type=jnp.float32)
        attn = attn + bo_ref[...]

        # ---- add & norm 1, FFN (ReLU), add & norm 2 ----
        y2 = layer_norm(x2 + attn, g1_ref[...], be1_ref[...])
        ff = jnp.maximum(
            jnp.dot(y2.astype(MATMUL_DTYPE), w1_ref[...],
                    preferred_element_type=jnp.float32) + b1_ref[...], 0.0)
        z2 = jnp.dot(ff.astype(MATMUL_DTYPE), w2_ref[...],
                     preferred_element_type=jnp.float32) + b2_ref[...]
        o2 = layer_norm(y2 + z2, g2_ref[...], be2_ref[...])
        act_ref[...] = o2

        # ---- epilogue (last layer): inflate (0/1 matmul) + fused dual projection ----
        @pl.when(layer == NLAY - 1)
        def _():
            femb = jnp.dot(ginf_ref[...], o2,
                           preferred_element_type=jnp.float32)          # [N, D]
            dn = (((1,), (1,)), ((), ()))                               # contract last dims
            out_ref[...] = lax.dot_general(femb, catsemb_ref[...], dn,
                                           preferred_element_type=jnp.float32)

    return kernel


def fused_forward(logits_raw, compact_sembs, gpad, ginf, mask_hb, cat_sembs, p, *, nhead):
    N, Cc = logits_raw.shape
    D = compact_sembs.shape[1]
    BT = gpad.shape[0]
    HB = mask_hb.shape[0]
    B = HB // nhead
    T = BT // B
    NLAY = p["wqkv"].shape[0]
    F = p["w1"].shape[2]
    Ctot = cat_sembs.shape[0]

    kernel = make_fused_kernel(B, T, D, nhead, F, NLAY)

    def whole(shape):                 # same block every grid step (VMEM-resident)
        return pl.BlockSpec(shape, lambda l, _n=len(shape): (0,) * _n)

    def per_layer(shape):             # stacked weights: squeeze the layer dim
        return pl.BlockSpec((None,) + shape, lambda l, _n=len(shape): (l,) + (0,) * _n)

    in_specs = [
        whole((N, Cc)),                                   # logits_raw
        whole((Cc, D)),                                   # compact_sembs
        whole((BT, N)),                                   # pad-gather selection matrix
        whole((N, BT)),                                   # inflate selection matrix
        whole((HB, 1, T)),                                # key-padding mask (head-broadcast)
        whole((Ctot, D)),                                 # [semb ; compact_sembs]
        per_layer((D, 3 * D)), per_layer((1, 3 * D)),     # wqkv, bqkv
        per_layer((nhead, D // nhead, D)), per_layer((1, D)),   # wo3, bo
        per_layer((D, F)), per_layer((1, F)),             # w1, b1
        per_layer((F, D)), per_layer((1, D)),             # w2, b2
        per_layer((1, D)), per_layer((1, D)),             # g1, be1
        per_layer((1, D)), per_layer((1, D)),             # g2, be2
    ]

    # TODO(synk): at production shapes, add a "parallel" row-tile grid axis over B*T
    #             (so v7x's 2nd TensorCore is used) and set vmem_limit_bytes explicitly.
    return pl.pallas_call(
        kernel,
        grid=(NLAY,),
        out_shape=jax.ShapeDtypeStruct((N, Ctot), jnp.float32),
        in_specs=in_specs,
        out_specs=whole((N, Ctot)),
        scratch_shapes=[pltpu.VMEM((BT, D), jnp.float32)],     # resident activation
        compiler_params=pltpu.CompilerParams(dimension_semantics=("arbitrary",)),
    )(logits_raw, compact_sembs, gpad, ginf, mask_hb, cat_sembs,
      p["wqkv"], p["bqkv"], p["wo3"], p["bo"], p["w1"], p["b1"], p["w2"], p["b2"],
      p["g1"], p["be1"], p["g2"], p["be2"])


# ----------------------------------------------------------------------------
# Full module forward: jitted, with pad/inflate expressed as host-built 0/1
# selection matrices (exact gathers) and the mask pre-broadcast to [H*B, 1, T].
# ----------------------------------------------------------------------------
def make_forward(lengths, maxT, nhead):
    lengths = [int(L) for L in lengths]
    B, N = len(lengths), sum(lengths)
    T_pad = max(8, -(-maxT // 8) * 8)                     # sublane-align seq length
    offsets = np.concatenate([[0], np.cumsum(lengths)[:-1]]).astype(np.int64)

    gpad = np.zeros((B * T_pad, N), np.float32)           # pad_sequence (+zero pad)
    ginf = np.zeros((N, B * T_pad), np.float32)           # inflater gather
    mask_hb = np.full((nhead * B, 1, T_pad), -1e30, np.float32)  # additive key mask
    for b, L in enumerate(lengths):
        for t in range(L):
            gpad[b * T_pad + t, offsets[b] + t] = 1.0
            ginf[offsets[b] + t, b * T_pad + t] = 1.0
        mask_hb[np.arange(nhead) * B + b, 0, :L] = 0.0

    gpad_j = jnp.asarray(gpad)
    ginf_j = jnp.asarray(ginf)
    mask_j = jnp.asarray(mask_hb)

    @jax.jit
    def forward(logits_raw, compact_sembs, semb, params):
        Ca = semb.shape[0]
        cat_sembs = jnp.concatenate([semb, compact_sembs], axis=0)   # [Ca+Cc, D]
        out = fused_forward(logits_raw, compact_sembs, gpad_j, ginf_j, mask_j,
                            cat_sembs, params, nhead=nhead)          # [N, Ca+Cc]
        return out[:, :Ca], out[:, Ca:]

    return forward


# ----------------------------------------------------------------------------
# Deterministic parameter init, stacked over layers ([NLAY, ...]) with Q|K|V fused,
# 1/sqrt(head_dim) folded into Wq/bq, and Wo pre-reshaped into per-head slabs.
# ----------------------------------------------------------------------------
def init_stacked_params(key, D, F, nlay, nhead):
    hd = D // nhead
    scale = 1.0 / math.sqrt(hd)
    names = ("wqkv", "bqkv", "wo3", "bo", "w1", "b1", "w2", "b2",
             "g1", "be1", "g2", "be2")
    acc = {k: [] for k in names}
    for l in range(nlay):
        ks = jax.random.split(jax.random.fold_in(key, l), 6)
        w = lambda k, shp, s: jax.random.normal(k, shp, jnp.float32) * s
        wq = w(ks[0], (D, D), 0.1) * scale
        wk = w(ks[1], (D, D), 0.1)
        wv = w(ks[2], (D, D), 0.1)
        bq = jnp.zeros((1, D), jnp.float32)               # (scale fold: bq is zero)
        bk = jnp.zeros((1, D), jnp.float32)
        bv = jnp.zeros((1, D), jnp.float32)
        acc["wqkv"].append(jnp.concatenate([wq, wk, wv], axis=1))
        acc["bqkv"].append(jnp.concatenate([bq, bk, bv], axis=1))
        acc["wo3"].append(w(ks[3], (D, D), 0.1).reshape(nhead, hd, D))
        acc["bo"].append(jnp.zeros((1, D), jnp.float32))
        acc["w1"].append(w(ks[4], (D, F), 0.1))
        acc["b1"].append(jnp.zeros((1, F), jnp.float32))
        acc["w2"].append(w(ks[5], (F, D), 0.1))
        acc["b2"].append(jnp.zeros((1, D), jnp.float32))
        acc["g1"].append(jnp.ones((1, D), jnp.float32))
        acc["be1"].append(jnp.zeros((1, D), jnp.float32))
        acc["g2"].append(jnp.ones((1, D), jnp.float32))
        acc["be2"].append(jnp.zeros((1, D), jnp.float32))
    p = {k: jnp.stack(v, axis=0) for k, v in acc.items()}
    for k in ("wqkv", "wo3", "w1", "w2"):                 # MXU weights in matmul dtype
        p[k] = p[k].astype(MATMUL_DTYPE)
    return p


if __name__ == "__main__":
    key = jax.random.PRNGKey(0)
    D = 32          # feat_ch
    H = 8           # nhead (default)
    NLAY = 4        # num layers (default)
    F = 4 * D       # feedforward width (see TODO at top)

    lengths = [5, 3, 6]
    maxT = max(lengths)
    N = sum(lengths)
    Cc = 16         # compact class count
    Ca = 40         # full class count

    k1, k2, k3, k4 = jax.random.split(key, 4)
    logits_raw = jax.random.normal(k1, (N, Cc), jnp.float32)
    compact_sembs = jax.random.normal(k2, (Cc, D), jnp.float32)
    semb = jax.random.normal(k3, (Ca, D), jnp.float32)
    params = init_stacked_params(k4, D, F, NLAY, H)

    forward = make_forward(lengths, maxT, H)
    logits, clogits = forward(logits_raw, compact_sembs, semb, params)
    jax.block_until_ready((logits, clogits))

    assert logits.shape == (N, Ca), logits.shape
    assert clogits.shape == (N, Cc), clogits.shape
    assert bool(jnp.isfinite(logits).all()) and bool(jnp.isfinite(clogits).all())
    print("KERNEL_OK")
</pallas_src>

<mosaic_0001>
module attributes {stable_mosaic.version = 11 : i64} {
  func.func @kernel(%arg0: i32, %arg1: memref<14x16xf32, #tpu.memory_space<vmem>>, %arg2: memref<16x32xf32, #tpu.memory_space<vmem>>, %arg3: memref<24x14xf32, #tpu.memory_space<vmem>>, %arg4: memref<14x24xf32, #tpu.memory_space<vmem>>, %arg5: memref<24x1x8xf32, #tpu.memory_space<vmem>>, %arg6: memref<56x32xf32, #tpu.memory_space<vmem>>, %arg7: memref<1x32x96xbf16, #tpu.memory_space<vmem>>, %arg8: memref<1x1x96xf32, #tpu.memory_space<vmem>>, %arg9: memref<1x8x4x32xbf16, #tpu.memory_space<vmem>>, %arg10: memref<1x1x32xf32, #tpu.memory_space<vmem>>, %arg11: memref<1x32x128xbf16, #tpu.memory_space<vmem>>, %arg12: memref<1x1x128xf32, #tpu.memory_space<vmem>>, %arg13: memref<1x128x32xbf16, #tpu.memory_space<vmem>>, %arg14: memref<1x1x32xf32, #tpu.memory_space<vmem>>, %arg15: memref<1x1x32xf32, #tpu.memory_space<vmem>>, %arg16: memref<1x1x32xf32, #tpu.memory_space<vmem>>, %arg17: memref<1x1x32xf32, #tpu.memory_space<vmem>>, %arg18: memref<1x1x32xf32, #tpu.memory_space<vmem>>, %arg19: memref<14x56xf32, #tpu.memory_space<vmem>>, %arg20: memref<24x32xf32, #tpu.memory_space<vmem>>) attributes {dimension_semantics = [#tpu.dimension_semantics<arbitrary>], iteration_bounds = array<i64: 4>, scalar_prefetch = 0 : i64, scratch_operands = 1 : i64, tpu.core_type = #tpu.core_type<tc>, window_params = [{pipeline_mode = #tpu.pipeline_mode<synchronous>, transform_indices = @transform_0, window_bounds = array<i64: 14, 16>}, {pipeline_mode = #tpu.pipeline_mode<synchronous>, transform_indices = @transform_1, window_bounds = array<i64: 16, 32>}, {pipeline_mode = #tpu.pipeline_mode<synchronous>, transform_indices = @transform_2, window_bounds = array<i64: 24, 14>}, {pipeline_mode = #tpu.pipeline_mode<synchronous>, transform_indices = @transform_3, window_bounds = array<i64: 14, 24>}, {pipeline_mode = #tpu.pipeline_mode<synchronous>, transform_indices = @transform_4, window_bounds = array<i64: 24, 1, 8>}, {pipeline_mode = #tpu.pipeline_mode<synchronous>, transform_indices = @transform_5, window_bounds = array<i64: 56, 32>}, {transform_indices = @transform_6, window_bounds = array<i64: 1, 32, 96>}, {transform_indices = @transform_7, window_bounds = array<i64: 1, 1, 96>}, {transform_indices = @transform_8, window_bounds = array<i64: 1, 8, 4, 32>}, {transform_indices = @transform_9, window_bounds = array<i64: 1, 1, 32>}, {transform_indices = @transform_10, window_bounds = array<i64: 1, 32, 128>}, {transform_indices = @transform_11, window_bounds = array<i64: 1, 1, 128>}, {transform_indices = @transform_12, window_bounds = array<i64: 1, 128, 32>}, {transform_indices = @transform_13, window_bounds = array<i64: 1, 1, 32>}, {transform_indices = @transform_14, window_bounds = array<i64: 1, 1, 32>}, {transform_indices = @transform_15, window_bounds = array<i64: 1, 1, 32>}, {transform_indices = @transform_16, window_bounds = array<i64: 1, 1, 32>}, {transform_indices = @transform_17, window_bounds = array<i64: 1, 1, 32>}, {pipeline_mode = #tpu.pipeline_mode<synchronous>, transform_indices = @transform_18, window_bounds = array<i64: 14, 56>}]} {
    %c0_i32 = arith.constant 0 : i32
    %0 = arith.cmpi eq, %arg0, %c0_i32 : i32
    %1 = arith.extui %0 : i1 to i32
    %c0_i32_0 = arith.constant 0 : i32
    %2 = arith.cmpi ne, %1, %c0_i32_0 : i32
    scf.if %2 {
      %c0_92 = arith.constant 0 : index
      %c0_93 = arith.constant 0 : index
      %250 = vector.load %arg1[%c0_92, %c0_93] : memref<14x16xf32, #tpu.memory_space<vmem>>, vector<14x16xf32>
      %cst_94 = arith.constant dense<0xFF800000> : vector<14xf32>
      %251 = vector.multi_reduction <maximumf>, %250, %cst_94 [1] : vector<14x16xf32> to vector<14xf32>
      %252 = vector.shape_cast %251 : vector<14xf32> to vector<14x1xf32>
      %253 = vector.broadcast %252 : vector<14x1xf32> to vector<14x16xf32>
      %254 = arith.subf %250, %253 : vector<14x16xf32>
      %255 = math.exp %254 : vector<14x16xf32>
      %cst_95 = arith.constant dense<0.000000e+00> : vector<14xf32>
      %256 = vector.multi_reduction <add>, %255, %cst_95 [1] : vector<14x16xf32> to vector<14xf32>
      %257 = vector.shape_cast %256 : vector<14xf32> to vector<14x1xf32>
      %258 = vector.broadcast %257 : vector<14x1xf32> to vector<14x16xf32>
      %259 = arith.divf %255, %258 : vector<14x16xf32>
      %c0_96 = arith.constant 0 : index
      %c0_97 = arith.constant 0 : index
      %260 = vector.load %arg2[%c0_96, %c0_97] : memref<16x32xf32, #tpu.memory_space<vmem>>, vector<16x32xf32>
      %cst_98 = arith.constant dense<0.000000e+00> : vector<14x32xf32>
      %261 = tpu.matmul %259, %260, %cst_98 {dimension_numbers = #tpu.dot_dimension_numbers<[1], [0], [0], [1], [0, 0, 1, 1], [], []>} : vector<14x16xf32>, vector<16x32xf32>, vector<14x32xf32> -> vector<14x32xf32>
      %c0_99 = arith.constant 0 : index
      %c0_100 = arith.constant 0 : index
      %262 = vector.load %arg3[%c0_99, %c0_100] : memref<24x14xf32, #tpu.memory_space<vmem>>, vector<24x14xf32>
      %cst_101 = arith.constant dense<0.000000e+00> : vector<24x32xf32>
      %263 = tpu.matmul %262, %261, %cst_101 {dimension_numbers = #tpu.dot_dimension_numbers<[1], [0], [0], [1], [0, 0, 1, 1], [], []>} : vector<24x14xf32>, vector<14x32xf32>, vector<24x32xf32> -> vector<24x32xf32>
      %c0_102 = arith.constant 0 : index
      %c0_103 = arith.constant 0 : index
      %264 = vector.load %arg20[%c0_102, %c0_103] : memref<24x32xf32, #tpu.memory_space<vmem>>, vector<24x32xf32>
      tpu.vector_store %arg20[%c0_102, %c0_103], %263 {strides = array<i32>} : memref<24x32xf32, #tpu.memory_space<vmem>>, vector<24x32xf32>,
    } else {
    }
    %c0 = arith.constant 0 : index
    %c0_1 = arith.constant 0 : index
    %3 = vector.load %arg20[%c0, %c0_1] : memref<24x32xf32, #tpu.memory_space<vmem>>, vector<24x32xf32>
    %4 = arith.truncf %3 : vector<24x32xf32> to vector<24x32xbf16>
    %c0_2 = arith.constant 0 : index
    %c0_3 = arith.constant 0 : index
    %c0_4 = arith.constant 0 : index
    %5 = vector.load %arg7[%c0_2, %c0_3, %c0_4] : memref<1x32x96xbf16, #tpu.memory_space<vmem>>, vector<1x32x96xbf16>
    %6 = vector.shape_cast %5 : vector<1x32x96xbf16> to vector<32x96xbf16>
    %cst = arith.constant dense<0.000000e+00> : vector<24x96xf32>
    %7 = tpu.matmul %4, %6, %cst {dimension_numbers = #tpu.dot_dimension_numbers<[1], [0], [0], [1], [0, 0, 1, 1], [], []>} : vector<24x32xbf16>, vector<32x96xbf16>, vector<24x96xf32> -> vector<24x96xf32>
    %c0_5 = arith.constant 0 : index
    %c0_6 = arith.constant 0 : index
    %c0_7 = arith.constant 0 : index
    %8 = vector.load %arg8[%c0_5, %c0_6, %c0_7] : memref<1x1x96xf32, #tpu.memory_space<vmem>>, vector<1x1x96xf32>
    %9 = vector.shape_cast %8 : vector<1x1x96xf32> to vector<1x96xf32>
    %10 = vector.broadcast %9 : vector<1x96xf32> to vector<24x96xf32>
    %11 = arith.addf %7, %10 : vector<24x96xf32>
    %12 = vector.extract_strided_slice %11 {offsets = [0, 0], sizes = [24, 4], strides = [1, 1]} : vector<24x96xf32> to vector<24x4xf32>
    %13 = vector.shape_cast %12 : vector<24x4xf32> to vector<3x8x4xf32>
    %14 = vector.extract_strided_slice %11 {offsets = [0, 4], sizes = [24, 4], strides = [1, 1]} : vector<24x96xf32> to vector<24x4xf32>
    %15 = vector.shape_cast %14 : vector<24x4xf32> to vector<3x8x4xf32>
    %16 = vector.extract_strided_slice %11 {offsets = [0, 8], sizes = [24, 4], strides = [1, 1]} : vector<24x96xf32> to vector<24x4xf32>
    %17 = vector.shape_cast %16 : vector<24x4xf32> to vector<3x8x4xf32>
    %18 = vector.extract_strided_slice %11 {offsets = [0, 12], sizes = [24, 4], strides = [1, 1]} : vector<24x96xf32> to vector<24x4xf32>
    %19 = vector.shape_cast %18 : vector<24x4xf32> to vector<3x8x4xf32>
    %20 = vector.extract_strided_slice %11 {offsets = [0, 16], sizes = [24, 4], strides = [1, 1]} : vector<24x96xf32> to vector<24x4xf32>
    %21 = vector.shape_cast %20 : vector<24x4xf32> to vector<3x8x4xf32>
    %22 = vector.extract_strided_slice %11 {offsets = [0, 20], sizes = [24, 4], strides = [1, 1]} : vector<24x96xf32> to vector<24x4xf32>
    %23 = vector.shape_cast %22 : vector<24x4xf32> to vector<3x8x4xf32>
    %24 = vector.extract_strided_slice %11 {offsets = [0, 24], sizes = [24, 4], strides = [1, 1]} : vector<24x96xf32> to vector<24x4xf32>
    %25 = vector.shape_cast %24 : vector<24x4xf32> to vector<3x8x4xf32>
    %26 = vector.extract_strided_slice %11 {offsets = [0, 28], sizes = [24, 4], strides = [1, 1]} : vector<24x96xf32> to vector<24x4xf32>
    %27 = vector.shape_cast %26 : vector<24x4xf32> to vector<3x8x4xf32>
    %28 = vector.shape_cast %13 : vector<3x8x4xf32> to vector<1x3x8x4xf32>
    %29 = vector.shape_cast %15 : vector<3x8x4xf32> to vector<1x3x8x4xf32>
    %30 = vector.shape_cast %17 : vector<3x8x4xf32> to vector<1x3x8x4xf32>
    %31 = vector.shape_cast %19 : vector<3x8x4xf32> to vector<1x3x8x4xf32>
    %32 = vector.shape_cast %21 : vector<3x8x4xf32> to vector<1x3x8x4xf32>
    %33 = vector.shape_cast %23 : vector<3x8x4xf32> to vector<1x3x8x4xf32>
    %34 = vector.shape_cast %25 : vector<3x8x4xf32> to vector<1x3x8x4xf32>
    %35 = vector.shape_cast %27 : vector<3x8x4xf32> to vector<1x3x8x4xf32>
    %36 = tpu.concatenate %28, %29, %30, %31, %32, %33, %34, %35 in 0 : vector<1x3x8x4xf32>, vector<1x3x8x4xf32>, vector<1x3x8x4xf32>, vector<1x3x8x4xf32>, vector<1x3x8x4xf32>, vector<1x3x8x4xf32>, vector<1x3x8x4xf32>, vector<1x3x8x4xf32> -> vector<8x3x8x4xf32>
    %37 = vector.shape_cast %36 : vector<8x3x8x4xf32> to vector<24x8x4xf32>
    %38 = arith.truncf %37 : vector<24x8x4xf32> to vector<24x8x4xbf16>
    %39 = vector.extract_strided_slice %11 {offsets = [0, 32], sizes = [24, 4], strides = [1, 1]} : vector<24x96xf32> to vector<24x4xf32>
    %40 = vector.shape_cast %39 : vector<24x4xf32> to vector<3x8x4xf32>
    %41 = vector.extract_strided_slice %11 {offsets = [0, 36], sizes = [24, 4], strides = [1, 1]} : vector<24x96xf32> to vector<24x4xf32>
    %42 = vector.shape_cast %41 : vector<24x4xf32> to vector<3x8x4xf32>
    %43 = vector.extract_strided_slice %11 {offsets = [0, 40], sizes = [24, 4], strides = [1, 1]} : vector<24x96xf32> to vector<24x4xf32>
    %44 = vector.shape_cast %43 : vector<24x4xf32> to vector<3x8x4xf32>
    %45 = vector.extract_strided_slice %11 {offsets = [0, 44], sizes = [24, 4], strides = [1, 1]} : vector<24x96xf32> to vector<24x4xf32>
    %46 = vector.shape_cast %45 : vector<24x4xf32> to vector<3x8x4xf32>
    %47 = vector.extract_strided_slice %11 {offsets = [0, 48], sizes = [24, 4], strides = [1, 1]} : vector<24x96xf32> to vector<24x4xf32>
    %48 = vector.shape_cast %47 : vector<24x4xf32> to vector<3x8x4xf32>
    %49 = vector.extract_strided_slice %11 {offsets = [0, 52], sizes = [24, 4], strides = [1, 1]} : vector<24x96xf32> to vector<24x4xf32>
    %50 = vector.shape_cast %49 : vector<24x4xf32> to vector<3x8x4xf32>
    %51 = vector.extract_strided_slice %11 {offsets = [0, 56], sizes = [24, 4], strides = [1, 1]} : vector<24x96xf32> to vector<24x4xf32>
    %52 = vector.shape_cast %51 : vector<24x4xf32> to vector<3x8x4xf32>
    %53 = vector.extract_strided_slice %11 {offsets = [0, 60], sizes = [24, 4], strides = [1, 1]} : vector<24x96xf32> to vector<24x4xf32>
    %54 = vector.shape_cast %53 : vector<24x4xf32> to vector<3x8x4xf32>
    %55 = vector.shape_cast %40 : vector<3x8x4xf32> to vector<1x3x8x4xf32>
    %56 = vector.shape_cast %42 : vector<3x8x4xf32> to vector<1x3x8x4xf32>
    %57 = vector.shape_cast %44 : vector<3x8x4xf32> to vector<1x3x8x4xf32>
    %58 = vector.shape_cast %46 : vector<3x8x4xf32> to vector<1x3x8x4xf32>
    %59 = vector.shape_cast %48 : vector<3x8x4xf32> to vector<1x3x8x4xf32>
    %60 = vector.shape_cast %50 : vector<3x8x4xf32> to vector<1x3x8x4xf32>
    %61 = vector.shape_cast %52 : vector<3x8x4xf32> to vector<1x3x8x4xf32>
    %62 = vector.shape_cast %54 : vector<3x8x4xf32> to vector<1x3x8x4xf32>
    %63 = tpu.concatenate %55, %56, %57, %58, %59, %60, %61, %62 in 0 : vector<1x3x8x4xf32>, vector<1x3x8x4xf32>, vector<1x3x8x4xf32>, vector<1x3x8x4xf32>, vector<1x3x8x4xf32>, vector<1x3x8x4xf32>, vector<1x3x8x4xf32>, vector<1x3x8x4xf32> -> vector<8x3x8x4xf32>
    %64 = vector.shape_cast %63 : vector<8x3x8x4xf32> to vector<24x8x4xf32>
    %65 = arith.truncf %64 : vector<24x8x4xf32> to vector<24x8x4xbf16>
    %66 = vector.extract_strided_slice %11 {offsets = [0, 64], sizes = [24, 4], strides = [1, 1]} : vector<24x96xf32> to vector<24x4xf32>
    %67 = vector.shape_cast %66 : vector<24x4xf32> to vector<3x8x4xf32>
    %68 = vector.extract_strided_slice %11 {offsets = [0, 68], sizes = [24, 4], strides = [1, 1]} : vector<24x96xf32> to vector<24x4xf32>
    %69 = vector.shape_cast %68 : vector<24x4xf32> to vector<3x8x4xf32>
    %70 = vector.extract_strided_slice %11 {offsets = [0, 72], sizes = [24, 4], strides = [1, 1]} : vector<24x96xf32> to vector<24x4xf32>
    %71 = vector.shape_cast %70 : vector<24x4xf32> to vector<3x8x4xf32>
    %72 = vector.extract_strided_slice %11 {offsets = [0, 76], sizes = [24, 4], strides = [1, 1]} : vector<24x96xf32> to vector<24x4xf32>
    %73 = vector.shape_cast %72 : vector<24x4xf32> to vector<3x8x4xf32>
    %74 = vector.extract_strided_slice %11 {offsets = [0, 80], sizes = [24, 4], strides = [1, 1]} : vector<24x96xf32> to vector<24x4xf32>
    %75 = vector.shape_cast %74 : vector<24x4xf32> to vector<3x8x4xf32>
    %76 = vector.extract_strided_slice %11 {offsets = [0, 84], sizes = [24, 4], strides = [1, 1]} : vector<24x96xf32> to vector<24x4xf32>
    %77 = vector.shape_cast %76 : vector<24x4xf32> to vector<3x8x4xf32>
    %78 = vector.extract_strided_slice %11 {offsets = [0, 88], sizes = [24, 4], strides = [1, 1]} : vector<24x96xf32> to vector<24x4xf32>
    %79 = vector.shape_cast %78 : vector<24x4xf32> to vector<3x8x4xf32>
    %80 = vector.extract_strided_slice %11 {offsets = [0, 92], sizes = [24, 4], strides = [1, 1]} : vector<24x96xf32> to vector<24x4xf32>
    %81 = vector.shape_cast %80 : vector<24x4xf32> to vector<3x8x4xf32>
    %82 = vector.shape_cast %67 : vector<3x8x4xf32> to vector<1x3x8x4xf32>
    %83 = vector.shape_cast %69 : vector<3x8x4xf32> to vector<1x3x8x4xf32>
    %84 = vector.shape_cast %71 : vector<3x8x4xf32> to vector<1x3x8x4xf32>
    %85 = vector.shape_cast %73 : vector<3x8x4xf32> to vector<1x3x8x4xf32>
    %86 = vector.shape_cast %75 : vector<3x8x4xf32> to vector<1x3x8x4xf32>
    %87 = vector.shape_cast %77 : vector<3x8x4xf32> to vector<1x3x8x4xf32>
    %88 = vector.shape_cast %79 : vector<3x8x4xf32> to vector<1x3x8x4xf32>
    %89 = vector.shape_cast %81 : vector<3x8x4xf32> to vector<1x3x8x4xf32>
    %90 = tpu.concatenate %82, %83, %84, %85, %86, %87, %88, %89 in 0 : vector<1x3x8x4xf32>, vector<1x3x8x4xf32>, vector<1x3x8x4xf32>, vector<1x3x8x4xf32>, vector<1x3x8x4xf32>, vector<1x3x8x4xf32>, vector<1x3x8x4xf32>, vector<1x3x8x4xf32> -> vector<8x3x8x4xf32>
    %91 = vector.shape_cast %90 : vector<8x3x8x4xf32> to vector<24x8x4xf32>
    %92 = arith.truncf %91 : vector<24x8x4xf32> to vector<24x8x4xbf16>
    "tpu.trace_start"() <{level = 10 : i32, message = "ntc,nsc->nts"}> : () -> ()
    %cst_8 = arith.constant dense<0.000000e+00> : vector<24x8x8xf32>
    %93 = tpu.matmul %38, %65, %cst_8 {dimension_numbers = #tpu.dot_dimension_numbers<[2], [2], [1], [1], [0, 0, 0, 1, 1, 1], [0], [0]>} : vector<24x8x4xbf16>, vector<24x8x4xbf16>, vector<24x8x8xf32> -> vector<24x8x8xf32>
    "tpu.trace_stop"() : () -> ()
    %c0_9 = arith.constant 0 : index
    %c0_10 = arith.constant 0 : index
    %c0_11 = arith.constant 0 : index
    %94 = vector.load %arg5[%c0_9, %c0_10, %c0_11] : memref<24x1x8xf32, #tpu.memory_space<vmem>>, vector<24x1x8xf32>
    %95 = vector.broadcast %94 : vector<24x1x8xf32> to vector<24x8x8xf32>
    %96 = arith.addf %93, %95 : vector<24x8x8xf32>
    %cst_12 = arith.constant dense<0xFF800000> : vector<24x8xf32>
    %97 = vector.multi_reduction <maximumf>, %96, %cst_12 [2] : vector<24x8x8xf32> to vector<24x8xf32>
    %98 = vector.shape_cast %97 : vector<24x8xf32> to vector<24x8x1xf32>
    %99 = vector.broadcast %98 : vector<24x8x1xf32> to vector<24x8x8xf32>
    %100 = arith.subf %96, %99 : vector<24x8x8xf32>
    %101 = math.exp %100 : vector<24x8x8xf32>
    %cst_13 = arith.constant dense<0.000000e+00> : vector<24x8xf32>
    %102 = vector.multi_reduction <add>, %101, %cst_13 [2] : vector<24x8x8xf32> to vector<24x8xf32>
    %103 = vector.shape_cast %102 : vector<24x8xf32> to vector<24x8x1xf32>
    %104 = vector.broadcast %103 : vector<24x8x1xf32> to vector<24x8x8xf32>
    %105 = arith.divf %101, %104 : vector<24x8x8xf32>
    %106 = arith.truncf %105 : vector<24x8x8xf32> to vector<24x8x8xbf16>
    "tpu.trace_start"() <{level = 10 : i32, message = "nts,nsc->ntc"}> : () -> ()
    %cst_14 = arith.constant dense<0.000000e+00> : vector<24x8x4xf32>
    %107 = tpu.matmul %106, %92, %cst_14 {dimension_numbers = #tpu.dot_dimension_numbers<[2], [1], [1], [2], [0, 0, 0, 1, 1, 2], [0], [0]>} : vector<24x8x8xbf16>, vector<24x8x4xbf16>, vector<24x8x4xf32> -> vector<24x8x4xf32>
    "tpu.trace_stop"() : () -> ()
    %108 = vector.shape_cast %107 : vector<24x8x4xf32> to vector<8x3x8x4xf32>
    %cst_15 = arith.constant 0.000000e+00 : f32
    %109 = vector.broadcast %cst_15 : f32 to vector<24x32xf32>
    %110 = vector.extract_strided_slice %108 {offsets = [0, 0, 0, 0], sizes = [1, 3, 8, 4], strides = [1, 1, 1, 1]} : vector<8x3x8x4xf32> to vector<1x3x8x4xf32>
    %111 = vector.shape_cast %110 : vector<1x3x8x4xf32> to vector<3x8x4xf32>
    %112 = vector.shape_cast %111 : vector<3x8x4xf32> to vector<24x4xf32>
    %113 = arith.truncf %112 : vector<24x4xf32> to vector<24x4xbf16>
    %c0_16 = arith.constant 0 : index
    %c0_17 = arith.constant 0 : index
    %c0_18 = arith.constant 0 : index
    %c0_19 = arith.constant 0 : index
    %114 = vector.load %arg9[%c0_16, %c0_17, %c0_18, %c0_19] : memref<1x8x4x32xbf16, #tpu.memory_space<vmem>>, vector<1x1x4x32xbf16>
    %115 = vector.shape_cast %114 : vector<1x1x4x32xbf16> to vector<4x32xbf16>
    %cst_20 = arith.constant dense<0.000000e+00> : vector<24x32xf32>
    %116 = tpu.matmul %113, %115, %cst_20 {dimension_numbers = #tpu.dot_dimension_numbers<[1], [0], [0], [1], [0, 0, 1, 1], [], []>} : vector<24x4xbf16>, vector<4x32xbf16>, vector<24x32xf32> -> vector<24x32xf32>
    %117 = arith.addf %109, %116 : vector<24x32xf32>
    %118 = vector.extract_strided_slice %108 {offsets = [1, 0, 0, 0], sizes = [1, 3, 8, 4], strides = [1, 1, 1, 1]} : vector<8x3x8x4xf32> to vector<1x3x8x4xf32>
    %119 = vector.shape_cast %118 : vector<1x3x8x4xf32> to vector<3x8x4xf32>
    %120 = vector.shape_cast %119 : vector<3x8x4xf32> to vector<24x4xf32>
    %121 = arith.truncf %120 : vector<24x4xf32> to vector<24x4xbf16>
    %c0_21 = arith.constant 0 : index
    %c1 = arith.constant 1 : index
    %c0_22 = arith.constant 0 : index
    %c0_23 = arith.constant 0 : index
    %122 = vector.load %arg9[%c0_21, %c1, %c0_22, %c0_23] : memref<1x8x4x32xbf16, #tpu.memory_space<vmem>>, vector<1x1x4x32xbf16>
    %123 = vector.shape_cast %122 : vector<1x1x4x32xbf16> to vector<4x32xbf16>
    %cst_24 = arith.constant dense<0.000000e+00> : vector<24x32xf32>
    %124 = tpu.matmul %121, %123, %cst_24 {dimension_numbers = #tpu.dot_dimension_numbers<[1], [0], [0], [1], [0, 0, 1, 1], [], []>} : vector<24x4xbf16>, vector<4x32xbf16>, vector<24x32xf32> -> vector<24x32xf32>
    %125 = arith.addf %117, %124 : vector<24x32xf32>
    %126 = vector.extract_strided_slice %108 {offsets = [2, 0, 0, 0], sizes = [1, 3, 8, 4], strides = [1, 1, 1, 1]} : vector<8x3x8x4xf32> to vector<1x3x8x4xf32>
    %127 = vector.shape_cast %126 : vector<1x3x8x4xf32> to vector<3x8x4xf32>
    %128 = vector.shape_cast %127 : vector<3x8x4xf32> to vector<24x4xf32>
    %129 = arith.truncf %128 : vector<24x4xf32> to vector<24x4xbf16>
    %c0_25 = arith.constant 0 : index
    %c2 = arith.constant 2 : index
    %c0_26 = arith.constant 0 : index
    %c0_27 = arith.constant 0 : index
    %130 = vector.load %arg9[%c0_25, %c2, %c0_26, %c0_27] : memref<1x8x4x32xbf16, #tpu.memory_space<vmem>>, vector<1x1x4x32xbf16>
    %131 = vector.shape_cast %130 : vector<1x1x4x32xbf16> to vector<4x32xbf16>
    %cst_28 = arith.constant dense<0.000000e+00> : vector<24x32xf32>
    %132 = tpu.matmul %129, %131, %cst_28 {dimension_numbers = #tpu.dot_dimension_numbers<[1], [0], [0], [1], [0, 0, 1, 1], [], []>} : vector<24x4xbf16>, vector<4x32xbf16>, vector<24x32xf32> -> vector<24x32xf32>
    %133 = arith.addf %125, %132 : vector<24x32xf32>
    %134 = vector.extract_strided_slice %108 {offsets = [3, 0, 0, 0], sizes = [1, 3, 8, 4], strides = [1, 1, 1, 1]} : vector<8x3x8x4xf32> to vector<1x3x8x4xf32>
    %135 = vector.shape_cast %134 : vector<1x3x8x4xf32> to vector<3x8x4xf32>
    %136 = vector.shape_cast %135 : vector<3x8x4xf32> to vector<24x4xf32>
    %137 = arith.truncf %136 : vector<24x4xf32> to vector<24x4xbf16>
    %c0_29 = arith.constant 0 : index
    %c3 = arith.constant 3 : index
    %c0_30 = arith.constant 0 : index
    %c0_31 = arith.constant 0 : index
    %138 = vector.load %arg9[%c0_29, %c3, %c0_30, %c0_31] : memref<1x8x4x32xbf16, #tpu.memory_space<vmem>>, vector<1x1x4x32xbf16>
    %139 = vector.shape_cast %138 : vector<1x1x4x32xbf16> to vector<4x32xbf16>
    %cst_32 = arith.constant dense<0.000000e+00> : vector<24x32xf32>
    %140 = tpu.matmul %137, %139, %cst_32 {dimension_numbers = #tpu.dot_dimension_numbers<[1], [0], [0], [1], [0, 0, 1, 1], [], []>} : vector<24x4xbf16>, vector<4x32xbf16>, vector<24x32xf32> -> vector<24x32xf32>
    %141 = arith.addf %133, %140 : vector<24x32xf32>
    %142 = vector.extract_strided_slice %108 {offsets = [4, 0, 0, 0], sizes = [1, 3, 8, 4], strides = [1, 1, 1, 1]} : vector<8x3x8x4xf32> to vector<1x3x8x4xf32>
    %143 = vector.shape_cast %142 : vector<1x3x8x4xf32> to vector<3x8x4xf32>
    %144 = vector.shape_cast %143 : vector<3x8x4xf32> to vector<24x4xf32>
    %145 = arith.truncf %144 : vector<24x4xf32> to vector<24x4xbf16>
    %c0_33 = arith.constant 0 : index
    %c4 = arith.constant 4 : index
    %c0_34 = arith.constant 0 : index
    %c0_35 = arith.constant 0 : index
    %146 = vector.load %arg9[%c0_33, %c4, %c0_34, %c0_35] : memref<1x8x4x32xbf16, #tpu.memory_space<vmem>>, vector<1x1x4x32xbf16>
    %147 = vector.shape_cast %146 : vector<1x1x4x32xbf16> to vector<4x32xbf16>
    %cst_36 = arith.constant dense<0.000000e+00> : vector<24x32xf32>
    %148 = tpu.matmul %145, %147, %cst_36 {dimension_numbers = #tpu.dot_dimension_numbers<[1], [0], [0], [1], [0, 0, 1, 1], [], []>} : vector<24x4xbf16>, vector<4x32xbf16>, vector<24x32xf32> -> vector<24x32xf32>
    %149 = arith.addf %141, %148 : vector<24x32xf32>
    %150 = vector.extract_strided_slice %108 {offsets = [5, 0, 0, 0], sizes = [1, 3, 8, 4], strides = [1, 1, 1, 1]} : vector<8x3x8x4xf32> to vector<1x3x8x4xf32>
    %151 = vector.shape_cast %150 : vector<1x3x8x4xf32> to vector<3x8x4xf32>
    %152 = vector.shape_cast %151 : vector<3x8x4xf32> to vector<24x4xf32>
    %153 = arith.truncf %152 : vector<24x4xf32> to vector<24x4xbf16>
    %c0_37 = arith.constant 0 : index
    %c5 = arith.constant 5 : index
    %c0_38 = arith.constant 0 : index
    %c0_39 = arith.constant 0 : index
    %154 = vector.load %arg9[%c0_37, %c5, %c0_38, %c0_39] : memref<1x8x4x32xbf16, #tpu.memory_space<vmem>>, vector<1x1x4x32xbf16>
    %155 = vector.shape_cast %154 : vector<1x1x4x32xbf16> to vector<4x32xbf16>
    %cst_40 = arith.constant dense<0.000000e+00> : vector<24x32xf32>
    %156 = tpu.matmul %153, %155, %cst_40 {dimension_numbers = #tpu.dot_dimension_numbers<[1], [0], [0], [1], [0, 0, 1, 1], [], []>} : vector<24x4xbf16>, vector<4x32xbf16>, vector<24x32xf32> -> vector<24x32xf32>
    %157 = arith.addf %149, %156 : vector<24x32xf32>
    %158 = vector.extract_strided_slice %108 {offsets = [6, 0, 0, 0], sizes = [1, 3, 8, 4], strides = [1, 1, 1, 1]} : vector<8x3x8x4xf32> to vector<1x3x8x4xf32>
    %159 = vector.shape_cast %158 : vector<1x3x8x4xf32> to vector<3x8x4xf32>
    %160 = vector.shape_cast %159 : vector<3x8x4xf32> to vector<24x4xf32>
    %161 = arith.truncf %160 : vector<24x4xf32> to vector<24x4xbf16>
    %c0_41 = arith.constant 0 : index
    %c6 = arith.constant 6 : index
    %c0_42 = arith.constant 0 : index
    %c0_43 = arith.constant 0 : index
    %162 = vector.load %arg9[%c0_41, %c6, %c0_42, %c0_43] : memref<1x8x4x32xbf16, #tpu.memory_space<vmem>>, vector<1x1x4x32xbf16>
    %163 = vector.shape_cast %162 : vector<1x1x4x32xbf16> to vector<4x32xbf16>
    %cst_44 = arith.constant dense<0.000000e+00> : vector<24x32xf32>
    %164 = tpu.matmul %161, %163, %cst_44 {dimension_numbers = #tpu.dot_dimension_numbers<[1], [0], [0], [1], [0, 0, 1, 1], [], []>} : vector<24x4xbf16>, vector<4x32xbf16>, vector<24x32xf32> -> vector<24x32xf32>
    %165 = arith.addf %157, %164 : vector<24x32xf32>
    %166 = vector.extract_strided_slice %108 {offsets = [7, 0, 0, 0], sizes = [1, 3, 8, 4], strides = [1, 1, 1, 1]} : vector<8x3x8x4xf32> to vector<1x3x8x4xf32>
    %167 = vector.shape_cast %166 : vector<1x3x8x4xf32> to vector<3x8x4xf32>
    %168 = vector.shape_cast %167 : vector<3x8x4xf32> to vector<24x4xf32>
    %169 = arith.truncf %168 : vector<24x4xf32> to vector<24x4xbf16>
    %c0_45 = arith.constant 0 : index
    %c7 = arith.constant 7 : index
    %c0_46 = arith.constant 0 : index
    %c0_47 = arith.constant 0 : index
    %170 = vector.load %arg9[%c0_45, %c7, %c0_46, %c0_47] : memref<1x8x4x32xbf16, #tpu.memory_space<vmem>>, vector<1x1x4x32xbf16>
    %171 = vector.shape_cast %170 : vector<1x1x4x32xbf16> to vector<4x32xbf16>
    %cst_48 = arith.constant dense<0.000000e+00> : vector<24x32xf32>
    %172 = tpu.matmul %169, %171, %cst_48 {dimension_numbers = #tpu.dot_dimension_numbers<[1], [0], [0], [1], [0, 0, 1, 1], [], []>} : vector<24x4xbf16>, vector<4x32xbf16>, vector<24x32xf32> -> vector<24x32xf32>
    %173 = arith.addf %165, %172 : vector<24x32xf32>
    %c0_49 = arith.constant 0 : index
    %c0_50 = arith.constant 0 : index
    %c0_51 = arith.constant 0 : index
    %174 = vector.load %arg10[%c0_49, %c0_50, %c0_51] : memref<1x1x32xf32, #tpu.memory_space<vmem>>, vector<1x1x32xf32>
    %175 = vector.shape_cast %174 : vector<1x1x32xf32> to vector<1x32xf32>
    %176 = vector.broadcast %175 : vector<1x32xf32> to vector<24x32xf32>
    %177 = arith.addf %173, %176 : vector<24x32xf32>
    %178 = arith.addf %3, %177 : vector<24x32xf32>
    %c0_52 = arith.constant 0 : index
    %c0_53 = arith.constant 0 : index
    %c0_54 = arith.constant 0 : index
    %179 = vector.load %arg15[%c0_52, %c0_53, %c0_54] : memref<1x1x32xf32, #tpu.memory_space<vmem>>, vector<1x1x32xf32>
    %180 = vector.shape_cast %179 : vector<1x1x32xf32> to vector<1x32xf32>
    %c0_55 = arith.constant 0 : index
    %c0_56 = arith.constant 0 : index
    %c0_57 = arith.constant 0 : index
    %181 = vector.load %arg16[%c0_55, %c0_56, %c0_57] : memref<1x1x32xf32, #tpu.memory_space<vmem>>, vector<1x1x32xf32>
    %182 = vector.shape_cast %181 : vector<1x1x32xf32> to vector<1x32xf32>
    %cst_58 = arith.constant dense<0.000000e+00> : vector<24xf32>
    %183 = vector.multi_reduction <add>, %178, %cst_58 [1] : vector<24x32xf32> to vector<24xf32>
    %184 = vector.shape_cast %183 : vector<24xf32> to vector<24x1xf32>
    %cst_59 = arith.constant 3.200000e+01 : f32
    %185 = vector.broadcast %cst_59 : f32 to vector<24x1xf32>
    %186 = arith.divf %184, %185 : vector<24x1xf32>
    %187 = vector.broadcast %186 : vector<24x1xf32> to vector<24x32xf32>
    %188 = arith.subf %178, %187 : vector<24x32xf32>
    %189 = arith.mulf %188, %188 : vector<24x32xf32>
    %cst_60 = arith.constant dense<0.000000e+00> : vector<24xf32>
    %190 = vector.multi_reduction <add>, %189, %cst_60 [1] : vector<24x32xf32> to vector<24xf32>
    %191 = vector.shape_cast %190 : vector<24xf32> to vector<24x1xf32>
    %cst_61 = arith.constant 3.200000e+01 : f32
    %192 = vector.broadcast %cst_61 : f32 to vector<24x1xf32>
    %193 = arith.divf %191, %192 : vector<24x1xf32>
    %cst_62 = arith.constant 9.99999974E-6 : f32
    %194 = vector.broadcast %cst_62 : f32 to vector<24x1xf32>
    %195 = arith.addf %193, %194 : vector<24x1xf32>
    %196 = math.rsqrt %195 : vector<24x1xf32>
    %197 = vector.broadcast %196 : vector<24x1xf32> to vector<24x32xf32>
    %198 = arith.mulf %188, %197 : vector<24x32xf32>
    %199 = vector.broadcast %180 : vector<1x32xf32> to vector<24x32xf32>
    %200 = arith.mulf %198, %199 : vector<24x32xf32>
    %201 = vector.broadcast %182 : vector<1x32xf32> to vector<24x32xf32>
    %202 = arith.addf %200, %201 : vector<24x32xf32>
    %203 = arith.truncf %202 : vector<24x32xf32> to vector<24x32xbf16>
    %c0_63 = arith.constant 0 : index
    %c0_64 = arith.constant 0 : index
    %c0_65 = arith.constant 0 : index
    %204 = vector.load %arg11[%c0_63, %c0_64, %c0_65] : memref<1x32x128xbf16, #tpu.memory_space<vmem>>, vector<1x32x128xbf16>
    %205 = vector.shape_cast %204 : vector<1x32x128xbf16> to vector<32x128xbf16>
    %cst_66 = arith.constant dense<0.000000e+00> : vector<24x128xf32>
    %206 = tpu.matmul %203, %205, %cst_66 {dimension_numbers = #tpu.dot_dimension_numbers<[1], [0], [0], [1], [0, 0, 1, 1], [], []>} : vector<24x32xbf16>, vector<32x128xbf16>, vector<24x128xf32> -> vector<24x128xf32>
    %c0_67 = arith.constant 0 : index
    %c0_68 = arith.constant 0 : index
    %c0_69 = arith.constant 0 : index
    %207 = vector.load %arg12[%c0_67, %c0_68, %c0_69] : memref<1x1x128xf32, #tpu.memory_space<vmem>>, vector<1x1x128xf32>
    %208 = vector.shape_cast %207 : vector<1x1x128xf32> to vector<1x128xf32>
    %209 = vector.broadcast %208 : vector<1x128xf32> to vector<24x128xf32>
    %210 = arith.addf %206, %209 : vector<24x128xf32>
    %cst_70 = arith.constant 0.000000e+00 : f32
    %211 = vector.broadcast %cst_70 : f32 to vector<24x128xf32>
    %212 = arith.maximumf %210, %211 : vector<24x128xf32>
    %213 = arith.truncf %212 : vector<24x128xf32> to vector<24x128xbf16>
    %c0_71 = arith.constant 0 : index
    %c0_72 = arith.constant 0 : index
    %c0_73 = arith.constant 0 : index
    %214 = vector.load %arg13[%c0_71, %c0_72, %c0_73] : memref<1x128x32xbf16, #tpu.memory_space<vmem>>, vector<1x128x32xbf16>
    %215 = vector.shape_cast %214 : vector<1x128x32xbf16> to vector<128x32xbf16>
    %cst_74 = arith.constant dense<0.000000e+00> : vector<24x32xf32>
    %216 = tpu.matmul %213, %215, %cst_74 {dimension_numbers = #tpu.dot_dimension_numbers<[1], [0], [0], [1], [0, 0, 1, 1], [], []>} : vector<24x128xbf16>, vector<128x32xbf16>, vector<24x32xf32> -> vector<24x32xf32>
    %c0_75 = arith.constant 0 : index
    %c0_76 = arith.constant 0 : index
    %c0_77 = arith.constant 0 : index
    %217 = vector.load %arg14[%c0_75, %c0_76, %c0_77] : memref<1x1x32xf32, #tpu.memory_space<vmem>>, vector<1x1x32xf32>
    %218 = vector.shape_cast %217 : vector<1x1x32xf32> to vector<1x32xf32>
    %219 = vector.broadcast %218 : vector<1x32xf32> to vector<24x32xf32>
    %220 = arith.addf %216, %219 : vector<24x32xf32>
    %221 = arith.addf %202, %220 : vector<24x32xf32>
    %c0_78 = arith.constant 0 : index
    %c0_79 = arith.constant 0 : index
    %c0_80 = arith.constant 0 : index
    %222 = vector.load %arg17[%c0_78, %c0_79, %c0_80] : memref<1x1x32xf32, #tpu.memory_space<vmem>>, vector<1x1x32xf32>
    %223 = vector.shape_cast %222 : vector<1x1x32xf32> to vector<1x32xf32>
    %c0_81 = arith.constant 0 : index
    %c0_82 = arith.constant 0 : index
    %c0_83 = arith.constant 0 : index
    %224 = vector.load %arg18[%c0_81, %c0_82, %c0_83] : memref<1x1x32xf32, #tpu.memory_space<vmem>>, vector<1x1x32xf32>
    %225 = vector.shape_cast %224 : vector<1x1x32xf32> to vector<1x32xf32>
    %cst_84 = arith.constant dense<0.000000e+00> : vector<24xf32>
    %226 = vector.multi_reduction <add>, %221, %cst_84 [1] : vector<24x32xf32> to vector<24xf32>
    %227 = vector.shape_cast %226 : vector<24xf32> to vector<24x1xf32>
    %cst_85 = arith.constant 3.200000e+01 : f32
    %228 = vector.broadcast %cst_85 : f32 to vector<24x1xf32>
    %229 = arith.divf %227, %228 : vector<24x1xf32>
    %230 = vector.broadcast %229 : vector<24x1xf32> to vector<24x32xf32>
    %231 = arith.subf %221, %230 : vector<24x32xf32>
    %232 = arith.mulf %231, %231 : vector<24x32xf32>
    %cst_86 = arith.constant dense<0.000000e+00> : vector<24xf32>
    %233 = vector.multi_reduction <add>, %232, %cst_86 [1] : vector<24x32xf32> to vector<24xf32>
    %234 = vector.shape_cast %233 : vector<24xf32> to vector<24x1xf32>
    %cst_87 = arith.constant 3.200000e+01 : f32
    %235 = vector.broadcast %cst_87 : f32 to vector<24x1xf32>
    %236 = arith.divf %234, %235 : vector<24x1xf32>
    %cst_88 = arith.constant 9.99999974E-6 : f32
    %237 = vector.broadcast %cst_88 : f32 to vector<24x1xf32>
    %238 = arith.addf %236, %237 : vector<24x1xf32>
    %239 = math.rsqrt %238 : vector<24x1xf32>
    %240 = vector.broadcast %239 : vector<24x1xf32> to vector<24x32xf32>
    %241 = arith.mulf %231, %240 : vector<24x32xf32>
    %242 = vector.broadcast %223 : vector<1x32xf32> to vector<24x32xf32>
    %243 = arith.mulf %241, %242 : vector<24x32xf32>
    %244 = vector.broadcast %225 : vector<1x32xf32> to vector<24x32xf32>
    %245 = arith.addf %243, %244 : vector<24x32xf32>
    %c0_89 = arith.constant 0 : index
    %c0_90 = arith.constant 0 : index
    %246 = vector.load %arg20[%c0_89, %c0_90] : memref<24x32xf32, #tpu.memory_space<vmem>>, vector<24x32xf32>
    tpu.vector_store %arg20[%c0_89, %c0_90], %245 {strides = array<i32>} : memref<24x32xf32, #tpu.memory_space<vmem>>, vector<24x32xf32>,
    %c3_i32 = arith.constant 3 : i32
    %247 = arith.cmpi eq, %arg0, %c3_i32 : i32
    %248 = arith.extui %247 : i1 to i32
    %c0_i32_91 = arith.constant 0 : i32
    %249 = arith.cmpi ne, %248, %c0_i32_91 : i32
    scf.if %249 {
      %c0_92 = arith.constant 0 : index
      %c0_93 = arith.constant 0 : index
      %250 = vector.load %arg4[%c0_92, %c0_93] : memref<14x24xf32, #tpu.memory_space<vmem>>, vector<14x24xf32>
      %cst_94 = arith.constant dense<0.000000e+00> : vector<14x32xf32>
      %251 = tpu.matmul %250, %245, %cst_94 {dimension_numbers = #tpu.dot_dimension_numbers<[1], [0], [0], [1], [0, 0, 1, 1], [], []>} : vector<14x24xf32>, vector<24x32xf32>, vector<14x32xf32> -> vector<14x32xf32>
      %c0_95 = arith.constant 0 : index
      %c0_96 = arith.constant 0 : index
      %252 = vector.load %arg6[%c0_95, %c0_96] : memref<56x32xf32, #tpu.memory_space<vmem>>, vector<56x32xf32>
      %cst_97 = arith.constant dense<0.000000e+00> : vector<14x56xf32>
      %253 = tpu.matmul %251, %252, %cst_97 {dimension_numbers = #tpu.dot_dimension_numbers<[1], [1], [0], [0], [0, 0, 1, 0], [], []>} : vector<14x32xf32>, vector<56x32xf32>, vector<14x56xf32> -> vector<14x56xf32>
      %c0_98 = arith.constant 0 : index
      %c0_99 = arith.constant 0 : index
      %254 = vector.load %arg19[%c0_98, %c0_99] : memref<14x56xf32, #tpu.memory_space<vmem>>, vector<14x56xf32>
      tpu.vector_store %arg19[%c0_98, %c0_99], %253 {strides = array<i32>} : memref<14x56xf32, #tpu.memory_space<vmem>>, vector<14x56xf32>,
    } else {
    }
    return
  }
  func.func @transform_0(%arg0: i32) -> (i32, i32) {
    %c0_i32 = arith.constant 0 : i32
    %c0_i32_0 = arith.constant 0 : i32
    %c0_i32_1 = arith.constant 0 : i32
    return %c0_i32, %c0_i32_0 : i32, i32
  }
  func.func @transform_1(%arg0: i32) -> (i32, i32) {
    %c0_i32 = arith.constant 0 : i32
    %c0_i32_0 = arith.constant 0 : i32
    %c0_i32_1 = arith.constant 0 : i32
    return %c0_i32, %c0_i32_0 : i32, i32
  }
  func.func @transform_2(%arg0: i32) -> (i32, i32) {
    %c0_i32 = arith.constant 0 : i32
    %c0_i32_0 = arith.constant 0 : i32
    %c0_i32_1 = arith.constant 0 : i32
    return %c0_i32, %c0_i32_0 : i32, i32
  }
  func.func @transform_3(%arg0: i32) -> (i32, i32) {
    %c0_i32 = arith.constant 0 : i32
    %c0_i32_0 = arith.constant 0 : i32
    %c0_i32_1 = arith.constant 0 : i32
    return %c0_i32, %c0_i32_0 : i32, i32
  }
  func.func @transform_4(%arg0: i32) -> (i32, i32, i32) {
    %c0_i32 = arith.constant 0 : i32
    %c0_i32_0 = arith.constant 0 : i32
    %c0_i32_1 = arith.constant 0 : i32
    %c0_i32_2 = arith.constant 0 : i32
    return %c0_i32, %c0_i32_0, %c0_i32_1 : i32, i32, i32
  }
  func.func @transform_5(%arg0: i32) -> (i32, i32) {
    %c0_i32 = arith.constant 0 : i32
    %c0_i32_0 = arith.constant 0 : i32
    %c0_i32_1 = arith.constant 0 : i32
    return %c0_i32, %c0_i32_0 : i32, i32
  }
  func.func @transform_6(%arg0: i32) -> (i32, i32, i32) {
    %c0_i32 = arith.constant 0 : i32
    %c0_i32_0 = arith.constant 0 : i32
    %c0_i32_1 = arith.constant 0 : i32
    return %arg0, %c0_i32, %c0_i32_0 : i32, i32, i32
  }
  func.func @transform_7(%arg0: i32) -> (i32, i32, i32) {
    %c0_i32 = arith.constant 0 : i32
    %c0_i32_0 = arith.constant 0 : i32
    %c0_i32_1 = arith.constant 0 : i32
    return %arg0, %c0_i32, %c0_i32_0 : i32, i32, i32
  }
  func.func @transform_8(%arg0: i32) -> (i32, i32, i32, i32) {
    %c0_i32 = arith.constant 0 : i32
    %c0_i32_0 = arith.constant 0 : i32
    %c0_i32_1 = arith.constant 0 : i32
    %c0_i32_2 = arith.constant 0 : i32
    return %arg0, %c0_i32, %c0_i32_0, %c0_i32_1 : i32, i32, i32, i32
  }
  func.func @transform_9(%arg0: i32) -> (i32, i32, i32) {
    %c0_i32 = arith.constant 0 : i32
    %c0_i32_0 = arith.constant 0 : i32
    %c0_i32_1 = arith.constant 0 : i32
    return %arg0, %c0_i32, %c0_i32_0 : i32, i32, i32
  }
  func.func @transform_10(%arg0: i32) -> (i32, i32, i32) {
    %c0_i32 = arith.constant 0 : i32
    %c0_i32_0 = arith.constant 0 : i32
    %c0_i32_1 = arith.constant 0 : i32
    return %arg0, %c0_i32, %c0_i32_0 : i32, i32, i32
  }
  func.func @transform_11(%arg0: i32) -> (i32, i32, i32) {
    %c0_i32 = arith.constant 0 : i32
    %c0_i32_0 = arith.constant 0 : i32
    %c0_i32_1 = arith.constant 0 : i32
    return %arg0, %c0_i32, %c0_i32_0 : i32, i32, i32
  }
  func.func @transform_12(%arg0: i32) -> (i32, i32, i32) {
    %c0_i32 = arith.constant 0 : i32
    %c0_i32_0 = arith.constant 0 : i32
    %c0_i32_1 = arith.constant 0 : i32
    return %arg0, %c0_i32, %c0_i32_0 : i32, i32, i32
  }
  func.func @transform_13(%arg0: i32) -> (i32, i32, i32) {
    %c0_i32 = arith.constant 0 : i32
    %c0_i32_0 = arith.constant 0 : i32
    %c0_i32_1 = arith.constant 0 : i32
    return %arg0, %c0_i32, %c0_i32_0 : i32, i32, i32
  }
  func.func @transform_14(%arg0: i32) -> (i32, i32, i32) {
    %c0_i32 = arith.constant 0 : i32
    %c0_i32_0 = arith.constant 0 : i32
    %c0_i32_1 = arith.constant 0 : i32
    return %arg0, %c0_i32, %c0_i32_0 : i32, i32, i32
  }
  func.func @transform_15(%arg0: i32) -> (i32, i32, i32) {
    %c0_i32 = arith.constant 0 : i32
    %c0_i32_0 = arith.constant 0 : i32
    %c0_i32_1 = arith.constant 0 : i32
    return %arg0, %c0_i32, %c0_i32_0 : i32, i32, i32
  }
  func.func @transform_16(%arg0: i32) -> (i32, i32, i32) {
    %c0_i32 = arith.constant 0 : i32
    %c0_i32_0 = arith.constant 0 : i32
    %c0_i32_1 = arith.constant 0 : i32
    return %arg0, %c0_i32, %c0_i32_0 : i32, i32, i32
  }
  func.func @transform_17(%arg0: i32) -> (i32, i32, i32) {
    %c0_i32 = arith.constant 0 : i32
    %c0_i32_0 = arith.constant 0 : i32
    %c0_i32_1 = arith.constant 0 : i32
    return %arg0, %c0_i32, %c0_i32_0 : i32, i32, i32
  }
  func.func @transform_18(%arg0: i32) -> (i32, i32) {
    %c0_i32 = arith.constant 0 : i32
    %c0_i32_0 = arith.constant 0 : i32
    %c0_i32_1 = arith.constant 0 : i32
    return %c0_i32, %c0_i32_0 : i32, i32
  }
}

</mosaic_0001>

<llo_original>
// kernel: forward.1
$region0: #{forward.1}
  #allocation0 [shape = 'u32[]', space=smem, size = 0x4, offset = 0x4, fixed_abs, tag = 'smem constant byte address 0x4 - core index']
  #allocation1 [shape = 'u32[72,128]{1,0:T(1,128)}', space=vmem, size = 0x9000, scoped, tag = 'internal scratch']
  #allocation2 [shape = 'f32[24,32]{1,0:T(8,128)}', space=vmem, size = 0x3000, scoped, tag = 'scratch operand']
  %s0 = inlined_call_operand.vmem [shape: f32[14,16], index: 0, kind: input, shape index: {}]
  %s1 = inlined_call_operand.vmem [shape: f32[16,32], index: 1, kind: input, shape index: {}]
  %s2 = inlined_call_operand.vmem [shape: f32[24,14], index: 2, kind: input, shape index: {}]
  %s3 = inlined_call_operand.vmem [shape: f32[14,24], index: 3, kind: input, shape index: {}]
  %s4 = inlined_call_operand.vmem [shape: f32[24,1,8], index: 4, kind: input, shape index: {}]
  %s5 = inlined_call_operand.vmem [shape: f32[56,32], index: 5, kind: input, shape index: {}]
  %s6 = inlined_call_operand.vmem [shape: bf16[4,32,96], index: 6, kind: input, shape index: {}]
  %s7 = inlined_call_operand.vmem [shape: f32[4,1,96], index: 7, kind: input, shape index: {}]
  %s8 = inlined_call_operand.vmem [shape: bf16[4,8,4,32], index: 8, kind: input, shape index: {}]
  %s9 = inlined_call_operand.vmem [shape: f32[4,1,32], index: 9, kind: input, shape index: {}]
  %s10 = inlined_call_operand.vmem [shape: bf16[4,32,128], index: 10, kind: input, shape index: {}]
  %s11 = inlined_call_operand.vmem [shape: f32[4,1,128], index: 11, kind: input, shape index: {}]
  %s12 = inlined_call_operand.vmem [shape: bf16[4,128,32], index: 12, kind: input, shape index: {}]
  %s13 = inlined_call_operand.vmem [shape: f32[4,1,32], index: 13, kind: input, shape index: {}]
  %s14 = inlined_call_operand.vmem [shape: f32[4,1,32], index: 14, kind: input, shape index: {}]
  %s15 = inlined_call_operand.vmem [shape: f32[4,1,32], index: 15, kind: input, shape index: {}]
  %s16 = inlined_call_operand.vmem [shape: f32[4,1,32], index: 16, kind: input, shape index: {}]
  %s17 = inlined_call_operand.vmem [shape: f32[4,1,32], index: 17, kind: input, shape index: {}]
  %s18 = inlined_call_operand.vmem [shape: f32[14,56], index: 18, kind: output, shape index: {}]
  %s19 = sld [smem:[#allocation0]]
  $region113: #{forward.1} parent=0
    _
  %s21 = ssub.s32 1, %s19
  %s22 = scalar_select 0, %s21, %s19
  loop: start=0, step=1, limit=6
  $region2: #{forward.1} parent=0 // loop_pre_header
    _
  $region3: #{forward.1} parent=0 // loop_header
    %s24 = sphi 0, %s28
    %p25 = scmp.ge.s32.totalorder %s24, 6
    %s32 = sphi 0, %s32
    %s34 = sphi 0, %s32
    %s35 = sphi 0, %s34
    %s49 = sphi 0, %s35
    %s53 = sphi 0, %s53
    %s55 = sphi 0, %s53
    %s56 = sphi 0, %s55
    %s70 = sphi 0, %s56
    %s74 = sphi 0, %s74
    %s76 = sphi 0, %s74
    %s77 = sphi 0, %s76
    %s91 = sphi 0, %s77
    %s95 = sphi 0, %s95
    %s97 = sphi 0, %s95
    %s98 = sphi 0, %s97
    %s112 = sphi 0, %s98
    %s116 = sphi 0, %s116
    %s118 = sphi 0, %s116
    %s119 = sphi 0, %s118
    %s133 = sphi 0, %s119
    %s137 = sphi 0, %s137
    %s139 = sphi 0, %s137
    %s140 = sphi 0, %s139
    %s154 = sphi 0, %s140
    %s160 = sphi 0, %s162
    %s163 = sphi 0, %s160
    %s164 = sphi 0, %s163
    %s180 = sphi 0, %s164
    %s186 = sphi 0, %s188
    %s189 = sphi 0, %s186
    %s190 = sphi 0, %s189
    %s206 = sphi 0, %s190
    %s212 = sphi 0, %s214
    %s215 = sphi 0, %s212
    %s216 = sphi 0, %s215
    %s232 = sphi 0, %s216
    %s238 = sphi 0, %s240
    %s241 = sphi 0, %s238
    %s242 = sphi 0, %s241
    %s258 = sphi 0, %s242
    %s264 = sphi 0, %s266
    %s267 = sphi 0, %s264
    %s268 = sphi 0, %s267
    %s284 = sphi 0, %s268
    %s290 = sphi 0, %s292
    %s293 = sphi 0, %s290
    %s294 = sphi 0, %s293
    %s310 = sphi 0, %s294
    %s316 = sphi 0, %s318
    %s319 = sphi 0, %s316
    %s320 = sphi 0, %s319
    %s336 = sphi 0, %s320
    %s342 = sphi 0, %s344
    %s345 = sphi 0, %s342
    %s346 = sphi 0, %s345
    %s362 = sphi 0, %s346
    %s368 = sphi 0, %s370
    %s371 = sphi 0, %s368
    %s372 = sphi 0, %s371
    %s388 = sphi 0, %s372
    %s394 = sphi 0, %s396
    %s397 = sphi 0, %s394
    %s398 = sphi 0, %s397
    %s414 = sphi 0, %s398
    %s420 = sphi 0, %s422
    %s423 = sphi 0, %s420
    %s424 = sphi 0, %s423
    %s440 = sphi 0, %s424
    %s446 = sphi 0, %s448
    %s449 = sphi 0, %s446
    %s450 = sphi 0, %s449
    %s466 = sphi 0, %s450
    %s470 = sphi 0, %s470
    %s472 = sphi 0, %s470
    %s473 = sphi 0, %s472
    %s487 = sphi 0, %s473
  $region4: #{forward.1} parent=0 // loop_header_branch
    %27 = sbr.rel (%p25) target = $region8
  $region5: #{forward.1} parent=0 // loop_body
    %s29 = ssub.s32 %s24, 1
    %s30 = ssub.s32 %s24, 2
    %s31 = sadd.s32 %s24, 1
    %s33 = sadd.s32 %s32, 1
    %p36 = scmp.eq.s32.totalorder %s24, 3
    %p37 = scmp.ne.s32.totalorder %s32, %s34
    %p38 = scmp.eq.s32.totalorder %s24, 0
    %p39 = por %p37, %p38
    %p40 = scmp.ne.s32.totalorder %s32, %s34
    %p41 = scmp.eq.s32.totalorder %s29, 3
    %p42 = por %p40, %p41
    %p43 = scmp.ne.s32.totalorder %s34, %s35
    %p44 = scmp.eq.s32.totalorder %s29, 0
    %p45 = por %p43, %p44
    %p46 = scmp.ne.s32.totalorder %s34, %s35
    %p47 = scmp.eq.s32.totalorder %s30, 3
    %p48 = por %p46, %p47
    %p50 = scmp.ne.s32.totalorder %s35, %s49
    %p51 = scmp.eq.s32.totalorder %s30, 0
    %p52 = por %p50, %p51
    %s54 = sadd.s32 %s53, 1
    %p57 = scmp.eq.s32.totalorder %s24, 3
    %p58 = scmp.ne.s32.totalorder %s53, %s55
    %p59 = scmp.eq.s32.totalorder %s24, 0
    %p60 = por %p58, %p59
    %p61 = scmp.ne.s32.totalorder %s53, %s55
    %p62 = scmp.eq.s32.totalorder %s29, 3
    %p63 = por %p61, %p62
    %p64 = scmp.ne.s32.totalorder %s55, %s56
    %p65 = scmp.eq.s32.totalorder %s29, 0
    %p66 = por %p64, %p65
    %p67 = scmp.ne.s32.totalorder %s55, %s56
    %p68 = scmp.eq.s32.totalorder %s30, 3
    %p69 = por %p67, %p68
    %p71 = scmp.ne.s32.totalorder %s56, %s70
    %p72 = scmp.eq.s32.totalorder %s30, 0
    %p73 = por %p71, %p72
    %s75 = sadd.s32 %s74, 1
    %p78 = scmp.eq.s32.totalorder %s24, 3
    %p79 = scmp.ne.s32.totalorder %s74, %s76
    %p80 = scmp.eq.s32.totalorder %s24, 0
    %p81 = por %p79, %p80
    %p82 = scmp.ne.s32.totalorder %s74, %s76
    %p83 = scmp.eq.s32.totalorder %s29, 3
    %p84 = por %p82, %p83
    %p85 = scmp.ne.s32.totalorder %s76, %s77
    %p86 = scmp.eq.s32.totalorder %s29, 0
    %p87 = por %p85, %p86
    %p88 = scmp.ne.s32.totalorder %s76, %s77
    %p89 = scmp.eq.s32.totalorder %s30, 3
    %p90 = por %p88, %p89
    %p92 = scmp.ne.s32.totalorder %s77, %s91
    %p93 = scmp.eq.s32.totalorder %s30, 0
    %p94 = por %p92, %p93
    %s96 = sadd.s32 %s95, 1
    %p99 = scmp.eq.s32.totalorder %s24, 3
    %p100 = scmp.ne.s32.totalorder %s95, %s97
    %p101 = scmp.eq.s32.totalorder %s24, 0
    %p102 = por %p100, %p101
    %p103 = scmp.ne.s32.totalorder %s95, %s97
    %p104 = scmp.eq.s32.totalorder %s29, 3
    %p105 = por %p103, %p104
    %p106 = scmp.ne.s32.totalorder %s97, %s98
    %p107 = scmp.eq.s32.totalorder %s29, 0
    %p108 = por %p106, %p107
    %p109 = scmp.ne.s32.totalorder %s97, %s98
    %p110 = scmp.eq.s32.totalorder %s30, 3
    %p111 = por %p109, %p110
    %p113 = scmp.ne.s32.totalorder %s98, %s112
    %p114 = scmp.eq.s32.totalorder %s30, 0
    %p115 = por %p113, %p114
    %s117 = sadd.s32 %s116, 1
    %p120 = scmp.eq.s32.totalorder %s24, 3
    %p121 = scmp.ne.s32.totalorder %s116, %s118
    %p122 = scmp.eq.s32.totalorder %s24, 0
    %p123 = por %p121, %p122
    %p124 = scmp.ne.s32.totalorder %s116, %s118
    %p125 = scmp.eq.s32.totalorder %s29, 3
    %p126 = por %p124, %p125
    %p127 = scmp.ne.s32.totalorder %s118, %s119
    %p128 = scmp.eq.s32.totalorder %s29, 0
    %p129 = por %p127, %p128
    %p130 = scmp.ne.s32.totalorder %s118, %s119
    %p131 = scmp.eq.s32.totalorder %s30, 3
    %p132 = por %p130, %p131
    %p134 = scmp.ne.s32.totalorder %s119, %s133
    %p135 = scmp.eq.s32.totalorder %s30, 0
    %p136 = por %p134, %p135
    %s138 = sadd.s32 %s137, 1
    %p141 = scmp.eq.s32.totalorder %s24, 3
    %p142 = scmp.ne.s32.totalorder %s137, %s139
    %p143 = scmp.eq.s32.totalorder %s24, 0
    %p144 = por %p142, %p143
    %p145 = scmp.ne.s32.totalorder %s137, %s139
    %p146 = scmp.eq.s32.totalorder %s29, 3
    %p147 = por %p145, %p146
    %p148 = scmp.ne.s32.totalorder %s139, %s140
    %p149 = scmp.eq.s32.totalorder %s29, 0
    %p150 = por %p148, %p149
    %p151 = scmp.ne.s32.totalorder %s139, %s140
    %p152 = scmp.eq.s32.totalorder %s30, 3
    %p153 = por %p151, %p152
    %p155 = scmp.ne.s32.totalorder %s140, %s154
    %p156 = scmp.eq.s32.totalorder %s30, 0
    %p157 = por %p155, %p156
    %s158 = ssub.s32 %s24, %s31
    %p159 = scmp.eq.s32.totalorder %s158, 0
    %s161 = sadd.s32 %s160, 1
    %s162 = scalar_select %p159, %s160, %s161
    %p165 = pneg %p159
    %p166 = scmp.eq.s32.totalorder %s24, 3
    %p167 = por %p165, %p166
    %p168 = scmp.ne.s32.totalorder %s160, %s163
    %p169 = scmp.eq.s32.totalorder %s24, 0
    %p170 = por %p168, %p169
    %p171 = scmp.ne.s32.totalorder %s160, %s163
    %p172 = scmp.eq.s32.totalorder %s29, 3
    %p173 = por %p171, %p172
    %p174 = scmp.ne.s32.totalorder %s163, %s164
    %p175 = scmp.eq.s32.totalorder %s29, 0
    %p176 = por %p174, %p175
    %p177 = scmp.ne.s32.totalorder %s163, %s164
    %p178 = scmp.eq.s32.totalorder %s30, 3
    %p179 = por %p177, %p178
    %p181 = scmp.ne.s32.totalorder %s164, %s180
    %p182 = scmp.eq.s32.totalorder %s30, 0
    %p183 = por %p181, %p182
    %s184 = ssub.s32 %s24, %s31
    %p185 = scmp.eq.s32.totalorder %s184, 0
    %s187 = sadd.s32 %s186, 1
    %s188 = scalar_select %p185, %s186, %s187
    %p191 = pneg %p185
    %p192 = scmp.eq.s32.totalorder %s24, 3
    %p193 = por %p191, %p192
    %p194 = scmp.ne.s32.totalorder %s186, %s189
    %p195 = scmp.eq.s32.totalorder %s24, 0
    %p196 = por %p194, %p195
    %p197 = scmp.ne.s32.totalorder %s186, %s189
    %p198 = scmp.eq.s32.totalorder %s29, 3
    %p199 = por %p197, %p198
    %p200 = scmp.ne.s32.totalorder %s189, %s190
    %p201 = scmp.eq.s32.totalorder %s29, 0
    %p202 = por %p200, %p201
    %p203 = scmp.ne.s32.totalorder %s189, %s190
    %p204 = scmp.eq.s32.totalorder %s30, 3
    %p205 = por %p203, %p204
    %p207 = scmp.ne.s32.totalorder %s190, %s206
    %p208 = scmp.eq.s32.totalorder %s30, 0
    %p209 = por %p207, %p208
    %s210 = ssub.s32 %s24, %s31
    %p211 = scmp.eq.s32.totalorder %s210, 0
    %s213 = sadd.s32 %s212, 1
    %s214 = scalar_select %p211, %s212, %s213
    %p217 = pneg %p211
    %p218 = scmp.eq.s32.totalorder %s24, 3
    %p219 = por %p217, %p218
    %p220 = scmp.ne.s32.totalorder %s212, %s215
    %p221 = scmp.eq.s32.totalorder %s24, 0
    %p222 = por %p220, %p221
    %p223 = scmp.ne.s32.totalorder %s212, %s215
    %p224 = scmp.eq.s32.totalorder %s29, 3
    %p225 = por %p223, %p224
    %p226 = scmp.ne.s32.totalorder %s215, %s216
    %p227 = scmp.eq.s32.totalorder %s29, 0
    %p228 = por %p226, %p227
    %p229 = scmp.ne.s32.totalorder %s215, %s216
    %p230 = scmp.eq.s32.totalorder %s30, 3
    %p231 = por %p229, %p230
    %p233 = scmp.ne.s32.totalorder %s216, %s232
    %p234 = scmp.eq.s32.totalorder %s30, 0
    %p235 = por %p233, %p234
    %s236 = ssub.s32 %s24, %s31
    %p237 = scmp.eq.s32.totalorder %s236, 0
    %s239 = sadd.s32 %s238, 1
    %s240 = scalar_select %p237, %s238, %s239
    %p243 = pneg %p237
    %p244 = scmp.eq.s32.totalorder %s24, 3
    %p245 = por %p243, %p244
    %p246 = scmp.ne.s32.totalorder %s238, %s241
    %p247 = scmp.eq.s32.totalorder %s24, 0
    %p248 = por %p246, %p247
    %p249 = scmp.ne.s32.totalorder %s238, %s241
    %p250 = scmp.eq.s32.totalorder %s29, 3
    %p251 = por %p249, %p250
    %p252 = scmp.ne.s32.totalorder %s241, %s242
    %p253 = scmp.eq.s32.totalorder %s29, 0
    %p254 = por %p252, %p253
    %p255 = scmp.ne.s32.totalorder %s241, %s242
    %p256 = scmp.eq.s32.totalorder %s30, 3
    %p257 = por %p255, %p256
    %p259 = scmp.ne.s32.totalorder %s242, %s258
    %p260 = scmp.eq.s32.totalorder %s30, 0
    %p261 = por %p259, %p260
    %s262 = ssub.s32 %s24, %s31
    %p263 = scmp.eq.s32.totalorder %s262, 0
    %s265 = sadd.s32 %s264, 1
    %s266 = scalar_select %p263, %s264, %s265
    %p269 = pneg %p263
    %p270 = scmp.eq.s32.totalorder %s24, 3
    %p271 = por %p269, %p270
    %p272 = scmp.ne.s32.totalorder %s264, %s267
    %p273 = scmp.eq.s32.totalorder %s24, 0
    %p274 = por %p272, %p273
    %p275 = scmp.ne.s32.totalorder %s264, %s267
    %p276 = scmp.eq.s32.totalorder %s29, 3
    %p277 = por %p275, %p276
    %p278 = scmp.ne.s32.totalorder %s267, %s268
    %p279 = scmp.eq.s32.totalorder %s29, 0
    %p280 = por %p278, %p279
    %p281 = scmp.ne.s32.totalorder %s267, %s268
    %p282 = scmp.eq.s32.totalorder %s30, 3
    %p283 = por %p281, %p282
    %p285 = scmp.ne.s32.totalorder %s268, %s284
    %p286 = scmp.eq.s32.totalorder %s30, 0
    %p287 = por %p285, %p286
    %s288 = ssub.s32 %s24, %s31
    %p289 = scmp.eq.s32.totalorder %s288, 0
    %s291 = sadd.s32 %s290, 1
    %s292 = scalar_select %p289, %s290, %s291
    %p295 = pneg %p289
    %p296 = scmp.eq.s32.totalorder %s24, 3
    %p297 = por %p295, %p296
    %p298 = scmp.ne.s32.totalorder %s290, %s293
    %p299 = scmp.eq.s32.totalorder %s24, 0
    %p300 = por %p298, %p299
    %p301 = scmp.ne.s32.totalorder %s290, %s293
    %p302 = scmp.eq.s32.totalorder %s29, 3
    %p303 = por %p301, %p302
    %p304 = scmp.ne.s32.totalorder %s293, %s294
    %p305 = scmp.eq.s32.totalorder %s29, 0
    %p306 = por %p304, %p305
    %p307 = scmp.ne.s32.totalorder %s293, %s294
    %p308 = scmp.eq.s32.totalorder %s30, 3
    %p309 = por %p307, %p308
    %p311 = scmp.ne.s32.totalorder %s294, %s310
    %p312 = scmp.eq.s32.totalorder %s30, 0
    %p313 = por %p311, %p312
    %s314 = ssub.s32 %s24, %s31
    %p315 = scmp.eq.s32.totalorder %s314, 0
    %s317 = sadd.s32 %s316, 1
    %s318 = scalar_select %p315, %s316, %s317
    %p321 = pneg %p315
    %p322 = scmp.eq.s32.totalorder %s24, 3
    %p323 = por %p321, %p322
    %p324 = scmp.ne.s32.totalorder %s316, %s319
    %p325 = scmp.eq.s32.totalorder %s24, 0
    %p326 = por %p324, %p325
    %p327 = scmp.ne.s32.totalorder %s316, %s319
    %p328 = scmp.eq.s32.totalorder %s29, 3
    %p329 = por %p327, %p328
    %p330 = scmp.ne.s32.totalorder %s319, %s320
    %p331 = scmp.eq.s32.totalorder %s29, 0
    %p332 = por %p330, %p331
    %p333 = scmp.ne.s32.totalorder %s319, %s320
    %p334 = scmp.eq.s32.totalorder %s30, 3
    %p335 = por %p333, %p334
    %p337 = scmp.ne.s32.totalorder %s320, %s336
    %p338 = scmp.eq.s32.totalorder %s30, 0
    %p339 = por %p337, %p338
    %s340 = ssub.s32 %s24, %s31
    %p341 = scmp.eq.s32.totalorder %s340, 0
    %s343 = sadd.s32 %s342, 1
    %s344 = scalar_select %p341, %s342, %s343
    %p347 = pneg %p341
    %p348 = scmp.eq.s32.totalorder %s24, 3
    %p349 = por %p347, %p348
    %p350 = scmp.ne.s32.totalorder %s342, %s345
    %p351 = scmp.eq.s32.totalorder %s24, 0
    %p352 = por %p350, %p351
    %p353 = scmp.ne.s32.totalorder %s342, %s345
    %p354 = scmp.eq.s32.totalorder %s29, 3
    %p355 = por %p353, %p354
    %p356 = scmp.ne.s32.totalorder %s345, %s346
    %p357 = scmp.eq.s32.totalorder %s29, 0
    %p358 = por %p356, %p357
    %p359 = scmp.ne.s32.totalorder %s345, %s346
    %p360 = scmp.eq.s32.totalorder %s30, 3
    %p361 = por %p359, %p360
    %p363 = scmp.ne.s32.totalorder %s346, %s362
    %p364 = scmp.eq.s32.totalorder %s30, 0
    %p365 = por %p363, %p364
    %s366 = ssub.s32 %s24, %s31
    %p367 = scmp.eq.s32.totalorder %s366, 0
    %s369 = sadd.s32 %s368, 1
    %s370 = scalar_select %p367, %s368, %s369
    %p373 = pneg %p367
    %p374 = scmp.eq.s32.totalorder %s24, 3
    %p375 = por %p373, %p374
    %p376 = scmp.ne.s32.totalorder %s368, %s371
    %p377 = scmp.eq.s32.totalorder %s24, 0
    %p378 = por %p376, %p377
    %p379 = scmp.ne.s32.totalorder %s368, %s371
    %p380 = scmp.eq.s32.totalorder %s29, 3
    %p381 = por %p379, %p380
    %p382 = scmp.ne.s32.totalorder %s371, %s372
    %p383 = scmp.eq.s32.totalorder %s29, 0
    %p384 = por %p382, %p383
    %p385 = scmp.ne.s32.totalorder %s371, %s372
    %p386 = scmp.eq.s32.totalorder %s30, 3
    %p387 = por %p385, %p386
    %p389 = scmp.ne.s32.totalorder %s372, %s388
    %p390 = scmp.eq.s32.totalorder %s30, 0
    %p391 = por %p389, %p390
    %s392 = ssub.s32 %s24, %s31
    %p393 = scmp.eq.s32.totalorder %s392, 0
    %s395 = sadd.s32 %s394, 1
    %s396 = scalar_select %p393, %s394, %s395
    %p399 = pneg %p393
    %p400 = scmp.eq.s32.totalorder %s24, 3
    %p401 = por %p399, %p400
    %p402 = scmp.ne.s32.totalorder %s394, %s397
    %p403 = scmp.eq.s32.totalorder %s24, 0
    %p404 = por %p402, %p403
    %p405 = scmp.ne.s32.totalorder %s394, %s397
    %p406 = scmp.eq.s32.totalorder %s29, 3
    %p407 = por %p405, %p406
    %p408 = scmp.ne.s32.totalorder %s397, %s398
    %p409 = scmp.eq.s32.totalorder %s29, 0
    %p410 = por %p408, %p409
    %p411 = scmp.ne.s32.totalorder %s397, %s398
    %p412 = scmp.eq.s32.totalorder %s30, 3
    %p413 = por %p411, %p412
    %p415 = scmp.ne.s32.totalorder %s398, %s414
    %p416 = scmp.eq.s32.totalorder %s30, 0
    %p417 = por %p415, %p416
    %s418 = ssub.s32 %s24, %s31
    %p419 = scmp.eq.s32.totalorder %s418, 0
    %s421 = sadd.s32 %s420, 1
    %s422 = scalar_select %p419, %s420, %s421
    %p425 = pneg %p419
    %p426 = scmp.eq.s32.totalorder %s24, 3
    %p427 = por %p425, %p426
    %p428 = scmp.ne.s32.totalorder %s420, %s423
    %p429 = scmp.eq.s32.totalorder %s24, 0
    %p430 = por %p428, %p429
    %p431 = scmp.ne.s32.totalorder %s420, %s423
    %p432 = scmp.eq.s32.totalorder %s29, 3
    %p433 = por %p431, %p432
    %p434 = scmp.ne.s32.totalorder %s423, %s424
    %p435 = scmp.eq.s32.totalorder %s29, 0
    %p436 = por %p434, %p435
    %p437 = scmp.ne.s32.totalorder %s423, %s424
    %p438 = scmp.eq.s32.totalorder %s30, 3
    %p439 = por %p437, %p438
    %p441 = scmp.ne.s32.totalorder %s424, %s440
    %p442 = scmp.eq.s32.totalorder %s30, 0
    %p443 = por %p441, %p442
    %s444 = ssub.s32 %s24, %s31
    %p445 = scmp.eq.s32.totalorder %s444, 0
    %s447 = sadd.s32 %s446, 1
    %s448 = scalar_select %p445, %s446, %s447
    %p451 = pneg %p445
    %p452 = scmp.eq.s32.totalorder %s24, 3
    %p453 = por %p451, %p452
    %p454 = scmp.ne.s32.totalorder %s446, %s449
    %p455 = scmp.eq.s32.totalorder %s24, 0
    %p456 = por %p454, %p455
    %p457 = scmp.ne.s32.totalorder %s446, %s449
    %p458 = scmp.eq.s32.totalorder %s29, 3
    %p459 = por %p457, %p458
    %p460 = scmp.ne.s32.totalorder %s449, %s450
    %p461 = scmp.eq.s32.totalorder %s29, 0
    %p462 = por %p460, %p461
    %p463 = scmp.ne.s32.totalorder %s449, %s450
    %p464 = scmp.eq.s32.totalorder %s30, 3
    %p465 = por %p463, %p464
    %p467 = scmp.ne.s32.totalorder %s450, %s466
    %p468 = scmp.eq.s32.totalorder %s30, 0
    %p469 = por %p467, %p468
    %s471 = sadd.s32 %s470, 1
    %p474 = scmp.eq.s32.totalorder %s24, 3
    %p475 = scmp.ne.s32.totalorder %s470, %s472
    %p476 = scmp.eq.s32.totalorder %s24, 0
    %p477 = por %p475, %p476
    %p478 = scmp.ne.s32.totalorder %s470, %s472
    %p479 = scmp.eq.s32.totalorder %s29, 3
    %p480 = por %p478, %p479
    %p481 = scmp.ne.s32.totalorder %s472, %s473
    %p482 = scmp.eq.s32.totalorder %s29, 0
    %p483 = por %p481, %p482
    %p484 = scmp.ne.s32.totalorder %s472, %s473
    %p485 = scmp.eq.s32.totalorder %s30, 3
    %p486 = por %p484, %p485
    %p488 = scmp.ne.s32.totalorder %s473, %s487
    %p489 = scmp.eq.s32.totalorder %s30, 0
    %p490 = por %p488, %p489
    %p491 = scmp.le.s32.totalorder 1, %s24
    %p492 = scmp.lt.s32.totalorder %s24, 5
    %p493 = pnand %p491, %p492
    %p494 = pneg %p493
    // Predicated region
    $region9: #{forward.1} parent=5 // pred_check
      _
    $region10: #{forward.1} parent=5 // pred_check_branch
      %496 = sbr.rel (%p493) target = $region12
    $region11: #{forward.1} parent=5 // pred_region
      %s497 = ssub.s32 %s24, 1
      // Predicated region
      $region13: #{forward.1} parent=11 // pred_check
        %p498 = pneg %p45
      $region14: #{forward.1} parent=11 // pred_check_branch
        %500 = sbr.rel (%p498) target = $region16
      $region15: #{forward.1} parent=11 // pred_region
        _
      $region16: #{forward.1} parent=11 // pred_fallthru
        _
      // Predicated region
      $region17: #{forward.1} parent=11 // pred_check
        %p501 = pneg %p66
      $region18: #{forward.1} parent=11 // pred_check_branch
        %503 = sbr.rel (%p501) target = $region20
      $region19: #{forward.1} parent=11 // pred_region
        _
      $region20: #{forward.1} parent=11 // pred_fallthru
        _
      // Predicated region
      $region21: #{forward.1} parent=11 // pred_check
        %p504 = pneg %p87
      $region22: #{forward.1} parent=11 // pred_check_branch
        %506 = sbr.rel (%p504) target = $region24
      $region23: #{forward.1} parent=11 // pred_region
        _
      $region24: #{forward.1} parent=11 // pred_fallthru
        _
      // Predicated region
      $region25: #{forward.1} parent=11 // pred_check
        %p507 = pneg %p108
      $region26: #{forward.1} parent=11 // pred_check_branch
        %509 = sbr.rel (%p507) target = $region28
      $region27: #{forward.1} parent=11 // pred_region
        _
      $region28: #{forward.1} parent=11 // pred_fallthru
        _
      // Predicated region
      $region29: #{forward.1} parent=11 // pred_check
        %p510 = pneg %p129
      $region30: #{forward.1} parent=11 // pred_check_branch
        %512 = sbr.rel (%p510) target = $region32
      $region31: #{forward.1} parent=11 // pred_region
        _
      $region32: #{forward.1} parent=11 // pred_fallthru
        _
      // Predicated region
      $region33: #{forward.1} parent=11 // pred_check
        %p513 = pneg %p150
      $region34: #{forward.1} parent=11 // pred_check_branch
        %515 = sbr.rel (%p513) target = $region36
      $region35: #{forward.1} parent=11 // pred_region
        _
      $region36: #{forward.1} parent=11 // pred_fallthru
        _
    $region12: #{forward.1} parent=5 // pred_fallthru
      _
    %p516 = scmp.lt.s32.totalorder %s24, 4
    // Predicated region
    $region37: #{forward.1} parent=5 // pred_check
      %p517 = pneg %p516
    $region38: #{forward.1} parent=5 // pred_check_branch
      %519 = sbr.rel (%p517) target = $region40
    $region39: #{forward.1} parent=5 // pred_region
      // Predicated region
      $region41: #{forward.1} parent=39 // pred_check
        %p520 = pneg %p170
      $region42: #{forward.1} parent=39 // pred_check_branch
        %522 = sbr.rel (%p520) target = $region44
      $region43: #{forward.1} parent=39 // pred_region
        %p523 = scmp.lt.s32.totalorder %s24, 3
        %s524 = scalar_select %p523, %s24, 3
        %s525 = smul.addr %s524, 4
        %s526 = smul.addr %s525, 4
        %s527 = scalar_lea.vmem %s6, %s526
      $region44: #{forward.1} parent=39 // pred_fallthru
        _
      // Predicated region
      $region45: #{forward.1} parent=39 // pred_check
        %p528 = pneg %p196
      $region46: #{forward.1} parent=39 // pred_check_branch
        %530 = sbr.rel (%p528) target = $region48
      $region47: #{forward.1} parent=39 // pred_region
        %p531 = scmp.lt.s32.totalorder %s24, 3
        %s532 = scalar_select %p531, %s24, 3
        %s533 = scalar_lea.vmem %s7, %s532
      $region48: #{forward.1} parent=39 // pred_fallthru
        _
      // Predicated region
      $region49: #{forward.1} parent=39 // pred_check
        %p534 = pneg %p222
      $region50: #{forward.1} parent=39 // pred_check_branch
        %536 = sbr.rel (%p534) target = $region52
      $region51: #{forward.1} parent=39 // pred_region
        %p537 = scmp.lt.s32.totalorder %s24, 3
        %s538 = scalar_select %p537, %s24, 3
        %s539 = smul.addr %s538, 8
        %s540 = smul.addr %s539, 2
        %s541 = scalar_lea.vmem %s8, %s540
      $region52: #{forward.1} parent=39 // pred_fallthru
        _
      // Predicated region
      $region53: #{forward.1} parent=39 // pred_check
        %p542 = pneg %p248
      $region54: #{forward.1} parent=39 // pred_check_branch
        %544 = sbr.rel (%p542) target = $region56
      $region55: #{forward.1} parent=39 // pred_region
        %p545 = scmp.lt.s32.totalorder %s24, 3
        %s546 = scalar_select %p545, %s24, 3
        %s547 = scalar_lea.vmem %s9, %s546
      $region56: #{forward.1} parent=39 // pred_fallthru
        _
      // Predicated region
      $region57: #{forward.1} parent=39 // pred_check
        %p548 = pneg %p274
      $region58: #{forward.1} parent=39 // pred_check_branch
        %550 = sbr.rel (%p548) target = $region60
      $region59: #{forward.1} parent=39 // pred_region
        %p551 = scmp.lt.s32.totalorder %s24, 3
        %s552 = scalar_select %p551, %s24, 3
        %s553 = smul.addr %s552, 4
        %s554 = smul.addr %s553, 4
        %s555 = scalar_lea.vmem %s10, %s554
      $region60: #{forward.1} parent=39 // pred_fallthru
        _
      // Predicated region
      $region61: #{forward.1} parent=39 // pred_check
        %p556 = pneg %p300
      $region62: #{forward.1} parent=39 // pred_check_branch
        %558 = sbr.rel (%p556) target = $region64
      $region63: #{forward.1} parent=39 // pred_region
        %p559 = scmp.lt.s32.totalorder %s24, 3
        %s560 = scalar_select %p559, %s24, 3
        %s561 = scalar_lea.vmem %s11, %s560
      $region64: #{forward.1} parent=39 // pred_fallthru
        _
      // Predicated region
      $region65: #{forward.1} parent=39 // pred_check
        %p562 = pneg %p326
      $region66: #{forward.1} parent=39 // pred_check_branch
        %564 = sbr.rel (%p562) target = $region68
      $region67: #{forward.1} parent=39 // pred_region
        %p565 = scmp.lt.s32.totalorder %s24, 3
        %s566 = scalar_select %p565, %s24, 3
        %s567 = smul.addr %s566, 16
        %s568 = smul.addr %s567, 4
        %s569 = scalar_lea.vmem %s12, %s568
      $region68: #{forward.1} parent=39 // pred_fallthru
        _
      // Predicated region
      $region69: #{forward.1} parent=39 // pred_check
        %p570 = pneg %p352
      $region70: #{forward.1} parent=39 // pred_check_branch
        %572 = sbr.rel (%p570) target = $region72
      $region71: #{forward.1} parent=39 // pred_region
        %p573 = scmp.lt.s32.totalorder %s24, 3
        %s574 = scalar_select %p573, %s24, 3
        %s575 = scalar_lea.vmem %s13, %s574
      $region72: #{forward.1} parent=39 // pred_fallthru
        _
      // Predicated region
      $region73: #{forward.1} parent=39 // pred_check
        %p576 = pneg %p378
      $region74: #{forward.1} parent=39 // pred_check_branch
        %578 = sbr.rel (%p576) target = $region76
      $region75: #{forward.1} parent=39 // pred_region
        %p579 = scmp.lt.s32.totalorder %s24, 3
        %s580 = scalar_select %p579, %s24, 3
        %s581 = scalar_lea.vmem %s14, %s580
      $region76: #{forward.1} parent=39 // pred_fallthru
        _
      // Predicated region
      $region77: #{forward.1} parent=39 // pred_check
        %p582 = pneg %p404
      $region78: #{forward.1} parent=39 // pred_check_branch
        %584 = sbr.rel (%p582) target = $region80
      $region79: #{forward.1} parent=39 // pred_region
        %p585 = scmp.lt.s32.totalorder %s24, 3
        %s586 = scalar_select %p585, %s24, 3
        %s587 = scalar_lea.vmem %s15, %s586
      $region80: #{forward.1} parent=39 // pred_fallthru
        _
      // Predicated region
      $region81: #{forward.1} parent=39 // pred_check
        %p588 = pneg %p430
      $region82: #{forward.1} parent=39 // pred_check_branch
        %590 = sbr.rel (%p588) target = $region84
      $region83: #{forward.1} parent=39 // pred_region
        %p591 = scmp.lt.s32.totalorder %s24, 3
        %s592 = scalar_select %p591, %s24, 3
        %s593 = scalar_lea.vmem %s16, %s592
      $region84: #{forward.1} parent=39 // pred_fallthru
        _
      // Predicated region
      $region85: #{forward.1} parent=39 // pred_check
        %p594 = pneg %p456
      $region86: #{forward.1} parent=39 // pred_check_branch
        %596 = sbr.rel (%p594) target = $region88
      $region87: #{forward.1} parent=39 // pred_region
        %p597 = scmp.lt.s32.totalorder %s24, 3
        %s598 = scalar_select %p597, %s24, 3
        %s599 = scalar_lea.vmem %s17, %s598
      $region88: #{forward.1} parent=39 // pred_fallthru
        _
    $region40: #{forward.1} parent=5 // pred_fallthru
      _
    %p600 = scmp.le.s32.totalorder 1, %s24
    %p601 = scmp.lt.s32.totalorder %s24, 5
    %p602 = pnand %p600, %p601
    %p603 = pneg %p602
    // Predicated region
    $region89: #{forward.1} parent=5 // pred_check
      _
    $region90: #{forward.1} parent=5 // pred_check_branch
      %605 = sbr.rel (%p602) target = $region92
    $region91: #{forward.1} parent=5 // pred_region
      %s606 = ssub.s32 %s24, 1
      %p607 = pneg %p45
      %p608 = pneg %p42
      %p609 = pneg %p66
      %p610 = pneg %p63
      %p611 = pneg %p87
      %p612 = pneg %p84
      %p613 = pneg %p108
      %p614 = pneg %p105
      %p615 = pneg %p129
      %p616 = pneg %p126
      %p617 = pneg %p150
      %p618 = pneg %p147
      %p619 = scmp.lt.s32.totalorder %s29, 3
      %s620 = scalar_select %p619, %s29, 3
      %s621 = smul.addr %s620, 4
      %s622 = smul.addr %s621, 4
      %s623 = scalar_lea.vmem %s6, %s622
      %p624 = pneg %p176
      %p625 = pneg %p173
      %p626 = scmp.lt.s32.totalorder %s29, 3
      %s627 = scalar_select %p626, %s29, 3
      %s628 = scalar_lea.vmem %s7, %s627
      %p629 = pneg %p202
      %p630 = pneg %p199
      %p631 = scmp.lt.s32.totalorder %s29, 3
      %s632 = scalar_select %p631, %s29, 3
      %s633 = smul.addr %s632, 8
      %s634 = smul.addr %s633, 2
      %s635 = scalar_lea.vmem %s8, %s634
      %p636 = pneg %p228
      %p637 = pneg %p225
      %p638 = scmp.lt.s32.totalorder %s29, 3
      %s639 = scalar_select %p638, %s29, 3
      %s640 = scalar_lea.vmem %s9, %s639
      %p641 = pneg %p254
      %p642 = pneg %p251
      %p643 = scmp.lt.s32.totalorder %s29, 3
      %s644 = scalar_select %p643, %s29, 3
      %s645 = smul.addr %s644, 4
      %s646 = smul.addr %s645, 4
      %s647 = scalar_lea.vmem %s10, %s646
      %p648 = pneg %p280
      %p649 = pneg %p277
      %p650 = scmp.lt.s32.totalorder %s29, 3
      %s651 = scalar_select %p650, %s29, 3
      %s652 = scalar_lea.vmem %s11, %s651
      %p653 = pneg %p306
      %p654 = pneg %p303
      %p655 = scmp.lt.s32.totalorder %s29, 3
      %s656 = scalar_select %p655, %s29, 3
      %s657 = smul.addr %s656, 16
      %s658 = smul.addr %s657, 4
      %s659 = scalar_lea.vmem %s12, %s658
      %p660 = pneg %p332
      %p661 = pneg %p329
      %p662 = scmp.lt.s32.totalorder %s29, 3
      %s663 = scalar_select %p662, %s29, 3
      %s664 = scalar_lea.vmem %s13, %s663
      %p665 = pneg %p358
      %p666 = pneg %p355
      %p667 = scmp.lt.s32.totalorder %s29, 3
      %s668 = scalar_select %p667, %s29, 3
      %s669 = scalar_lea.vmem %s14, %s668
      %p670 = pneg %p384
      %p671 = pneg %p381
      %p672 = scmp.lt.s32.totalorder %s29, 3
      %s673 = scalar_select %p672, %s29, 3
      %s674 = scalar_lea.vmem %s15, %s673
      %p675 = pneg %p410
      %p676 = pneg %p407
      %p677 = scmp.lt.s32.totalorder %s29, 3
      %s678 = scalar_select %p677, %s29, 3
      %s679 = scalar_lea.vmem %s16, %s678
      %p680 = pneg %p436
      %p681 = pneg %p433
      %p682 = scmp.lt.s32.totalorder %s29, 3
      %s683 = scalar_select %p682, %s29, 3
      %s684 = scalar_lea.vmem %s17, %s683
      %p685 = pneg %p462
      %p686 = pneg %p459
      %p687 = pneg %p483
      %p688 = pneg %p480
      %p689 = scmp.lt.s32.totalorder %s29, 3
      %s690 = scalar_select %p689, %s29, 3
      %s691 = smul.addr %s690, 4
      %s692 = smul.addr %s691, 4
      %s693 = scalar_lea.vmem %s6, %s692
      %p694 = scmp.lt.s32.totalorder %s29, 3
      %s695 = scalar_select %p694, %s29, 3
      %s696 = scalar_lea.vmem %s7, %s695
      %p697 = scmp.lt.s32.totalorder %s29, 3
      %s698 = scalar_select %p697, %s29, 3
      %s699 = smul.addr %s698, 8
      %s700 = smul.addr %s699, 2
      %s701 = scalar_lea.vmem %s8, %s700
      %p702 = scmp.lt.s32.totalorder %s29, 3
      %s703 = scalar_select %p702, %s29, 3
      %s704 = scalar_lea.vmem %s9, %s703
      %p705 = scmp.lt.s32.totalorder %s29, 3
      %s706 = scalar_select %p705, %s29, 3
      %s707 = smul.addr %s706, 4
      %s708 = smul.addr %s707, 4
      %s709 = scalar_lea.vmem %s10, %s708
      %p710 = scmp.lt.s32.totalorder %s29, 3
      %s711 = scalar_select %p710, %s29, 3
      %s712 = scalar_lea.vmem %s11, %s711
      %p713 = scmp.lt.s32.totalorder %s29, 3
      %s714 = scalar_select %p713, %s29, 3
      %s715 = smul.addr %s714, 16
      %s716 = smul.addr %s715, 4
      %s717 = scalar_lea.vmem %s12, %s716
      %p718 = scmp.lt.s32.totalorder %s29, 3
      %s719 = scalar_select %p718, %s29, 3
      %s720 = scalar_lea.vmem %s13, %s719
      %p721 = scmp.lt.s32.totalorder %s29, 3
      %s722 = scalar_select %p721, %s29, 3
      %s723 = scalar_lea.vmem %s14, %s722
      %p724 = scmp.lt.s32.totalorder %s29, 3
      %s725 = scalar_select %p724, %s29, 3
      %s726 = scalar_lea.vmem %s15, %s725
      %p727 = scmp.lt.s32.totalorder %s29, 3
      %s728 = scalar_select %p727, %s29, 3
      %s729 = scalar_lea.vmem %s16, %s728
      %p730 = scmp.lt.s32.totalorder %s29, 3
      %s731 = scalar_select %p730, %s29, 3
      %s732 = scalar_lea.vmem %s17, %s731
      %p734 = scmp.eq.s32.totalorder %s29, 0
      // Predicated region
      $region93: #{forward.1} parent=91 // pred_check
        %p735 = pneg %p734
      $region94: #{forward.1} parent=91 // pred_check_branch
        %737 = sbr.rel (%p735) target = $region96
      $region95: #{forward.1} parent=91 // pred_region
        %v738 = vld [vmem:[%s0] sm:$0xff]
        %v739 = vld [vmem:[%s0 + $0x8] sm:$0x3f]
        %vm740 = vcmask 130048
        %v741 = vsel %vm740, %v738, -inf
        %742 = vmax.xlane.f32.xlu0 %v741
        %v743 = vpop.xlane.xlu0 %742
        %vm744 = vcmask 128000
        %v745 = vsel %vm744, %v739, -inf
        %746 = vmax.xlane.f32.xlu0 %v745
        %v747 = vpop.xlane.xlu0 %746
        %v748 = vsub.f32 %v738, %v743
        %v749 = vsub.f32 %v739, %v747
        %v750 = vmul.f32 %v748, 1.442695
        %v751 = vpow.pop %v750
        %v752 = vmul.f32 %v749, 1.442695
        %v753 = vpow.pop %v752
        %v754 = vsel %vm740, %v751, 0.0
        %755 = vadd.xlane.f32.xlu0 %v754
        %v756 = vpop.xlane.xlu0 %755
        %v757 = vsel %vm744, %v753, 0.0
        %758 = vadd.xlane.f32.xlu0 %v757
        %v759 = vpop.xlane.xlu0 %758
        %v760 = vrcp.pop %v756
        %v761 = vmul.f32 %v756, %v760
        %v762 = vsub.f32 1.0, %v761
        %v763 = vmul.f32 %v760, %v762
        %v764 = vadd.f32 %v760, %v763
        %vm765 = vweird.f32 %v756
        %vm766 = vweird.f32 %v760
        %vm767 = vmor %vm765, %vm766
        %v768 = vsel %vm767, %v760, %v764
        %v769 = vand.u32 2147483647, %v756
        %vm770 = vcmp.eq.f32.partialorder %v769, 8.507059e+37
        %v771 = vand.u32 %v756, 2147483648
        %v772 = vor.u32 1.1754944e-38, %v771
        %v773 = vsel %vm770, %v772, %v768
        %v774 = vmul.f32 %v751, %v773
        %v775 = vrcp.pop %v759
        %v776 = vmul.f32 %v759, %v775
        %v777 = vsub.f32 1.0, %v776
        %v778 = vmul.f32 %v775, %v777
        %v779 = vadd.f32 %v775, %v778
        %vm780 = vweird.f32 %v759
        %vm781 = vweird.f32 %v775
        %vm782 = vmor %vm780, %vm781
        %v783 = vsel %vm782, %v775, %v779
        %v784 = vand.u32 2147483647, %v759
        %vm785 = vcmp.eq.f32.partialorder %v784, 8.507059e+37
        %v786 = vand.u32 %v759, 2147483648
        %v787 = vor.u32 1.1754944e-38, %v786
        %v788 = vsel %vm785, %v787, %v783
        %v789 = vmul.f32 %v753, %v788
        %v790 = vld [vmem:[%s1] sm:$0xff]
        %v791 = vld [vmem:[%s1 + $0x8] sm:$0xff]
        %v793 = vsel %vm740, %v774, 0
        %v796 = vsel %vm740, %v789, 0
        %798 = vmatpush.msra.mxu0 0.0
        %799 = vmatpush.msra.mxu0 0.0
        %800 = vmatpush.msra.mxu0 0.0
        %801 = vmatpush.msra.mxu0 0.0
        %802 = vmatpush.msra.mxu0 0.0
        %803 = vmatpush.msra.mxu0 0.0
        %804 = vmatpush.msra.mxu0 0.0
        %805 = vmatpush.msra.mxu0 0.0
        %806 = vmatpush.msra.mxu0 0.0
        %807 = vmatpush.msra.mxu0 0.0
        %808 = vmatpush.msra.mxu0 0.0
        %809 = vmatpush.msra.mxu0 0.0
        %810 = vmatpush.msra.mxu0 0.0
        %811 = vmatpush.msra.mxu0 0.0
        %812 = vmatpush.msra.mxu0 %v791
        %813 = vmatpush.msra.mxu0 %v790
        %814 = vmatmul.f32.gmra.mxu0 %v793
        %v815 = vpop.f32.mrf.mxu0
        %v816 = vadd.f32 0.0, %v815
        %817 = vmatmul.f32.gmra.mxu0 %v796
        %v818 = vpop.f32.mrf.mxu0
        %v819 = vadd.f32 0.0, %v818
        %820 = vdwg.mxu0
        %v821 = vld [vmem:[%s2] sm:$0xff]
        %v822 = vld [vmem:[%s2 + $0x8] sm:$0xff]
        %v823 = vld [vmem:[%s2 + $0x10] sm:$0xff]
        %vm824 = vcmask 113664
        %v826 = vsel %vm824, %v821, 0
        %v829 = vsel %vm824, %v822, 0
        %v832 = vsel %vm824, %v823, 0
        %vm834 = vcmask 1045504
        %v836 = vsel %vm834, %v819, 0
        %838 = vmatpush.msra.mxu0 0.0
        %839 = vmatpush.msra.mxu0 0.0
        %840 = vmatpush.msra.mxu0 0.0
        %841 = vmatpush.msra.mxu0 0.0
        %842 = vmatpush.msra.mxu0 0.0
        %843 = vmatpush.msra.mxu0 0.0
        %844 = vmatpush.msra.mxu0 0.0
        %845 = vmatpush.msra.mxu0 0.0
        %846 = vmatpush.msra.mxu0 0.0
        %847 = vmatpush.msra.mxu0 0.0
        %848 = vmatpush.msra.mxu0 0.0
        %849 = vmatpush.msra.mxu0 0.0
        %850 = vmatpush.msra.mxu0 0.0
        %851 = vmatpush.msra.mxu0 0.0
        %852 = vmatpush.msra.mxu0 %v836
        %853 = vmatpush.msra.mxu0 %v816
        %854 = vmatmul.f32.gmra.mxu0 %v826
        %v855 = vpop.f32.mrf.mxu0
        %v856 = vadd.f32 0.0, %v855
        %857 = vmatmul.f32.gmra.mxu0 %v829
        %v858 = vpop.f32.mrf.mxu0
        %v859 = vadd.f32 0.0, %v858
        %860 = vmatmul.f32.gmra.mxu0 %v832
        %v861 = vpop.f32.mrf.mxu0
        %v862 = vadd.f32 0.0, %v861
        %863 = vdwg.mxu0
        %vm864 = vcmask 261120
        %865 = vst.msk [vmem:[#allocation2] sm:$0xff] %vm864, %v856
        %866 = vst.msk [vmem:[#allocation2 + $0x8] sm:$0xff] %vm864, %v859
        %867 = vst.msk [vmem:[#allocation2 + $0x10] sm:$0xff] %vm864, %v862
      $region96: #{forward.1} parent=91 // pred_fallthru
        _
      %v868 = vld [vmem:[#allocation2] sm:$0xff]
      %v869 = vld [vmem:[#allocation2 + $0x8] sm:$0xff]
      %v870 = vld [vmem:[#allocation2 + $0x10] sm:$0xff]
      %v871 = vpack.c.bf16 %v869, %v868
      %v872 = vpack.c.bf16 %v870, %v870
      %v873 = vld [vmem:[%s693] sm:$0xf]
      %v874 = vld [vmem:[%s693 + $0x4] sm:$0xf]
      %v875 = vld [vmem:[%s693 + $0x8] sm:$0xf]
      %v876 = vld [vmem:[%s693 + $0xc] sm:$0xf]
      %v877 = vld [vmem:[%s696] sm:$0x1]
      %v879 = vperm.slane %v877, 0
      %v885 = vunpack.c.l.b16 %v873
      %v886 = vunpack.c.l.b16 %v874
      %v887 = vunpack.c.l.b16 %v875
      %v888 = vunpack.c.l.b16 %v876
      %v889 = vpack.c.b16 %v886, %v885
      %v890 = vpack.c.b16 %v888, %v887
      %vm893 = vcmask 261120
      %v895 = vsel %vm893, %v871, 0
      %v898 = vsel %vm893, %v872, 0
      %900 = vmatpush.bf16.msra.mxu0 0
      %901 = vmatpush.bf16.msra.mxu0 0
      %902 = vmatpush.bf16.msra.mxu0 0
      %903 = vmatpush.bf16.msra.mxu0 0
      %904 = vmatpush.bf16.msra.mxu0 0
      %905 = vmatpush.bf16.msra.mxu0 0
      %906 = vmatpush.bf16.msra.mxu0 %v890
      %907 = vmatpush.bf16.msra.mxu0 %v889
      %908 = vmatmul.bf16.gmra.mxu0 %v895
      %v909 = vpop.f32.mrf.mxu0
      %v910 = vadd.f32 %v879, %v909
      %v911 = vpop.f32.mrf.mxu0
      %v912 = vadd.f32 %v879, %v911
      %913 = vmatmul.bf16.gmra.mxu0 %v898
      %v914 = vpop.f32.mrf.mxu0
      %v915 = vadd.f32 %v879, %v914
      %v916 = vpop.f32.mrf.mxu0
      %917 = vdwg.mxu0
      %921 = vrot.lane.b32.xlu0 %v910, 124
      %v922 = vpop.permute.xlu0 %921
      %923 = vrot.lane.b32.xlu0 %v912, 124
      %v924 = vpop.permute.xlu0 %923
      %925 = vrot.lane.b32.xlu0 %v915, 124
      %v926 = vpop.permute.xlu0 %925
      %930 = vrot.lane.b32.xlu0 %v910, 120
      %v931 = vpop.permute.xlu0 %930
      %932 = vrot.lane.b32.xlu0 %v912, 120
      %v933 = vpop.permute.xlu0 %932
      %934 = vrot.lane.b32.xlu0 %v915, 120
      %v935 = vpop.permute.xlu0 %934
      %939 = vrot.lane.b32.xlu0 %v910, 116
      %v940 = vpop.permute.xlu0 %939
      %941 = vrot.lane.b32.xlu0 %v912, 116
      %v942 = vpop.permute.xlu0 %941
      %943 = vrot.lane.b32.xlu0 %v915, 116
      %v944 = vpop.permute.xlu0 %943
      %948 = vrot.lane.b32.xlu0 %v910, 112
      %v949 = vpop.permute.xlu0 %948
      %950 = vrot.lane.b32.xlu0 %v912, 112
      %v951 = vpop.permute.xlu0 %950
      %952 = vrot.lane.b32.xlu0 %v915, 112
      %v953 = vpop.permute.xlu0 %952
      %957 = vrot.lane.b32.xlu0 %v910, 108
      %v958 = vpop.permute.xlu0 %957
      %959 = vrot.lane.b32.xlu0 %v912, 108
      %v960 = vpop.permute.xlu0 %959
      %961 = vrot.lane.b32.xlu0 %v915, 108
      %v962 = vpop.permute.xlu0 %961
      %966 = vrot.lane.b32.xlu0 %v910, 104
      %v967 = vpop.permute.xlu0 %966
      %968 = vrot.lane.b32.xlu0 %v912, 104
      %v969 = vpop.permute.xlu0 %968
      %970 = vrot.lane.b32.xlu0 %v915, 104
      %v971 = vpop.permute.xlu0 %970
      %975 = vrot.lane.b32.xlu0 %v910, 100
      %v976 = vpop.permute.xlu0 %975
      %977 = vrot.lane.b32.xlu0 %v912, 100
      %v978 = vpop.permute.xlu0 %977
      %979 = vrot.lane.b32.xlu0 %v915, 100
      %v980 = vpop.permute.xlu0 %979
      %v984 = vpack.c.bf16 %v910, %v910
      %v985 = vpack.c.bf16 %v912, %v912
      %v986 = vpack.c.bf16 %v915, %v915
      %v987 = vpack.c.bf16 %v922, %v922
      %v988 = vpack.c.bf16 %v924, %v924
      %v989 = vpack.c.bf16 %v926, %v926
      %v990 = vpack.c.bf16 %v931, %v931
      %v991 = vpack.c.bf16 %v933, %v933
      %v992 = vpack.c.bf16 %v935, %v935
      %v993 = vpack.c.bf16 %v940, %v940
      %v994 = vpack.c.bf16 %v942, %v942
      %v995 = vpack.c.bf16 %v944, %v944
      %v996 = vpack.c.bf16 %v949, %v949
      %v997 = vpack.c.bf16 %v951, %v951
      %v998 = vpack.c.bf16 %v953, %v953
      %v999 = vpack.c.bf16 %v958, %v958
      %v1000 = vpack.c.bf16 %v960, %v960
      %v1001 = vpack.c.bf16 %v962, %v962
      %v1002 = vpack.c.bf16 %v967, %v967
      %v1003 = vpack.c.bf16 %v969, %v969
      %v1004 = vpack.c.bf16 %v971, %v971
      %v1005 = vpack.c.bf16 %v976, %v976
      %v1006 = vpack.c.bf16 %v978, %v978
      %v1007 = vpack.c.bf16 %v980, %v980
      %v1008 = vld [vmem:[%s4] sm:$0x1]
      %v1009 = vld [vmem:[%s4 + $0x1] sm:$0x1]
      %v1010 = vld [vmem:[%s4 + $0x2] sm:$0x1]
      %v1011 = vld [vmem:[%s4 + $0x3] sm:$0x1]
      %v1012 = vld [vmem:[%s4 + $0x4] sm:$0x1]
      %v1013 = vld [vmem:[%s4 + $0x5] sm:$0x1]
      %v1014 = vld [vmem:[%s4 + $0x6] sm:$0x1]
      %v1015 = vld [vmem:[%s4 + $0x7] sm:$0x1]
      %v1016 = vld [vmem:[%s4 + $0x8] sm:$0x1]
      %v1017 = vld [vmem:[%s4 + $0x9] sm:$0x1]
      %v1018 = vld [vmem:[%s4 + $0xa] sm:$0x1]
      %v1019 = vld [vmem:[%s4 + $0xb] sm:$0x1]
      %v1020 = vld [vmem:[%s4 + $0xc] sm:$0x1]
      %v1021 = vld [vmem:[%s4 + $0xd] sm:$0x1]
      %v1022 = vld [vmem:[%s4 + $0xe] sm:$0x1]
      %v1023 = vld [vmem:[%s4 + $0xf] sm:$0x1]
      %v1024 = vld [vmem:[%s4 + $0x10] sm:$0x1]
      %v1025 = vld [vmem:[%s4 + $0x11] sm:$0x1]
      %v1026 = vld [vmem:[%s4 + $0x12] sm:$0x1]
      %v1027 = vld [vmem:[%s4 + $0x13] sm:$0x1]
      %v1028 = vld [vmem:[%s4 + $0x14] sm:$0x1]
      %v1029 = vld [vmem:[%s4 + $0x15] sm:$0x1]
      %v1030 = vld [vmem:[%s4 + $0x16] sm:$0x1]
      %v1031 = vld [vmem:[%s4 + $0x17] sm:$0x1]
      %v1056 = vperm.slane %v1008, 0
      %v1057 = vperm.slane %v1009, 0
      %v1058 = vperm.slane %v1010, 0
      %v1059 = vperm.slane %v1011, 0
      %v1060 = vperm.slane %v1012, 0
      %v1061 = vperm.slane %v1013, 0
      %v1062 = vperm.slane %v1014, 0
      %v1063 = vperm.slane %v1015, 0
      %v1064 = vperm.slane %v1016, 0
      %v1065 = vperm.slane %v1017, 0
      %v1066 = vperm.slane %v1018, 0
      %v1067 = vperm.slane %v1019, 0
      %v1068 = vperm.slane %v1020, 0
      %v1069 = vperm.slane %v1021, 0
      %v1070 = vperm.slane %v1022, 0
      %v1071 = vperm.slane %v1023, 0
      %v1072 = vperm.slane %v1024, 0
      %v1073 = vperm.slane %v1025, 0
      %v1074 = vperm.slane %v1026, 0
      %v1075 = vperm.slane %v1027, 0
      %v1076 = vperm.slane %v1028, 0
      %v1077 = vperm.slane %v1029, 0
      %v1078 = vperm.slane %v1030, 0
      %v1079 = vperm.slane %v1031, 0
      %v1105 = vunpack.c.l.b16 %v984
      %v1106 = vpack.c.b16 %v1105, %v1105
      %1107 = vrot.lane.b32.xlu0 %v1106, 96
      %v1108 = vpop.permute.xlu0 %1107
      %vm1109 = vcmask 31744
      %v1111 = vsel %vm1109, %v984, 0
      %v1114 = vsel %vm1109, %v1108, 0
      %1116 = vmatpush.bf16.xpose.msra.mxu0 0
      %1117 = vmatpush.bf16.xpose.msra.mxu0 0
      %1118 = vmatpush.bf16.xpose.msra.mxu0 0
      %1119 = vmatpush.bf16.xpose.msra.mxu0 0
      %1120 = vmatpush.bf16.xpose.msra.mxu0 0
      %1121 = vmatpush.bf16.xpose.msra.mxu0 0
      %1122 = vmatpush.bf16.xpose.msra.mxu0 0
      %1123 = vmatpush.bf16.xpose.msra.mxu0 %v1114
      %1124 = vmatmul.bf16.gmra.mxu0 %v1111
      %v1125 = vpop.f32.mrf.mxu0
      %v1126 = vadd.f32 %v1056, %v1125
      %v1127 = vpop.f32.mrf.mxu0
      %1128 = vdwg.mxu0
      %v1130 = vunpack.c.l.b16 %v985
      %v1131 = vpack.c.b16 %v1130, %v1130
      %1132 = vrot.lane.b32.xlu0 %v1131, 96
      %v1133 = vpop.permute.xlu0 %1132
      %v1135 = vsel %vm1109, %v985, 0
      %v1138 = vsel %vm1109, %v1133, 0
      %1140 = vmatpush.bf16.xpose.msra.mxu0 0
      %1141 = vmatpush.bf16.xpose.msra.mxu0 0
      %1142 = vmatpush.bf16.xpose.msra.mxu0 0
      %1143 = vmatpush.bf16.xpose.msra.mxu0 0
      %1144 = vmatpush.bf16.xpose.msra.mxu0 0
      %1145 = vmatpush.bf16.xpose.msra.mxu0 0
      %1146 = vmatpush.bf16.xpose.msra.mxu0 0
      %1147 = vmatpush.bf16.xpose.msra.mxu0 %v1138
      %1148 = vmatmul.bf16.gmra.mxu0 %v1135
      %v1149 = vpop.f32.mrf.mxu0
      %v1150 = vadd.f32 %v1057, %v1149
      %v1151 = vpop.f32.mrf.mxu0
      %1152 = vdwg.mxu0
      %v1154 = vunpack.c.l.b16 %v986
      %v1155 = vpack.c.b16 %v1154, %v1154
      %1156 = vrot.lane.b32.xlu0 %v1155, 96
      %v1157 = vpop.permute.xlu0 %1156
      %v1159 = vsel %vm1109, %v986, 0
      %v1162 = vsel %vm1109, %v1157, 0
      %1164 = vmatpush.bf16.xpose.msra.mxu0 0
      %1165 = vmatpush.bf16.xpose.msra.mxu0 0
      %1166 = vmatpush.bf16.xpose.msra.mxu0 0
      %1167 = vmatpush.bf16.xpose.msra.mxu0 0
      %1168 = vmatpush.bf16.xpose.msra.mxu0 0
      %1169 = vmatpush.bf16.xpose.msra.mxu0 0
      %1170 = vmatpush.bf16.xpose.msra.mxu0 0
      %1171 = vmatpush.bf16.xpose.msra.mxu0 %v1162
      %1172 = vmatmul.bf16.gmra.mxu0 %v1159
      %v1173 = vpop.f32.mrf.mxu0
      %v1174 = vadd.f32 %v1058, %v1173
      %v1175 = vpop.f32.mrf.mxu0
      %1176 = vdwg.mxu0
      %v1178 = vunpack.c.l.b16 %v987
      %v1179 = vpack.c.b16 %v1178, %v1178
      %1180 = vrot.lane.b32.xlu0 %v1179, 96
      %v1181 = vpop.permute.xlu0 %1180
      %v1183 = vsel %vm1109, %v987, 0
      %v1186 = vsel %vm1109, %v1181, 0
      %1188 = vmatpush.bf16.xpose.msra.mxu0 0
      %1189 = vmatpush.bf16.xpose.msra.mxu0 0
      %1190 = vmatpush.bf16.xpose.msra.mxu0 0
      %1191 = vmatpush.bf16.xpose.msra.mxu0 0
      %1192 = vmatpush.bf16.xpose.msra.mxu0 0
      %1193 = vmatpush.bf16.xpose.msra.mxu0 0
      %1194 = vmatpush.bf16.xpose.msra.mxu0 0
      %1195 = vmatpush.bf16.xpose.msra.mxu0 %v1186
      %1196 = vmatmul.bf16.gmra.mxu0 %v1183
      %v1197 = vpop.f32.mrf.mxu0
      %v1198 = vadd.f32 %v1059, %v1197
      %v1199 = vpop.f32.mrf.mxu0
      %1200 = vdwg.mxu0
      %v1202 = vunpack.c.l.b16 %v988
      %v1203 = vpack.c.b16 %v1202, %v1202
      %1204 = vrot.lane.b32.xlu0 %v1203, 96
      %v1205 = vpop.permute.xlu0 %1204
      %v1207 = vsel %vm1109, %v988, 0
      %v1210 = vsel %vm1109, %v1205, 0
      %1212 = vmatpush.bf16.xpose.msra.mxu0 0
      %1213 = vmatpush.bf16.xpose.msra.mxu0 0
      %1214 = vmatpush.bf16.xpose.msra.mxu0 0
      %1215 = vmatpush.bf16.xpose.msra.mxu0 0
      %1216 = vmatpush.bf16.xpose.msra.mxu0 0
      %1217 = vmatpush.bf16.xpose.msra.mxu0 0
      %1218 = vmatpush.bf16.xpose.msra.mxu0 0
      %1219 = vmatpush.bf16.xpose.msra.mxu0 %v1210
      %1220 = vmatmul.bf16.gmra.mxu0 %v1207
      %v1221 = vpop.f32.mrf.mxu0
      %v1222 = vadd.f32 %v1060, %v1221
      %v1223 = vpop.f32.mrf.mxu0
      %1224 = vdwg.mxu0
      %v1226 = vunpack.c.l.b16 %v989
      %v1227 = vpack.c.b16 %v1226, %v1226
      %1228 = vrot.lane.b32.xlu0 %v1227, 96
      %v1229 = vpop.permute.xlu0 %1228
      %v1231 = vsel %vm1109, %v989, 0
      %v1234 = vsel %vm1109, %v1229, 0
      %1236 = vmatpush.bf16.xpose.msra.mxu0 0
      %1237 = vmatpush.bf16.xpose.msra.mxu0 0
      %1238 = vmatpush.bf16.xpose.msra.mxu0 0
      %1239 = vmatpush.bf16.xpose.msra.mxu0 0
      %1240 = vmatpush.bf16.xpose.msra.mxu0 0
      %1241 = vmatpush.bf16.xpose.msra.mxu0 0
      %1242 = vmatpush.bf16.xpose.msra.mxu0 0
      %1243 = vmatpush.bf16.xpose.msra.mxu0 %v1234
      %1244 = vmatmul.bf16.gmra.mxu0 %v1231
      %v1245 = vpop.f32.mrf.mxu0
      %v1246 = vadd.f32 %v1061, %v1245
      %v1247 = vpop.f32.mrf.mxu0
      %1248 = vdwg.mxu0
      %v1250 = vunpack.c.l.b16 %v990
      %v1251 = vpack.c.b16 %v1250, %v1250
      %1252 = vrot.lane.b32.xlu0 %v1251, 96
      %v1253 = vpop.permute.xlu0 %1252
      %v1255 = vsel %vm1109, %v990, 0
      %v1258 = vsel %vm1109, %v1253, 0
      %1260 = vmatpush.bf16.xpose.msra.mxu0 0
      %1261 = vmatpush.bf16.xpose.msra.mxu0 0
      %1262 = vmatpush.bf16.xpose.msra.mxu0 0
      %1263 = vmatpush.bf16.xpose.msra.mxu0 0
      %1264 = vmatpush.bf16.xpose.msra.mxu0 0
      %1265 = vmatpush.bf16.xpose.msra.mxu0 0
      %1266 = vmatpush.bf16.xpose.msra.mxu0 0
      %1267 = vmatpush.bf16.xpose.msra.mxu0 %v1258
      %1268 = vmatmul.bf16.gmra.mxu0 %v1255
      %v1269 = vpop.f32.mrf.mxu0
      %v1270 = vadd.f32 %v1062, %v1269
      %v1271 = vpop.f32.mrf.mxu0
      %1272 = vdwg.mxu0
      %v1274 = vunpack.c.l.b16 %v991
      %v1275 = vpack.c.b16 %v1274, %v1274
      %1276 = vrot.lane.b32.xlu0 %v1275, 96
      %v1277 = vpop.permute.xlu0 %1276
      %v1279 = vsel %vm1109, %v991, 0
      %v1282 = vsel %vm1109, %v1277, 0
      %1284 = vmatpush.bf16.xpose.msra.mxu0 0
      %1285 = vmatpush.bf16.xpose.msra.mxu0 0
      %1286 = vmatpush.bf16.xpose.msra.mxu0 0
      %1287 = vmatpush.bf16.xpose.msra.mxu0 0
      %1288 = vmatpush.bf16.xpose.msra.mxu0 0
      %1289 = vmatpush.bf16.xpose.msra.mxu0 0
      %1290 = vmatpush.bf16.xpose.msra.mxu0 0
      %1291 = vmatpush.bf16.xpose.msra.mxu0 %v1282
      %1292 = vmatmul.bf16.gmra.mxu0 %v1279
      %v1293 = vpop.f32.mrf.mxu0
      %v1294 = vadd.f32 %v1063, %v1293
      %v1295 = vpop.f32.mrf.mxu0
      %1296 = vdwg.mxu0
      %v1298 = vunpack.c.l.b16 %v992
      %v1299 = vpack.c.b16 %v1298, %v1298
      %1300 = vrot.lane.b32.xlu0 %v1299, 96
      %v1301 = vpop.permute.xlu0 %1300
      %v1303 = vsel %vm1109, %v992, 0
      %v1306 = vsel %vm1109, %v1301, 0
      %1308 = vmatpush.bf16.xpose.msra.mxu0 0
      %1309 = vmatpush.bf16.xpose.msra.mxu0 0
      %1310 = vmatpush.bf16.xpose.msra.mxu0 0
      %1311 = vmatpush.bf16.xpose.msra.mxu0 0
      %1312 = vmatpush.bf16.xpose.msra.mxu0 0
      %1313 = vmatpush.bf16.xpose.msra.mxu0 0
      %1314 = vmatpush.bf16.xpose.msra.mxu0 0
      %1315 = vmatpush.bf16.xpose.msra.mxu0 %v1306
      %1316 = vmatmul.bf16.gmra.mxu0 %v1303
      %v1317 = vpop.f32.mrf.mxu0
      %v1318 = vadd.f32 %v1064, %v1317
      %v1319 = vpop.f32.mrf.mxu0
      %1320 = vdwg.mxu0
      %v1322 = vunpack.c.l.b16 %v993
      %v1323 = vpack.c.b16 %v1322, %v1322
      %1324 = vrot.lane.b32.xlu0 %v1323, 96
      %v1325 = vpop.permute.xlu0 %1324
      %v1327 = vsel %vm1109, %v993, 0
      %v1330 = vsel %vm1109, %v1325, 0
      %1332 = vmatpush.bf16.xpose.msra.mxu0 0
      %1333 = vmatpush.bf16.xpose.msra.mxu0 0
      %1334 = vmatpush.bf16.xpose.msra.mxu0 0
      %1335 = vmatpush.bf16.xpose.msra.mxu0 0
      %1336 = vmatpush.bf16.xpose.msra.mxu0 0
      %1337 = vmatpush.bf16.xpose.msra.mxu0 0
      %1338 = vmatpush.bf16.xpose.msra.mxu0 0
      %1339 = vmatpush.bf16.xpose.msra.mxu0 %v1330
      %1340 = vmatmul.bf16.gmra.mxu0 %v1327
      %v1341 = vpop.f32.mrf.mxu0
      %v1342 = vadd.f32 %v1065, %v1341
      %v1343 = vpop.f32.mrf.mxu0
      %1344 = vdwg.mxu0
      %v1346 = vunpack.c.l.b16 %v994
      %v1347 = vpack.c.b16 %v1346, %v1346
      %1348 = vrot.lane.b32.xlu0 %v1347, 96
      %v1349 = vpop.permute.xlu0 %1348
      %v1351 = vsel %vm1109, %v994, 0
      %v1354 = vsel %vm1109, %v1349, 0
      %1356 = vmatpush.bf16.xpose.msra.mxu0 0
      %1357 = vmatpush.bf16.xpose.msra.mxu0 0
      %1358 = vmatpush.bf16.xpose.msra.mxu0 0
      %1359 = vmatpush.bf16.xpose.msra.mxu0 0
      %1360 = vmatpush.bf16.xpose.msra.mxu0 0
      %1361 = vmatpush.bf16.xpose.msra.mxu0 0
      %1362 = vmatpush.bf16.xpose.msra.mxu0 0
      %1363 = vmatpush.bf16.xpose.msra.mxu0 %v1354
      %1364 = vmatmul.bf16.gmra.mxu0 %v1351
      %v1365 = vpop.f32.mrf.mxu0
      %v1366 = vadd.f32 %v1066, %v1365
      %v1367 = vpop.f32.mrf.mxu0
      %1368 = vdwg.mxu0
      %v1370 = vunpack.c.l.b16 %v995
      %v1371 = vpack.c.b16 %v1370, %v1370
      %1372 = vrot.lane.b32.xlu0 %v1371, 96
      %v1373 = vpop.permute.xlu0 %1372
      %v1375 = vsel %vm1109, %v995, 0
      %v1378 = vsel %vm1109, %v1373, 0
      %1380 = vmatpush.bf16.xpose.msra.mxu0 0
      %1381 = vmatpush.bf16.xpose.msra.mxu0 0
      %1382 = vmatpush.bf16.xpose.msra.mxu0 0
      %1383 = vmatpush.bf16.xpose.msra.mxu0 0
      %1384 = vmatpush.bf16.xpose.msra.mxu0 0
      %1385 = vmatpush.bf16.xpose.msra.mxu0 0
      %1386 = vmatpush.bf16.xpose.msra.mxu0 0
      %1387 = vmatpush.bf16.xpose.msra.mxu0 %v1378
      %1388 = vmatmul.bf16.gmra.mxu0 %v1375
      %v1389 = vpop.f32.mrf.mxu0
      %v1390 = vadd.f32 %v1067, %v1389
      %v1391 = vpop.f32.mrf.mxu0
      %1392 = vdwg.mxu0
      %v1394 = vunpack.c.l.b16 %v996
      %v1395 = vpack.c.b16 %v1394, %v1394
      %1396 = vrot.lane.b32.xlu0 %v1395, 96
      %v1397 = vpop.permute.xlu0 %1396
      %v1399 = vsel %vm1109, %v996, 0
      %v1402 = vsel %vm1109, %v1397, 0
      %1404 = vmatpush.bf16.xpose.msra.mxu0 0
      %1405 = vmatpush.bf16.xpose.msra.mxu0 0
      %1406 = vmatpush.bf16.xpose.msra.mxu0 0
      %1407 = vmatpush.bf16.xpose.msra.mxu0 0
      %1408 = vmatpush.bf16.xpose.msra.mxu0 0
      %1409 = vmatpush.bf16.xpose.msra.mxu0 0
      %1410 = vmatpush.bf16.xpose.msra.mxu0 0
      %1411 = vmatpush.bf16.xpose.msra.mxu0 %v1402
      %1412 = vmatmul.bf16.gmra.mxu0 %v1399
      %v1413 = vpop.f32.mrf.mxu0
      %v1414 = vadd.f32 %v1068, %v1413
      %v1415 = vpop.f32.mrf.mxu0
      %1416 = vdwg.mxu0
      %v1418 = vunpack.c.l.b16 %v997
      %v1419 = vpack.c.b16 %v1418, %v1418
      %1420 = vrot.lane.b32.xlu0 %v1419, 96
      %v1421 = vpop.permute.xlu0 %1420
      %v1423 = vsel %vm1109, %v997, 0
      %v1426 = vsel %vm1109, %v1421, 0
      %1428 = vmatpush.bf16.xpose.msra.mxu0 0
      %1429 = vmatpush.bf16.xpose.msra.mxu0 0
      %1430 = vmatpush.bf16.xpose.msra.mxu0 0
      %1431 = vmatpush.bf16.xpose.msra.mxu0 0
      %1432 = vmatpush.bf16.xpose.msra.mxu0 0
      %1433 = vmatpush.bf16.xpose.msra.mxu0 0
      %1434 = vmatpush.bf16.xpose.msra.mxu0 0
      %1435 = vmatpush.bf16.xpose.msra.mxu0 %v1426
      %1436 = vmatmul.bf16.gmra.mxu0 %v1423
      %v1437 = vpop.f32.mrf.mxu0
      %v1438 = vadd.f32 %v1069, %v1437
      %v1439 = vpop.f32.mrf.mxu0
      %1440 = vdwg.mxu0
      %v1442 = vunpack.c.l.b16 %v998
      %v1443 = vpack.c.b16 %v1442, %v1442
      %1444 = vrot.lane.b32.xlu0 %v1443, 96
      %v1445 = vpop.permute.xlu0 %1444
      %v1447 = vsel %vm1109, %v998, 0
      %v1450 = vsel %vm1109, %v1445, 0
      %1452 = vmatpush.bf16.xpose.msra.mxu0 0
      %1453 = vmatpush.bf16.xpose.msra.mxu0 0
      %1454 = vmatpush.bf16.xpose.msra.mxu0 0
      %1455 = vmatpush.bf16.xpose.msra.mxu0 0
      %1456 = vmatpush.bf16.xpose.msra.mxu0 0
      %1457 = vmatpush.bf16.xpose.msra.mxu0 0
      %1458 = vmatpush.bf16.xpose.msra.mxu0 0
      %1459 = vmatpush.bf16.xpose.msra.mxu0 %v1450
      %1460 = vmatmul.bf16.gmra.mxu0 %v1447
      %v1461 = vpop.f32.mrf.mxu0
      %v1462 = vadd.f32 %v1070, %v1461
      %v1463 = vpop.f32.mrf.mxu0
      %1464 = vdwg.mxu0
      %v1466 = vunpack.c.l.b16 %v999
      %v1467 = vpack.c.b16 %v1466, %v1466
      %1468 = vrot.lane.b32.xlu0 %v1467, 96
      %v1469 = vpop.permute.xlu0 %1468
      %v1471 = vsel %vm1109, %v999, 0
      %v1474 = vsel %vm1109, %v1469, 0
      %1476 = vmatpush.bf16.xpose.msra.mxu0 0
      %1477 = vmatpush.bf16.xpose.msra.mxu0 0
      %1478 = vmatpush.bf16.xpose.msra.mxu0 0
      %1479 = vmatpush.bf16.xpose.msra.mxu0 0
      %1480 = vmatpush.bf16.xpose.msra.mxu0 0
      %1481 = vmatpush.bf16.xpose.msra.mxu0 0
      %1482 = vmatpush.bf16.xpose.msra.mxu0 0
      %1483 = vmatpush.bf16.xpose.msra.mxu0 %v1474
      %1484 = vmatmul.bf16.gmra.mxu0 %v1471
      %v1485 = vpop.f32.mrf.mxu0
      %v1486 = vadd.f32 %v1071, %v1485
      %v1487 = vpop.f32.mrf.mxu0
      %1488 = vdwg.mxu0
      %v1490 = vunpack.c.l.b16 %v1000
      %v1491 = vpack.c.b16 %v1490, %v1490
      %1492 = vrot.lane.b32.xlu0 %v1491, 96
      %v1493 = vpop.permute.xlu0 %1492
      %v1495 = vsel %vm1109, %v1000, 0
      %v1498 = vsel %vm1109, %v1493, 0
      %1500 = vmatpush.bf16.xpose.msra.mxu0 0
      %1501 = vmatpush.bf16.xpose.msra.mxu0 0
      %1502 = vmatpush.bf16.xpose.msra.mxu0 0
      %1503 = vmatpush.bf16.xpose.msra.mxu0 0
      %1504 = vmatpush.bf16.xpose.msra.mxu0 0
      %1505 = vmatpush.bf16.xpose.msra.mxu0 0
      %1506 = vmatpush.bf16.xpose.msra.mxu0 0
      %1507 = vmatpush.bf16.xpose.msra.mxu0 %v1498
      %1508 = vmatmul.bf16.gmra.mxu0 %v1495
      %v1509 = vpop.f32.mrf.mxu0
      %v1510 = vadd.f32 %v1072, %v1509
      %v1511 = vpop.f32.mrf.mxu0
      %1512 = vdwg.mxu0
      %v1514 = vunpack.c.l.b16 %v1001
      %v1515 = vpack.c.b16 %v1514, %v1514
      %1516 = vrot.lane.b32.xlu0 %v1515, 96
      %v1517 = vpop.permute.xlu0 %1516
      %v1519 = vsel %vm1109, %v1001, 0
      %v1522 = vsel %vm1109, %v1517, 0
      %1524 = vmatpush.bf16.xpose.msra.mxu0 0
      %1525 = vmatpush.bf16.xpose.msra.mxu0 0
      %1526 = vmatpush.bf16.xpose.msra.mxu0 0
      %1527 = vmatpush.bf16.xpose.msra.mxu0 0
      %1528 = vmatpush.bf16.xpose.msra.mxu0 0
      %1529 = vmatpush.bf16.xpose.msra.mxu0 0
      %1530 = vmatpush.bf16.xpose.msra.mxu0 0
      %1531 = vmatpush.bf16.xpose.msra.mxu0 %v1522
      %1532 = vmatmul.bf16.gmra.mxu0 %v1519
      %v1533 = vpop.f32.mrf.mxu0
      %v1534 = vadd.f32 %v1073, %v1533
      %v1535 = vpop.f32.mrf.mxu0
      %1536 = vdwg.mxu0
      %v1538 = vunpack.c.l.b16 %v1002
      %v1539 = vpack.c.b16 %v1538, %v1538
      %1540 = vrot.lane.b32.xlu0 %v1539, 96
      %v1541 = vpop.permute.xlu0 %1540
      %v1543 = vsel %vm1109, %v1002, 0
      %v1546 = vsel %vm1109, %v1541, 0
      %1548 = vmatpush.bf16.xpose.msra.mxu0 0
      %1549 = vmatpush.bf16.xpose.msra.mxu0 0
      %1550 = vmatpush.bf16.xpose.msra.mxu0 0
      %1551 = vmatpush.bf16.xpose.msra.mxu0 0
      %1552 = vmatpush.bf16.xpose.msra.mxu0 0
      %1553 = vmatpush.bf16.xpose.msra.mxu0 0
      %1554 = vmatpush.bf16.xpose.msra.mxu0 0
      %1555 = vmatpush.bf16.xpose.msra.mxu0 %v1546
      %1556 = vmatmul.bf16.gmra.mxu0 %v1543
      %v1557 = vpop.f32.mrf.mxu0
      %v1558 = vadd.f32 %v1074, %v1557
      %v1559 = vpop.f32.mrf.mxu0
      %1560 = vdwg.mxu0
      %v1562 = vunpack.c.l.b16 %v1003
      %v1563 = vpack.c.b16 %v1562, %v1562
      %1564 = vrot.lane.b32.xlu0 %v1563, 96
      %v1565 = vpop.permute.xlu0 %1564
      %v1567 = vsel %vm1109, %v1003, 0
      %v1570 = vsel %vm1109, %v1565, 0
      %1572 = vmatpush.bf16.xpose.msra.mxu0 0
      %1573 = vmatpush.bf16.xpose.msra.mxu0 0
      %1574 = vmatpush.bf16.xpose.msra.mxu0 0
      %1575 = vmatpush.bf16.xpose.msra.mxu0 0
      %1576 = vmatpush.bf16.xpose.msra.mxu0 0
      %1577 = vmatpush.bf16.xpose.msra.mxu0 0
      %1578 = vmatpush.bf16.xpose.msra.mxu0 0
      %1579 = vmatpush.bf16.xpose.msra.mxu0 %v1570
      %1580 = vmatmul.bf16.gmra.mxu0 %v1567
      %v1581 = vpop.f32.mrf.mxu0
      %v1582 = vadd.f32 %v1075, %v1581
      %v1583 = vpop.f32.mrf.mxu0
      %1584 = vdwg.mxu0
      %v1586 = vunpack.c.l.b16 %v1004
      %v1587 = vpack.c.b16 %v1586, %v1586
      %1588 = vrot.lane.b32.xlu0 %v1587, 96
      %v1589 = vpop.permute.xlu0 %1588
      %v1591 = vsel %vm1109, %v1004, 0
      %v1594 = vsel %vm1109, %v1589, 0
      %1596 = vmatpush.bf16.xpose.msra.mxu0 0
      %1597 = vmatpush.bf16.xpose.msra.mxu0 0
      %1598 = vmatpush.bf16.xpose.msra.mxu0 0
      %1599 = vmatpush.bf16.xpose.msra.mxu0 0
      %1600 = vmatpush.bf16.xpose.msra.mxu0 0
      %1601 = vmatpush.bf16.xpose.msra.mxu0 0
      %1602 = vmatpush.bf16.xpose.msra.mxu0 0
      %1603 = vmatpush.bf16.xpose.msra.mxu0 %v1594
      %1604 = vmatmul.bf16.gmra.mxu0 %v1591
      %v1605 = vpop.f32.mrf.mxu0
      %v1606 = vadd.f32 %v1076, %v1605
      %v1607 = vpop.f32.mrf.mxu0
      %1608 = vdwg.mxu0
      %v1610 = vunpack.c.l.b16 %v1005
      %v1611 = vpack.c.b16 %v1610, %v1610
      %1612 = vrot.lane.b32.xlu0 %v1611, 96
      %v1613 = vpop.permute.xlu0 %1612
      %v1615 = vsel %vm1109, %v1005, 0
      %v1618 = vsel %vm1109, %v1613, 0
      %1620 = vmatpush.bf16.xpose.msra.mxu0 0
      %1621 = vmatpush.bf16.xpose.msra.mxu0 0
      %1622 = vmatpush.bf16.xpose.msra.mxu0 0
      %1623 = vmatpush.bf16.xpose.msra.mxu0 0
      %1624 = vmatpush.bf16.xpose.msra.mxu0 0
      %1625 = vmatpush.bf16.xpose.msra.mxu0 0
      %1626 = vmatpush.bf16.xpose.msra.mxu0 0
      %1627 = vmatpush.bf16.xpose.msra.mxu0 %v1618
      %1628 = vmatmul.bf16.gmra.mxu0 %v1615
      %v1629 = vpop.f32.mrf.mxu0
      %v1630 = vadd.f32 %v1077, %v1629
      %v1631 = vpop.f32.mrf.mxu0
      %1632 = vdwg.mxu0
      %v1634 = vunpack.c.l.b16 %v1006
      %v1635 = vpack.c.b16 %v1634, %v1634
      %1636 = vrot.lane.b32.xlu0 %v1635, 96
      %v1637 = vpop.permute.xlu0 %1636
      %v1639 = vsel %vm1109, %v1006, 0
      %v1642 = vsel %vm1109, %v1637, 0
      %1644 = vmatpush.bf16.xpose.msra.mxu0 0
      %1645 = vmatpush.bf16.xpose.msra.mxu0 0
      %1646 = vmatpush.bf16.xpose.msra.mxu0 0
      %1647 = vmatpush.bf16.xpose.msra.mxu0 0
      %1648 = vmatpush.bf16.xpose.msra.mxu0 0
      %1649 = vmatpush.bf16.xpose.msra.mxu0 0
      %1650 = vmatpush.bf16.xpose.msra.mxu0 0
      %1651 = vmatpush.bf16.xpose.msra.mxu0 %v1642
      %1652 = vmatmul.bf16.gmra.mxu0 %v1639
      %v1653 = vpop.f32.mrf.mxu0
      %v1654 = vadd.f32 %v1078, %v1653
      %v1655 = vpop.f32.mrf.mxu0
      %1656 = vdwg.mxu0
      %v1658 = vunpack.c.l.b16 %v1007
      %v1659 = vpack.c.b16 %v1658, %v1658
      %1660 = vrot.lane.b32.xlu0 %v1659, 96
      %v1661 = vpop.permute.xlu0 %1660
      %v1663 = vsel %vm1109, %v1007, 0
      %v1666 = vsel %vm1109, %v1661, 0
      %1668 = vmatpush.bf16.xpose.msra.mxu0 0
      %1669 = vmatpush.bf16.xpose.msra.mxu0 0
      %1670 = vmatpush.bf16.xpose.msra.mxu0 0
      %1671 = vmatpush.bf16.xpose.msra.mxu0 0
      %1672 = vmatpush.bf16.xpose.msra.mxu0 0
      %1673 = vmatpush.bf16.xpose.msra.mxu0 0
      %1674 = vmatpush.bf16.xpose.msra.mxu0 0
      %1675 = vmatpush.bf16.xpose.msra.mxu0 %v1666
      %1676 = vmatmul.bf16.gmra.mxu0 %v1663
      %v1677 = vpop.f32.mrf.mxu0
      %v1678 = vadd.f32 %v1079, %v1677
      %v1679 = vpop.f32.mrf.mxu0
      %1680 = vdwg.mxu0
      %vm1681 = vcmask 64512
      %v1682 = vsel %vm1681, %v1126, -inf
      %1683 = vmax.xlane.f32.xlu0 %v1682
      %v1684 = vpop.xlane.xlu0 %1683
      %v1685 = vsel %vm1681, %v1150, -inf
      %1686 = vmax.xlane.f32.xlu0 %v1685
      %v1687 = vpop.xlane.xlu0 %1686
      %v1688 = vsel %vm1681, %v1174, -inf
      %1689 = vmax.xlane.f32.xlu0 %v1688
      %v1690 = vpop.xlane.xlu0 %1689
      %v1691 = vsel %vm1681, %v1198, -inf
      %1692 = vmax.xlane.f32.xlu0 %v1691
      %v1693 = vpop.xlane.xlu0 %1692
      %v1694 = vsel %vm1681, %v1222, -inf
      %1695 = vmax.xlane.f32.xlu0 %v1694
      %v1696 = vpop.xlane.xlu0 %1695
      %v1697 = vsel %vm1681, %v1246, -inf
      %1698 = vmax.xlane.f32.xlu0 %v1697
      %v1699 = vpop.xlane.xlu0 %1698
      %v1700 = vsel %vm1681, %v1270, -inf
      %1701 = vmax.xlane.f32.xlu0 %v1700
      %v1702 = vpop.xlane.xlu0 %1701
      %v1703 = vsel %vm1681, %v1294, -inf
      %1704 = vmax.xlane.f32.xlu0 %v1703
      %v1705 = vpop.xlane.xlu0 %1704
      %v1706 = vsel %vm1681, %v1318, -inf
      %1707 = vmax.xlane.f32.xlu0 %v1706
      %v1708 = vpop.xlane.xlu0 %1707
      %v1709 = vsel %vm1681, %v1342, -inf
      %1710 = vmax.xlane.f32.xlu0 %v1709
      %v1711 = vpop.xlane.xlu0 %1710
      %v1712 = vsel %vm1681, %v1366, -inf
      %1713 = vmax.xlane.f32.xlu0 %v1712
      %v1714 = vpop.xlane.xlu0 %1713
      %v1715 = vsel %vm1681, %v1390, -inf
      %1716 = vmax.xlane.f32.xlu0 %v1715
      %v1717 = vpop.xlane.xlu0 %1716
      %v1718 = vsel %vm1681, %v1414, -inf
      %1719 = vmax.xlane.f32.xlu0 %v1718
      %v1720 = vpop.xlane.xlu0 %1719
      %v1721 = vsel %vm1681, %v1438, -inf
      %1722 = vmax.xlane.f32.xlu0 %v1721
      %v1723 = vpop.xlane.xlu0 %1722
      %v1724 = vsel %vm1681, %v1462, -inf
      %1725 = vmax.xlane.f32.xlu0 %v1724
      %v1726 = vpop.xlane.xlu0 %1725
      %v1727 = vsel %vm1681, %v1486, -inf
      %1728 = vmax.xlane.f32.xlu0 %v1727
      %v1729 = vpop.xlane.xlu0 %1728
      %v1730 = vsel %vm1681, %v1510, -inf
      %1731 = vmax.xlane.f32.xlu0 %v1730
      %v1732 = vpop.xlane.xlu0 %1731
      %v1733 = vsel %vm1681, %v1534, -inf
      %1734 = vmax.xlane.f32.xlu0 %v1733
      %v1735 = vpop.xlane.xlu0 %1734
      %v1736 = vsel %vm1681, %v1558, -inf
      %1737 = vmax.xlane.f32.xlu0 %v1736
      %v1738 = vpop.xlane.xlu0 %1737
      %v1739 = vsel %vm1681, %v1582, -inf
      %1740 = vmax.xlane.f32.xlu0 %v1739
      %v1741 = vpop.xlane.xlu0 %1740
      %v1742 = vsel %vm1681, %v1606, -inf
      %1743 = vmax.xlane.f32.xlu0 %v1742
      %v1744 = vpop.xlane.xlu0 %1743
      %v1745 = vsel %vm1681, %v1630, -inf
      %1746 = vmax.xlane.f32.xlu0 %v1745
      %v1747 = vpop.xlane.xlu0 %1746
      %v1748 = vsel %vm1681, %v1654, -inf
      %1749 = vmax.xlane.f32.xlu0 %v1748
      %v1750 = vpop.xlane.xlu0 %1749
      %v1751 = vsel %vm1681, %v1678, -inf
      %1752 = vmax.xlane.f32.xlu0 %v1751
      %v1753 = vpop.xlane.xlu0 %1752
      %v1754 = vsub.f32 %v1126, %v1684
      %v1755 = vsub.f32 %v1150, %v1687
      %v1756 = vsub.f32 %v1174, %v1690
      %v1757 = vsub.f32 %v1198, %v1693
      %v1758 = vsub.f32 %v1222, %v1696
      %v1759 = vsub.f32 %v1246, %v1699
      %v1760 = vsub.f32 %v1270, %v1702
      %v1761 = vsub.f32 %v1294, %v1705
      %v1762 = vsub.f32 %v1318, %v1708
      %v1763 = vsub.f32 %v1342, %v1711
      %v1764 = vsub.f32 %v1366, %v1714
      %v1765 = vsub.f32 %v1390, %v1717
      %v1766 = vsub.f32 %v1414, %v1720
      %v1767 = vsub.f32 %v1438, %v1723
      %v1768 = vsub.f32 %v1462, %v1726
      %v1769 = vsub.f32 %v1486, %v1729
      %v1770 = vsub.f32 %v1510, %v1732
      %v1771 = vsub.f32 %v1534, %v1735
      %v1772 = vsub.f32 %v1558, %v1738
      %v1773 = vsub.f32 %v1582, %v1741
      %v1774 = vsub.f32 %v1606, %v1744
      %v1775 = vsub.f32 %v1630, %v1747
      %v1776 = vsub.f32 %v1654, %v1750
      %v1777 = vsub.f32 %v1678, %v1753
      %v1778 = vmul.f32 %v1754, 1.442695
      %v1779 = vpow.pop %v1778
      %v1780 = vmul.f32 %v1755, 1.442695
      %v1781 = vpow.pop %v1780
      %v1782 = vmul.f32 %v1756, 1.442695
      %v1783 = vpow.pop %v1782
      %v1784 = vmul.f32 %v1757, 1.442695
      %v1785 = vpow.pop %v1784
      %v1786 = vmul.f32 %v1758, 1.442695
      %v1787 = vpow.pop %v1786
      %v1788 = vmul.f32 %v1759, 1.442695
      %v1789 = vpow.pop %v1788
      %v1790 = vmul.f32 %v1760, 1.442695
      %v1791 = vpow.pop %v1790
      %v1792 = vmul.f32 %v1761, 1.442695
      %v1793 = vpow.pop %v1792
      %v1794 = vmul.f32 %v1762, 1.442695
      %v1795 = vpow.pop %v1794
      %v1796 = vmul.f32 %v1763, 1.442695
      %v1797 = vpow.pop %v1796
      %v1798 = vmul.f32 %v1764, 1.442695
      %v1799 = vpow.pop %v1798
      %v1800 = vmul.f32 %v1765, 1.442695
      %v1801 = vpow.pop %v1800
      %v1802 = vmul.f32 %v1766, 1.442695
      %v1803 = vpow.pop %v1802
      %v1804 = vmul.f32 %v1767, 1.442695
      %v1805 = vpow.pop %v1804
      %v1806 = vmul.f32 %v1768, 1.442695
      %v1807 = vpow.pop %v1806
      %v1808 = vmul.f32 %v1769, 1.442695
      %v1809 = vpow.pop %v1808
      %v1810 = vmul.f32 %v1770, 1.442695
      %v1811 = vpow.pop %v1810
      %v1812 = vmul.f32 %v1771, 1.442695
      %v1813 = vpow.pop %v1812
      %v1814 = vmul.f32 %v1772, 1.442695
      %v1815 = vpow.pop %v1814
      %v1816 = vmul.f32 %v1773, 1.442695
      %v1817 = vpow.pop %v1816
      %v1818 = vmul.f32 %v1774, 1.442695
      %v1819 = vpow.pop %v1818
      %v1820 = vmul.f32 %v1775, 1.442695
      %v1821 = vpow.pop %v1820
      %v1822 = vmul.f32 %v1776, 1.442695
      %v1823 = vpow.pop %v1822
      %v1824 = vmul.f32 %v1777, 1.442695
      %v1825 = vpow.pop %v1824
      %v1826 = vsel %vm1681, %v1779, 0.0
      %1827 = vadd.xlane.f32.xlu0 %v1826
      %v1828 = vpop.xlane.xlu0 %1827
      %v1829 = vsel %vm1681, %v1781, 0.0
      %1830 = vadd.xlane.f32.xlu0 %v1829
      %v1831 = vpop.xlane.xlu0 %1830
      %v1832 = vsel %vm1681, %v1783, 0.0
      %1833 = vadd.xlane.f32.xlu0 %v1832
      %v1834 = vpop.xlane.xlu0 %1833
      %v1835 = vsel %vm1681, %v1785, 0.0
      %1836 = vadd.xlane.f32.xlu0 %v1835
      %v1837 = vpop.xlane.xlu0 %1836
      %v1838 = vsel %vm1681, %v1787, 0.0
      %1839 = vadd.xlane.f32.xlu0 %v1838
      %v1840 = vpop.xlane.xlu0 %1839
      %v1841 = vsel %vm1681, %v1789, 0.0
      %1842 = vadd.xlane.f32.xlu0 %v1841
      %v1843 = vpop.xlane.xlu0 %1842
      %v1844 = vsel %vm1681, %v1791, 0.0
      %1845 = vadd.xlane.f32.xlu0 %v1844
      %v1846 = vpop.xlane.xlu0 %1845
      %v1847 = vsel %vm1681, %v1793, 0.0
      %1848 = vadd.xlane.f32.xlu0 %v1847
      %v1849 = vpop.xlane.xlu0 %1848
      %v1850 = vsel %vm1681, %v1795, 0.0
      %1851 = vadd.xlane.f32.xlu0 %v1850
      %v1852 = vpop.xlane.xlu0 %1851
      %v1853 = vsel %vm1681, %v1797, 0.0
      %1854 = vadd.xlane.f32.xlu0 %v1853
      %v1855 = vpop.xlane.xlu0 %1854
      %v1856 = vsel %vm1681, %v1799, 0.0
      %1857 = vadd.xlane.f32.xlu0 %v1856
      %v1858 = vpop.xlane.xlu0 %1857
      %v1859 = vsel %vm1681, %v1801, 0.0
      %1860 = vadd.xlane.f32.xlu0 %v1859
      %v1861 = vpop.xlane.xlu0 %1860
      %v1862 = vsel %vm1681, %v1803, 0.0
      %1863 = vadd.xlane.f32.xlu0 %v1862
      %v1864 = vpop.xlane.xlu0 %1863
      %v1865 = vsel %vm1681, %v1805, 0.0
      %1866 = vadd.xlane.f32.xlu0 %v1865
      %v1867 = vpop.xlane.xlu0 %1866
      %v1868 = vsel %vm1681, %v1807, 0.0
      %1869 = vadd.xlane.f32.xlu0 %v1868
      %v1870 = vpop.xlane.xlu0 %1869
      %v1871 = vsel %vm1681, %v1809, 0.0
      %1872 = vadd.xlane.f32.xlu0 %v1871
      %v1873 = vpop.xlane.xlu0 %1872
      %v1874 = vsel %vm1681, %v1811, 0.0
      %1875 = vadd.xlane.f32.xlu0 %v1874
      %v1876 = vpop.xlane.xlu0 %1875
      %v1877 = vsel %vm1681, %v1813, 0.0
      %1878 = vadd.xlane.f32.xlu0 %v1877
      %v1879 = vpop.xlane.xlu0 %1878
      %v1880 = vsel %vm1681, %v1815, 0.0
      %1881 = vadd.xlane.f32.xlu0 %v1880
      %v1882 = vpop.xlane.xlu0 %1881
      %v1883 = vsel %vm1681, %v1817, 0.0
      %1884 = vadd.xlane.f32.xlu0 %v1883
      %v1885 = vpop.xlane.xlu0 %1884
      %v1886 = vsel %vm1681, %v1819, 0.0
      %1887 = vadd.xlane.f32.xlu0 %v1886
      %v1888 = vpop.xlane.xlu0 %1887
      %v1889 = vsel %vm1681, %v1821, 0.0
      %1890 = vadd.xlane.f32.xlu0 %v1889
      %v1891 = vpop.xlane.xlu0 %1890
      %v1892 = vsel %vm1681, %v1823, 0.0
      %1893 = vadd.xlane.f32.xlu0 %v1892
      %v1894 = vpop.xlane.xlu0 %1893
      %v1895 = vsel %vm1681, %v1825, 0.0
      %1896 = vadd.xlane.f32.xlu0 %v1895
      %v1897 = vpop.xlane.xlu0 %1896
      %v1898 = vrcp.pop %v1828
      %v1899 = vmul.f32 %v1828, %v1898
      %v1900 = vsub.f32 1.0, %v1899
      %v1901 = vmul.f32 %v1898, %v1900
      %v1902 = vadd.f32 %v1898, %v1901
      %vm1903 = vweird.f32 %v1828
      %vm1904 = vweird.f32 %v1898
      %vm1905 = vmor %vm1903, %vm1904
      %v1906 = vsel %vm1905, %v1898, %v1902
      %v1907 = vand.u32 2147483647, %v1828
      %vm1908 = vcmp.eq.f32.partialorder %v1907, 8.507059e+37
      %v1909 = vand.u32 %v1828, 2147483648
      %v1910 = vor.u32 1.1754944e-38, %v1909
      %v1911 = vsel %vm1908, %v1910, %v1906
      %v1912 = vmul.f32 %v1779, %v1911
      %v1913 = vrcp.pop %v1831
      %v1914 = vmul.f32 %v1831, %v1913
      %v1915 = vsub.f32 1.0, %v1914
      %v1916 = vmul.f32 %v1913, %v1915
      %v1917 = vadd.f32 %v1913, %v1916
      %vm1918 = vweird.f32 %v1831
      %vm1919 = vweird.f32 %v1913
      %vm1920 = vmor %vm1918, %vm1919
      %v1921 = vsel %vm1920, %v1913, %v1917
      %v1922 = vand.u32 2147483647, %v1831
      %vm1923 = vcmp.eq.f32.partialorder %v1922, 8.507059e+37
      %v1924 = vand.u32 %v1831, 2147483648
      %v1925 = vor.u32 1.1754944e-38, %v1924
      %v1926 = vsel %vm1923, %v1925, %v1921
      %v1927 = vmul.f32 %v1781, %v1926
      %v1928 = vrcp.pop %v1834
      %v1929 = vmul.f32 %v1834, %v1928
      %v1930 = vsub.f32 1.0, %v1929
      %v1931 = vmul.f32 %v1928, %v1930
      %v1932 = vadd.f32 %v1928, %v1931
      %vm1933 = vweird.f32 %v1834
      %vm1934 = vweird.f32 %v1928
      %vm1935 = vmor %vm1933, %vm1934
      %v1936 = vsel %vm1935, %v1928, %v1932
      %v1937 = vand.u32 2147483647, %v1834
      %vm1938 = vcmp.eq.f32.partialorder %v1937, 8.507059e+37
      %v1939 = vand.u32 %v1834, 2147483648
      %v1940 = vor.u32 1.1754944e-38, %v1939
      %v1941 = vsel %vm1938, %v1940, %v1936
      %v1942 = vmul.f32 %v1783, %v1941
      %v1943 = vrcp.pop %v1837
      %v1944 = vmul.f32 %v1837, %v1943
      %v1945 = vsub.f32 1.0, %v1944
      %v1946 = vmul.f32 %v1943, %v1945
      %v1947 = vadd.f32 %v1943, %v1946
      %vm1948 = vweird.f32 %v1837
      %vm1949 = vweird.f32 %v1943
      %vm1950 = vmor %vm1948, %vm1949
      %v1951 = vsel %vm1950, %v1943, %v1947
      %v1952 = vand.u32 2147483647, %v1837
      %vm1953 = vcmp.eq.f32.partialorder %v1952, 8.507059e+37
      %v1954 = vand.u32 %v1837, 2147483648
      %v1955 = vor.u32 1.1754944e-38, %v1954
      %v1956 = vsel %vm1953, %v1955, %v1951
      %v1957 = vmul.f32 %v1785, %v1956
      %v1958 = vrcp.pop %v1840
      %v1959 = vmul.f32 %v1840, %v1958
      %v1960 = vsub.f32 1.0, %v1959
      %v1961 = vmul.f32 %v1958, %v1960
      %v1962 = vadd.f32 %v1958, %v1961
      %vm1963 = vweird.f32 %v1840
      %vm1964 = vweird.f32 %v1958
      %vm1965 = vmor %vm1963, %vm1964
      %v1966 = vsel %vm1965, %v1958, %v1962
      %v1967 = vand.u32 2147483647, %v1840
      %vm1968 = vcmp.eq.f32.partialorder %v1967, 8.507059e+37
      %v1969 = vand.u32 %v1840, 2147483648
      %v1970 = vor.u32 1.1754944e-38, %v1969
      %v1971 = vsel %vm1968, %v1970, %v1966
      %v1972 = vmul.f32 %v1787, %v1971
      %v1973 = vrcp.pop %v1843
      %v1974 = vmul.f32 %v1843, %v1973
      %v1975 = vsub.f32 1.0, %v1974
      %v1976 = vmul.f32 %v1973, %v1975
      %v1977 = vadd.f32 %v1973, %v1976
      %vm1978 = vweird.f32 %v1843
      %vm1979 = vweird.f32 %v1973
      %vm1980 = vmor %vm1978, %vm1979
      %v1981 = vsel %vm1980, %v1973, %v1977
      %v1982 = vand.u32 2147483647, %v1843
      %vm1983 = vcmp.eq.f32.partialorder %v1982, 8.507059e+37
      %v1984 = vand.u32 %v1843, 2147483648
      %v1985 = vor.u32 1.1754944e-38, %v1984
      %v1986 = vsel %vm1983, %v1985, %v1981
      %v1987 = vmul.f32 %v1789, %v1986
      %v1988 = vrcp.pop %v1846
      %v1989 = vmul.f32 %v1846, %v1988
      %v1990 = vsub.f32 1.0, %v1989
      %v1991 = vmul.f32 %v1988, %v1990
      %v1992 = vadd.f32 %v1988, %v1991
      %vm1993 = vweird.f32 %v1846
      %vm1994 = vweird.f32 %v1988
      %vm1995 = vmor %vm1993, %vm1994
      %v1996 = vsel %vm1995, %v1988, %v1992
      %v1997 = vand.u32 2147483647, %v1846
      %vm1998 = vcmp.eq.f32.partialorder %v1997, 8.507059e+37
      %v1999 = vand.u32 %v1846, 2147483648
      %v2000 = vor.u32 1.1754944e-38, %v1999
      %v2001 = vsel %vm1998, %v2000, %v1996
      %v2002 = vmul.f32 %v1791, %v2001
      %v2003 = vrcp.pop %v1849
      %v2004 = vmul.f32 %v1849, %v2003
      %v2005 = vsub.f32 1.0, %v2004
      %v2006 = vmul.f32 %v2003, %v2005
      %v2007 = vadd.f32 %v2003, %v2006
      %vm2008 = vweird.f32 %v1849
      %vm2009 = vweird.f32 %v2003
      %vm2010 = vmor %vm2008, %vm2009
      %v2011 = vsel %vm2010, %v2003, %v2007
      %v2012 = vand.u32 2147483647, %v1849
      %vm2013 = vcmp.eq.f32.partialorder %v2012, 8.507059e+37
      %v2014 = vand.u32 %v1849, 2147483648
      %v2015 = vor.u32 1.1754944e-38, %v2014
      %v2016 = vsel %vm2013, %v2015, %v2011
      %v2017 = vmul.f32 %v1793, %v2016
      %v2018 = vrcp.pop %v1852
      %v2019 = vmul.f32 %v1852, %v2018
      %v2020 = vsub.f32 1.0, %v2019
      %v2021 = vmul.f32 %v2018, %v2020
      %v2022 = vadd.f32 %v2018, %v2021
      %vm2023 = vweird.f32 %v1852
      %vm2024 = vweird.f32 %v2018
      %vm2025 = vmor %vm2023, %vm2024
      %v2026 = vsel %vm2025, %v2018, %v2022
      %v2027 = vand.u32 2147483647, %v1852
      %vm2028 = vcmp.eq.f32.partialorder %v2027, 8.507059e+37
      %v2029 = vand.u32 %v1852, 2147483648
      %v2030 = vor.u32 1.1754944e-38, %v2029
      %v2031 = vsel %vm2028, %v2030, %v2026
      %v2032 = vmul.f32 %v1795, %v2031
      %v2033 = vrcp.pop %v1855
      %v2034 = vmul.f32 %v1855, %v2033
      %v2035 = vsub.f32 1.0, %v2034
      %v2036 = vmul.f32 %v2033, %v2035
      %v2037 = vadd.f32 %v2033, %v2036
      %vm2038 = vweird.f32 %v1855
      %vm2039 = vweird.f32 %v2033
      %vm2040 = vmor %vm2038, %vm2039
      %v2041 = vsel %vm2040, %v2033, %v2037
      %v2042 = vand.u32 2147483647, %v1855
      %vm2043 = vcmp.eq.f32.partialorder %v2042, 8.507059e+37
      %v2044 = vand.u32 %v1855, 2147483648
      %v2045 = vor.u32 1.1754944e-38, %v2044
      %v2046 = vsel %vm2043, %v2045, %v2041
      %v2047 = vmul.f32 %v1797, %v2046
      %v2048 = vrcp.pop %v1858
      %v2049 = vmul.f32 %v1858, %v2048
      %v2050 = vsub.f32 1.0, %v2049
      %v2051 = vmul.f32 %v2048, %v2050
      %v2052 = vadd.f32 %v2048, %v2051
      %vm2053 = vweird.f32 %v1858
      %vm2054 = vweird.f32 %v2048
      %vm2055 = vmor %vm2053, %vm2054
      %v2056 = vsel %vm2055, %v2048, %v2052
      %v2057 = vand.u32 2147483647, %v1858
      %vm2058 = vcmp.eq.f32.partialorder %v2057, 8.507059e+37
      %v2059 = vand.u32 %v1858, 2147483648
      %v2060 = vor.u32 1.1754944e-38, %v2059
      %v2061 = vsel %vm2058, %v2060, %v2056
      %v2062 = vmul.f32 %v1799, %v2061
      %v2063 = vrcp.pop %v1861
      %v2064 = vmul.f32 %v1861, %v2063
      %v2065 = vsub.f32 1.0, %v2064
      %v2066 = vmul.f32 %v2063, %v2065
      %v2067 = vadd.f32 %v2063, %v2066
      %vm2068 = vweird.f32 %v1861
      %vm2069 = vweird.f32 %v2063
      %vm2070 = vmor %vm2068, %vm2069
      %v2071 = vsel %vm2070, %v2063, %v2067
      %v2072 = vand.u32 2147483647, %v1861
      %vm2073 = vcmp.eq.f32.partialorder %v2072, 8.507059e+37
      %v2074 = vand.u32 %v1861, 2147483648
      %v2075 = vor.u32 1.1754944e-38, %v2074
      %v2076 = vsel %vm2073, %v2075, %v2071
      %v2077 = vmul.f32 %v1801, %v2076
      %v2078 = vrcp.pop %v1864
      %v2079 = vmul.f32 %v1864, %v2078
      %v2080 = vsub.f32 1.0, %v2079
      %v2081 = vmul.f32 %v2078, %v2080
      %v2082 = vadd.f32 %v2078, %v2081
      %vm2083 = vweird.f32 %v1864
      %vm2084 = vweird.f32 %v2078
      %vm2085 = vmor %vm2083, %vm2084
      %v2086 = vsel %vm2085, %v2078, %v2082
      %v2087 = vand.u32 2147483647, %v1864
      %vm2088 = vcmp.eq.f32.partialorder %v2087, 8.507059e+37
      %v2089 = vand.u32 %v1864, 2147483648
      %v2090 = vor.u32 1.1754944e-38, %v2089
      %v2091 = vsel %vm2088, %v2090, %v2086
      %v2092 = vmul.f32 %v1803, %v2091
      %v2093 = vrcp.pop %v1867
      %v2094 = vmul.f32 %v1867, %v2093
      %v2095 = vsub.f32 1.0, %v2094
      %v2096 = vmul.f32 %v2093, %v2095
      %v2097 = vadd.f32 %v2093, %v2096
      %vm2098 = vweird.f32 %v1867
      %vm2099 = vweird.f32 %v2093
      %vm2100 = vmor %vm2098, %vm2099
      %v2101 = vsel %vm2100, %v2093, %v2097
      %v2102 = vand.u32 2147483647, %v1867
      %vm2103 = vcmp.eq.f32.partialorder %v2102, 8.507059e+37
      %v2104 = vand.u32 %v1867, 2147483648
      %v2105 = vor.u32 1.1754944e-38, %v2104
      %v2106 = vsel %vm2103, %v2105, %v2101
      %v2107 = vmul.f32 %v1805, %v2106
      %v2108 = vrcp.pop %v1870
      %v2109 = vmul.f32 %v1870, %v2108
      %v2110 = vsub.f32 1.0, %v2109
      %v2111 = vmul.f32 %v2108, %v2110
      %v2112 = vadd.f32 %v2108, %v2111
      %vm2113 = vweird.f32 %v1870
      %vm2114 = vweird.f32 %v2108
      %vm2115 = vmor %vm2113, %vm2114
      %v2116 = vsel %vm2115, %v2108, %v2112
      %v2117 = vand.u32 2147483647, %v1870
      %vm2118 = vcmp.eq.f32.partialorder %v2117, 8.507059e+37
      %v2119 = vand.u32 %v1870, 2147483648
      %v2120 = vor.u32 1.1754944e-38, %v2119
      %v2121 = vsel %vm2118, %v2120, %v2116
      %v2122 = vmul.f32 %v1807, %v2121
      %v2123 = vrcp.pop %v1873
      %v2124 = vmul.f32 %v1873, %v2123
      %v2125 = vsub.f32 1.0, %v2124
      %v2126 = vmul.f32 %v2123, %v2125
      %v2127 = vadd.f32 %v2123, %v2126
      %vm2128 = vweird.f32 %v1873
      %vm2129 = vweird.f32 %v2123
      %vm2130 = vmor %vm2128, %vm2129
      %v2131 = vsel %vm2130, %v2123, %v2127
      %v2132 = vand.u32 2147483647, %v1873
      %vm2133 = vcmp.eq.f32.partialorder %v2132, 8.507059e+37
      %v2134 = vand.u32 %v1873, 2147483648
      %v2135 = vor.u32 1.1754944e-38, %v2134
      %v2136 = vsel %vm2133, %v2135, %v2131
      %v2137 = vmul.f32 %v1809, %v2136
      %v2138 = vrcp.pop %v1876
      %v2139 = vmul.f32 %v1876, %v2138
      %v2140 = vsub.f32 1.0, %v2139
      %v2141 = vmul.f32 %v2138, %v2140
      %v2142 = vadd.f32 %v2138, %v2141
      %vm2143 = vweird.f32 %v1876
      %vm2144 = vweird.f32 %v2138
      %vm2145 = vmor %vm2143, %vm2144
      %v2146 = vsel %vm2145, %v2138, %v2142
      %v2147 = vand.u32 2147483647, %v1876
      %vm2148 = vcmp.eq.f32.partialorder %v2147, 8.507059e+37
      %v2149 = vand.u32 %v1876, 2147483648
      %v2150 = vor.u32 1.1754944e-38, %v2149
      %v2151 = vsel %vm2148, %v2150, %v2146
      %v2152 = vmul.f32 %v1811, %v2151
      %v2153 = vrcp.pop %v1879
      %v2154 = vmul.f32 %v1879, %v2153
      %v2155 = vsub.f32 1.0, %v2154
      %v2156 = vmul.f32 %v2153, %v2155
      %v2157 = vadd.f32 %v2153, %v2156
      %vm2158 = vweird.f32 %v1879
      %vm2159 = vweird.f32 %v2153
      %vm2160 = vmor %vm2158, %vm2159
      %v2161 = vsel %vm2160, %v2153, %v2157
      %v2162 = vand.u32 2147483647, %v1879
      %vm2163 = vcmp.eq.f32.partialorder %v2162, 8.507059e+37
      %v2164 = vand.u32 %v1879, 2147483648
      %v2165 = vor.u32 1.1754944e-38, %v2164
      %v2166 = vsel %vm2163, %v2165, %v2161
      %v2167 = vmul.f32 %v1813, %v2166
      %v2168 = vrcp.pop %v1882
      %v2169 = vmul.f32 %v1882, %v2168
      %v2170 = vsub.f32 1.0, %v2169
      %v2171 = vmul.f32 %v2168, %v2170
      %v2172 = vadd.f32 %v2168, %v2171
      %vm2173 = vweird.f32 %v1882
      %vm2174 = vweird.f32 %v2168
      %vm2175 = vmor %vm2173, %vm2174
      %v2176 = vsel %vm2175, %v2168, %v2172
      %v2177 = vand.u32 2147483647, %v1882
      %vm2178 = vcmp.eq.f32.partialorder %v2177, 8.507059e+37
      %v2179 = vand.u32 %v1882, 2147483648
      %v2180 = vor.u32 1.1754944e-38, %v2179
      %v2181 = vsel %vm2178, %v2180, %v2176
      %v2182 = vmul.f32 %v1815, %v2181
      %v2183 = vrcp.pop %v1885
      %v2184 = vmul.f32 %v1885, %v2183
      %v2185 = vsub.f32 1.0, %v2184
      %v2186 = vmul.f32 %v2183, %v2185
      %v2187 = vadd.f32 %v2183, %v2186
      %vm2188 = vweird.f32 %v1885
      %vm2189 = vweird.f32 %v2183
      %vm2190 = vmor %vm2188, %vm2189
      %v2191 = vsel %vm2190, %v2183, %v2187
      %v2192 = vand.u32 2147483647, %v1885
      %vm2193 = vcmp.eq.f32.partialorder %v2192, 8.507059e+37
      %v2194 = vand.u32 %v1885, 2147483648
      %v2195 = vor.u32 1.1754944e-38, %v2194
      %v2196 = vsel %vm2193, %v2195, %v2191
      %v2197 = vmul.f32 %v1817, %v2196
      %v2198 = vrcp.pop %v1888
      %v2199 = vmul.f32 %v1888, %v2198
      %v2200 = vsub.f32 1.0, %v2199
      %v2201 = vmul.f32 %v2198, %v2200
      %v2202 = vadd.f32 %v2198, %v2201
      %vm2203 = vweird.f32 %v1888
      %vm2204 = vweird.f32 %v2198
      %vm2205 = vmor %vm2203, %vm2204
      %v2206 = vsel %vm2205, %v2198, %v2202
      %v2207 = vand.u32 2147483647, %v1888
      %vm2208 = vcmp.eq.f32.partialorder %v2207, 8.507059e+37
      %v2209 = vand.u32 %v1888, 2147483648
      %v2210 = vor.u32 1.1754944e-38, %v2209
      %v2211 = vsel %vm2208, %v2210, %v2206
      %v2212 = vmul.f32 %v1819, %v2211
      %v2213 = vrcp.pop %v1891
      %v2214 = vmul.f32 %v1891, %v2213
      %v2215 = vsub.f32 1.0, %v2214
      %v2216 = vmul.f32 %v2213, %v2215
      %v2217 = vadd.f32 %v2213, %v2216
      %vm2218 = vweird.f32 %v1891
      %vm2219 = vweird.f32 %v2213
      %vm2220 = vmor %vm2218, %vm2219
      %v2221 = vsel %vm2220, %v2213, %v2217
      %v2222 = vand.u32 2147483647, %v1891
      %vm2223 = vcmp.eq.f32.partialorder %v2222, 8.507059e+37
      %v2224 = vand.u32 %v1891, 2147483648
      %v2225 = vor.u32 1.1754944e-38, %v2224
      %v2226 = vsel %vm2223, %v2225, %v2221
      %v2227 = vmul.f32 %v1821, %v2226
      %v2228 = vrcp.pop %v1894
      %v2229 = vmul.f32 %v1894, %v2228
      %v2230 = vsub.f32 1.0, %v2229
      %v2231 = vmul.f32 %v2228, %v2230
      %v2232 = vadd.f32 %v2228, %v2231
      %vm2233 = vweird.f32 %v1894
      %vm2234 = vweird.f32 %v2228
      %vm2235 = vmor %vm2233, %vm2234
      %v2236 = vsel %vm2235, %v2228, %v2232
      %v2237 = vand.u32 2147483647, %v1894
      %vm2238 = vcmp.eq.f32.partialorder %v2237, 8.507059e+37
      %v2239 = vand.u32 %v1894, 2147483648
      %v2240 = vor.u32 1.1754944e-38, %v2239
      %v2241 = vsel %vm2238, %v2240, %v2236
      %v2242 = vmul.f32 %v1823, %v2241
      %v2243 = vrcp.pop %v1897
      %v2244 = vmul.f32 %v1897, %v2243
      %v2245 = vsub.f32 1.0, %v2244
      %v2246 = vmul.f32 %v2243, %v2245
      %v2247 = vadd.f32 %v2243, %v2246
      %vm2248 = vweird.f32 %v1897
      %vm2249 = vweird.f32 %v2243
      %vm2250 = vmor %vm2248, %vm2249
      %v2251 = vsel %vm2250, %v2243, %v2247
      %v2252 = vand.u32 2147483647, %v1897
      %vm2253 = vcmp.eq.f32.partialorder %v2252, 8.507059e+37
      %v2254 = vand.u32 %v1897, 2147483648
      %v2255 = vor.u32 1.1754944e-38, %v2254
      %v2256 = vsel %vm2253, %v2255, %v2251
      %v2257 = vmul.f32 %v1825, %v2256
      %v2258 = vpack.c.bf16 %v1912, %v1912
      %v2259 = vpack.c.bf16 %v1927, %v1927
      %v2260 = vpack.c.bf16 %v1942, %v1942
      %v2261 = vpack.c.bf16 %v1957, %v1957
      %v2262 = vpack.c.bf16 %v1972, %v1972
      %v2263 = vpack.c.bf16 %v1987, %v1987
      %v2264 = vpack.c.bf16 %v2002, %v2002
      %v2265 = vpack.c.bf16 %v2017, %v2017
      %v2266 = vpack.c.bf16 %v2032, %v2032
      %v2267 = vpack.c.bf16 %v2047, %v2047
      %v2268 = vpack.c.bf16 %v2062, %v2062
      %v2269 = vpack.c.bf16 %v2077, %v2077
      %v2270 = vpack.c.bf16 %v2092, %v2092
      %v2271 = vpack.c.bf16 %v2107, %v2107
      %v2272 = vpack.c.bf16 %v2122, %v2122
      %v2273 = vpack.c.bf16 %v2137, %v2137
      %v2274 = vpack.c.bf16 %v2152, %v2152
      %v2275 = vpack.c.bf16 %v2167, %v2167
      %v2276 = vpack.c.bf16 %v2182, %v2182
      %v2277 = vpack.c.bf16 %v2197, %v2197
      %v2278 = vpack.c.bf16 %v2212, %v2212
      %v2279 = vpack.c.bf16 %v2227, %v2227
      %v2280 = vpack.c.bf16 %v2242, %v2242
      %v2281 = vpack.c.bf16 %v2257, %v2257
      %2282 = vrot.lane.b32.xlu0 %v1106, 64
      %v2283 = vpop.permute.xlu0 %2282
      %v2285 = vsel %vm1681, %v2258, 0
      %vm2287 = vcmask 1043456
      %v2289 = vsel %vm2287, %v2283, 0
      %2291 = vmatpush.bf16.msra.mxu0 0
      %2292 = vmatpush.bf16.msra.mxu0 0
      %2293 = vmatpush.bf16.msra.mxu0 0
      %2294 = vmatpush.bf16.msra.mxu0 0
      %2295 = vmatpush.bf16.msra.mxu0 0
      %2296 = vmatpush.bf16.msra.mxu0 0
      %2297 = vmatpush.bf16.msra.mxu0 0
      %2298 = vmatpush.bf16.msra.mxu0 %v2289
      %2299 = vmatmul.bf16.gmra.mxu0 %v2285
      %v2300 = vpop.f32.mrf.mxu0
      %v2301 = vadd.f32 0.0, %v2300
      %v2302 = vpop.f32.mrf.mxu0
      %2303 = vdwg.mxu0
      %2304 = vrot.lane.b32.xlu0 %v1131, 64
      %v2305 = vpop.permute.xlu0 %2304
      %v2307 = vsel %vm1681, %v2259, 0
      %v2310 = vsel %vm2287, %v2305, 0
      %2312 = vmatpush.bf16.msra.mxu0 0
      %2313 = vmatpush.bf16.msra.mxu0 0
      %2314 = vmatpush.bf16.msra.mxu0 0
      %2315 = vmatpush.bf16.msra.mxu0 0
      %2316 = vmatpush.bf16.msra.mxu0 0
      %2317 = vmatpush.bf16.msra.mxu0 0
      %2318 = vmatpush.bf16.msra.mxu0 0
      %2319 = vmatpush.bf16.msra.mxu0 %v2310
      %2320 = vmatmul.bf16.gmra.mxu0 %v2307
      %v2321 = vpop.f32.mrf.mxu0
      %v2322 = vadd.f32 0.0, %v2321
      %v2323 = vpop.f32.mrf.mxu0
      %2324 = vdwg.mxu0
      %2325 = vrot.lane.b32.xlu0 %v1155, 64
      %v2326 = vpop.permute.xlu0 %2325
      %v2328 = vsel %vm1681, %v2260, 0
      %v2331 = vsel %vm2287, %v2326, 0
      %2333 = vmatpush.bf16.msra.mxu0 0
      %2334 = vmatpush.bf16.msra.mxu0 0
      %2335 = vmatpush.bf16.msra.mxu0 0
      %2336 = vmatpush.bf16.msra.mxu0 0
      %2337 = vmatpush.bf16.msra.mxu0 0
      %2338 = vmatpush.bf16.msra.mxu0 0
      %2339 = vmatpush.bf16.msra.mxu0 0
      %2340 = vmatpush.bf16.msra.mxu0 %v2331
      %2341 = vmatmul.bf16.gmra.mxu0 %v2328
      %v2342 = vpop.f32.mrf.mxu0
      %v2343 = vadd.f32 0.0, %v2342
      %v2344 = vpop.f32.mrf.mxu0
      %2345 = vdwg.mxu0
      %2346 = vrot.lane.b32.xlu0 %v1179, 64
      %v2347 = vpop.permute.xlu0 %2346
      %v2349 = vsel %vm1681, %v2261, 0
      %v2352 = vsel %vm2287, %v2347, 0
      %2354 = vmatpush.bf16.msra.mxu0 0
      %2355 = vmatpush.bf16.msra.mxu0 0
      %2356 = vmatpush.bf16.msra.mxu0 0
      %2357 = vmatpush.bf16.msra.mxu0 0
      %2358 = vmatpush.bf16.msra.mxu0 0
      %2359 = vmatpush.bf16.msra.mxu0 0
      %2360 = vmatpush.bf16.msra.mxu0 0
      %2361 = vmatpush.bf16.msra.mxu0 %v2352
      %2362 = vmatmul.bf16.gmra.mxu0 %v2349
      %v2363 = vpop.f32.mrf.mxu0
      %v2364 = vadd.f32 0.0, %v2363
      %v2365 = vpop.f32.mrf.mxu0
      %2366 = vdwg.mxu0
      %2367 = vrot.lane.b32.xlu0 %v1203, 64
      %v2368 = vpop.permute.xlu0 %2367
      %v2370 = vsel %vm1681, %v2262, 0
      %v2373 = vsel %vm2287, %v2368, 0
      %2375 = vmatpush.bf16.msra.mxu0 0
      %2376 = vmatpush.bf16.msra.mxu0 0
      %2377 = vmatpush.bf16.msra.mxu0 0
      %2378 = vmatpush.bf16.msra.mxu0 0
      %2379 = vmatpush.bf16.msra.mxu0 0
      %2380 = vmatpush.bf16.msra.mxu0 0
      %2381 = vmatpush.bf16.msra.mxu0 0
      %2382 = vmatpush.bf16.msra.mxu0 %v2373
      %2383 = vmatmul.bf16.gmra.mxu0 %v2370
      %v2384 = vpop.f32.mrf.mxu0
      %v2385 = vadd.f32 0.0, %v2384
      %v2386 = vpop.f32.mrf.mxu0
      %2387 = vdwg.mxu0
      %2388 = vrot.lane.b32.xlu0 %v1227, 64
      %v2389 = vpop.permute.xlu0 %2388
      %v2391 = vsel %vm1681, %v2263, 0
      %v2394 = vsel %vm2287, %v2389, 0
      %2396 = vmatpush.bf16.msra.mxu0 0
      %2397 = vmatpush.bf16.msra.mxu0 0
      %2398 = vmatpush.bf16.msra.mxu0 0
      %2399 = vmatpush.bf16.msra.mxu0 0
      %2400 = vmatpush.bf16.msra.mxu0 0
      %2401 = vmatpush.bf16.msra.mxu0 0
      %2402 = vmatpush.bf16.msra.mxu0 0
      %2403 = vmatpush.bf16.msra.mxu0 %v2394
      %2404 = vmatmul.bf16.gmra.mxu0 %v2391
      %v2405 = vpop.f32.mrf.mxu0
      %v2406 = vadd.f32 0.0, %v2405
      %v2407 = vpop.f32.mrf.mxu0
      %2408 = vdwg.mxu0
      %2409 = vrot.lane.b32.xlu0 %v1251, 64
      %v2410 = vpop.permute.xlu0 %2409
      %v2412 = vsel %vm1681, %v2264, 0
      %v2415 = vsel %vm2287, %v2410, 0
      %2417 = vmatpush.bf16.msra.mxu0 0
      %2418 = vmatpush.bf16.msra.mxu0 0
      %2419 = vmatpush.bf16.msra.mxu0 0
      %2420 = vmatpush.bf16.msra.mxu0 0
      %2421 = vmatpush.bf16.msra.mxu0 0
      %2422 = vmatpush.bf16.msra.mxu0 0
      %2423 = vmatpush.bf16.msra.mxu0 0
      %2424 = vmatpush.bf16.msra.mxu0 %v2415
      %2425 = vmatmul.bf16.gmra.mxu0 %v2412
      %v2426 = vpop.f32.mrf.mxu0
      %v2427 = vadd.f32 0.0, %v2426
      %v2428 = vpop.f32.mrf.mxu0
      %2429 = vdwg.mxu0
      %2430 = vrot.lane.b32.xlu0 %v1275, 64
      %v2431 = vpop.permute.xlu0 %2430
      %v2433 = vsel %vm1681, %v2265, 0
      %v2436 = vsel %vm2287, %v2431, 0
      %2438 = vmatpush.bf16.msra.mxu0 0
      %2439 = vmatpush.bf16.msra.mxu0 0
      %2440 = vmatpush.bf16.msra.mxu0 0
      %2441 = vmatpush.bf16.msra.mxu0 0
      %2442 = vmatpush.bf16.msra.mxu0 0
      %2443 = vmatpush.bf16.msra.mxu0 0
      %2444 = vmatpush.bf16.msra.mxu0 0
      %2445 = vmatpush.bf16.msra.mxu0 %v2436
      %2446 = vmatmul.bf16.gmra.mxu0 %v2433
      %v2447 = vpop.f32.mrf.mxu0
      %v2448 = vadd.f32 0.0, %v2447
      %v2449 = vpop.f32.mrf.mxu0
      %2450 = vdwg.mxu0
      %2451 = vrot.lane.b32.xlu0 %v1299, 64
      %v2452 = vpop.permute.xlu0 %2451
      %v2454 = vsel %vm1681, %v2266, 0
      %v2457 = vsel %vm2287, %v2452, 0
      %2459 = vmatpush.bf16.msra.mxu0 0
      %2460 = vmatpush.bf16.msra.mxu0 0
      %2461 = vmatpush.bf16.msra.mxu0 0
      %2462 = vmatpush.bf16.msra.mxu0 0
      %2463 = vmatpush.bf16.msra.mxu0 0
      %2464 = vmatpush.bf16.msra.mxu0 0
      %2465 = vmatpush.bf16.msra.mxu0 0
      %2466 = vmatpush.bf16.msra.mxu0 %v2457
      %2467 = vmatmul.bf16.gmra.mxu0 %v2454
      %v2468 = vpop.f32.mrf.mxu0
      %v2469 = vadd.f32 0.0, %v2468
      %v2470 = vpop.f32.mrf.mxu0
      %2471 = vdwg.mxu0
      %2472 = vrot.lane.b32.xlu0 %v1323, 64
      %v2473 = vpop.permute.xlu0 %2472
      %v2475 = vsel %vm1681, %v2267, 0
      %v2478 = vsel %vm2287, %v2473, 0
      %2480 = vmatpush.bf16.msra.mxu0 0
      %2481 = vmatpush.bf16.msra.mxu0 0
      %2482 = vmatpush.bf16.msra.mxu0 0
      %2483 = vmatpush.bf16.msra.mxu0 0
      %2484 = vmatpush.bf16.msra.mxu0 0
      %2485 = vmatpush.bf16.msra.mxu0 0
      %2486 = vmatpush.bf16.msra.mxu0 0
      %2487 = vmatpush.bf16.msra.mxu0 %v2478
      %2488 = vmatmul.bf16.gmra.mxu0 %v2475
      %v2489 = vpop.f32.mrf.mxu0
      %v2490 = vadd.f32 0.0, %v2489
      %v2491 = vpop.f32.mrf.mxu0
      %2492 = vdwg.mxu0
      %2493 = vrot.lane.b32.xlu0 %v1347, 64
      %v2494 = vpop.permute.xlu0 %2493
      %v2496 = vsel %vm1681, %v2268, 0
      %v2499 = vsel %vm2287, %v2494, 0
      %2501 = vmatpush.bf16.msra.mxu0 0
      %2502 = vmatpush.bf16.msra.mxu0 0
      %2503 = vmatpush.bf16.msra.mxu0 0
      %2504 = vmatpush.bf16.msra.mxu0 0
      %2505 = vmatpush.bf16.msra.mxu0 0
      %2506 = vmatpush.bf16.msra.mxu0 0
      %2507 = vmatpush.bf16.msra.mxu0 0
      %2508 = vmatpush.bf16.msra.mxu0 %v2499
      %2509 = vmatmul.bf16.gmra.mxu0 %v2496
      %v2510 = vpop.f32.mrf.mxu0
      %v2511 = vadd.f32 0.0, %v2510
      %v2512 = vpop.f32.mrf.mxu0
      %2513 = vdwg.mxu0
      %2514 = vrot.lane.b32.xlu0 %v1371, 64
      %v2515 = vpop.permute.xlu0 %2514
      %v2517 = vsel %vm1681, %v2269, 0
      %v2520 = vsel %vm2287, %v2515, 0
      %2522 = vmatpush.bf16.msra.mxu0 0
      %2523 = vmatpush.bf16.msra.mxu0 0
      %2524 = vmatpush.bf16.msra.mxu0 0
      %2525 = vmatpush.bf16.msra.mxu0 0
      %2526 = vmatpush.bf16.msra.mxu0 0
      %2527 = vmatpush.bf16.msra.mxu0 0
      %2528 = vmatpush.bf16.msra.mxu0 0
      %2529 = vmatpush.bf16.msra.mxu0 %v2520
      %2530 = vmatmul.bf16.gmra.mxu0 %v2517
      %v2531 = vpop.f32.mrf.mxu0
      %v2532 = vadd.f32 0.0, %v2531
      %v2533 = vpop.f32.mrf.mxu0
      %2534 = vdwg.mxu0
      %2535 = vrot.lane.b32.xlu0 %v1395, 64
      %v2536 = vpop.permute.xlu0 %2535
      %v2538 = vsel %vm1681, %v2270, 0
      %v2541 = vsel %vm2287, %v2536, 0
      %2543 = vmatpush.bf16.msra.mxu0 0
      %2544 = vmatpush.bf16.msra.mxu0 0
      %2545 = vmatpush.bf16.msra.mxu0 0
      %2546 = vmatpush.bf16.msra.mxu0 0
      %2547 = vmatpush.bf16.msra.mxu0 0
      %2548 = vmatpush.bf16.msra.mxu0 0
      %2549 = vmatpush.bf16.msra.mxu0 0
      %2550 = vmatpush.bf16.msra.mxu0 %v2541
      %2551 = vmatmul.bf16.gmra.mxu0 %v2538
      %v2552 = vpop.f32.mrf.mxu0
      %v2553 = vadd.f32 0.0, %v2552
      %v2554 = vpop.f32.mrf.mxu0
      %2555 = vdwg.mxu0
      %2556 = vrot.lane.b32.xlu0 %v1419, 64
      %v2557 = vpop.permute.xlu0 %2556
      %v2559 = vsel %vm1681, %v2271, 0
      %v2562 = vsel %vm2287, %v2557, 0
      %2564 = vmatpush.bf16.msra.mxu0 0
      %2565 = vmatpush.bf16.msra.mxu0 0
      %2566 = vmatpush.bf16.msra.mxu0 0
      %2567 = vmatpush.bf16.msra.mxu0 0
      %2568 = vmatpush.bf16.msra.mxu0 0
      %2569 = vmatpush.bf16.msra.mxu0 0
      %2570 = vmatpush.bf16.msra.mxu0 0
      %2571 = vmatpush.bf16.msra.mxu0 %v2562
      %2572 = vmatmul.bf16.gmra.mxu0 %v2559
      %v2573 = vpop.f32.mrf.mxu0
      %v2574 = vadd.f32 0.0, %v2573
      %v2575 = vpop.f32.mrf.mxu0
      %2576 = vdwg.mxu0
      %2577 = vrot.lane.b32.xlu0 %v1443, 64
      %v2578 = vpop.permute.xlu0 %2577
      %v2580 = vsel %vm1681, %v2272, 0
      %v2583 = vsel %vm2287, %v2578, 0
      %2585 = vmatpush.bf16.msra.mxu0 0
      %2586 = vmatpush.bf16.msra.mxu0 0
      %2587 = vmatpush.bf16.msra.mxu0 0
      %2588 = vmatpush.bf16.msra.mxu0 0
      %2589 = vmatpush.bf16.msra.mxu0 0
      %2590 = vmatpush.bf16.msra.mxu0 0
      %2591 = vmatpush.bf16.msra.mxu0 0
      %2592 = vmatpush.bf16.msra.mxu0 %v2583
      %2593 = vmatmul.bf16.gmra.mxu0 %v2580
      %v2594 = vpop.f32.mrf.mxu0
      %v2595 = vadd.f32 0.0, %v2594
      %v2596 = vpop.f32.mrf.mxu0
      %2597 = vdwg.mxu0
      %2598 = vrot.lane.b32.xlu0 %v1467, 64
      %v2599 = vpop.permute.xlu0 %2598
      %v2601 = vsel %vm1681, %v2273, 0
      %v2604 = vsel %vm2287, %v2599, 0
      %2606 = vmatpush.bf16.msra.mxu0 0
      %2607 = vmatpush.bf16.msra.mxu0 0
      %2608 = vmatpush.bf16.msra.mxu0 0
      %2609 = vmatpush.bf16.msra.mxu0 0
      %2610 = vmatpush.bf16.msra.mxu0 0
      %2611 = vmatpush.bf16.msra.mxu0 0
      %2612 = vmatpush.bf16.msra.mxu0 0
      %2613 = vmatpush.bf16.msra.mxu0 %v2604
      %2614 = vmatmul.bf16.gmra.mxu0 %v2601
      %v2615 = vpop.f32.mrf.mxu0
      %v2616 = vadd.f32 0.0, %v2615
      %v2617 = vpop.f32.mrf.mxu0
      %2618 = vdwg.mxu0
      %2619 = vrot.lane.b32.xlu0 %v1491, 64
      %v2620 = vpop.permute.xlu0 %2619
      %v2622 = vsel %vm1681, %v2274, 0
      %v2625 = vsel %vm2287, %v2620, 0
      %2627 = vmatpush.bf16.msra.mxu0 0
      %2628 = vmatpush.bf16.msra.mxu0 0
      %2629 = vmatpush.bf16.msra.mxu0 0
      %2630 = vmatpush.bf16.msra.mxu0 0
      %2631 = vmatpush.bf16.msra.mxu0 0
      %2632 = vmatpush.bf16.msra.mxu0 0
      %2633 = vmatpush.bf16.msra.mxu0 0
      %2634 = vmatpush.bf16.msra.mxu0 %v2625
      %2635 = vmatmul.bf16.gmra.mxu0 %v2622
      %v2636 = vpop.f32.mrf.mxu0
      %v2637 = vadd.f32 0.0, %v2636
      %v2638 = vpop.f32.mrf.mxu0
      %2639 = vdwg.mxu0
      %2640 = vrot.lane.b32.xlu0 %v1515, 64
      %v2641 = vpop.permute.xlu0 %2640
      %v2643 = vsel %vm1681, %v2275, 0
      %v2646 = vsel %vm2287, %v2641, 0
      %2648 = vmatpush.bf16.msra.mxu0 0
      %2649 = vmatpush.bf16.msra.mxu0 0
      %2650 = vmatpush.bf16.msra.mxu0 0
      %2651 = vmatpush.bf16.msra.mxu0 0
      %2652 = vmatpush.bf16.msra.mxu0 0
      %2653 = vmatpush.bf16.msra.mxu0 0
      %2654 = vmatpush.bf16.msra.mxu0 0
      %2655 = vmatpush.bf16.msra.mxu0 %v2646
      %2656 = vmatmul.bf16.gmra.mxu0 %v2643
      %v2657 = vpop.f32.mrf.mxu0
      %v2658 = vadd.f32 0.0, %v2657
      %v2659 = vpop.f32.mrf.mxu0
      %2660 = vdwg.mxu0
      %2661 = vrot.lane.b32.xlu0 %v1539, 64
      %v2662 = vpop.permute.xlu0 %2661
      %v2664 = vsel %vm1681, %v2276, 0
      %v2667 = vsel %vm2287, %v2662, 0
      %2669 = vmatpush.bf16.msra.mxu0 0
      %2670 = vmatpush.bf16.msra.mxu0 0
      %2671 = vmatpush.bf16.msra.mxu0 0
      %2672 = vmatpush.bf16.msra.mxu0 0
      %2673 = vmatpush.bf16.msra.mxu0 0
      %2674 = vmatpush.bf16.msra.mxu0 0
      %2675 = vmatpush.bf16.msra.mxu0 0
      %2676 = vmatpush.bf16.msra.mxu0 %v2667
      %2677 = vmatmul.bf16.gmra.mxu0 %v2664
      %v2678 = vpop.f32.mrf.mxu0
      %v2679 = vadd.f32 0.0, %v2678
      %v2680 = vpop.f32.mrf.mxu0
      %2681 = vdwg.mxu0
      %2682 = vrot.lane.b32.xlu0 %v1563, 64
      %v2683 = vpop.permute.xlu0 %2682
      %v2685 = vsel %vm1681, %v2277, 0
      %v2688 = vsel %vm2287, %v2683, 0
      %2690 = vmatpush.bf16.msra.mxu0 0
      %2691 = vmatpush.bf16.msra.mxu0 0
      %2692 = vmatpush.bf16.msra.mxu0 0
      %2693 = vmatpush.bf16.msra.mxu0 0
      %2694 = vmatpush.bf16.msra.mxu0 0
      %2695 = vmatpush.bf16.msra.mxu0 0
      %2696 = vmatpush.bf16.msra.mxu0 0
      %2697 = vmatpush.bf16.msra.mxu0 %v2688
      %2698 = vmatmul.bf16.gmra.mxu0 %v2685
      %v2699 = vpop.f32.mrf.mxu0
      %v2700 = vadd.f32 0.0, %v2699
      %v2701 = vpop.f32.mrf.mxu0
      %2702 = vdwg.mxu0
      %2703 = vrot.lane.b32.xlu0 %v1587, 64
      %v2704 = vpop.permute.xlu0 %2703
      %v2706 = vsel %vm1681, %v2278, 0
      %v2709 = vsel %vm2287, %v2704, 0
      %2711 = vmatpush.bf16.msra.mxu0 0
      %2712 = vmatpush.bf16.msra.mxu0 0
      %2713 = vmatpush.bf16.msra.mxu0 0
      %2714 = vmatpush.bf16.msra.mxu0 0
      %2715 = vmatpush.bf16.msra.mxu0 0
      %2716 = vmatpush.bf16.msra.mxu0 0
      %2717 = vmatpush.bf16.msra.mxu0 0
      %2718 = vmatpush.bf16.msra.mxu0 %v2709
      %2719 = vmatmul.bf16.gmra.mxu0 %v2706
      %v2720 = vpop.f32.mrf.mxu0
      %v2721 = vadd.f32 0.0, %v2720
      %v2722 = vpop.f32.mrf.mxu0
      %2723 = vdwg.mxu0
      %2724 = vrot.lane.b32.xlu0 %v1611, 64
      %v2725 = vpop.permute.xlu0 %2724
      %v2727 = vsel %vm1681, %v2279, 0
      %v2730 = vsel %vm2287, %v2725, 0
      %2732 = vmatpush.bf16.msra.mxu0 0
      %2733 = vmatpush.bf16.msra.mxu0 0
      %2734 = vmatpush.bf16.msra.mxu0 0
      %2735 = vmatpush.bf16.msra.mxu0 0
      %2736 = vmatpush.bf16.msra.mxu0 0
      %2737 = vmatpush.bf16.msra.mxu0 0
      %2738 = vmatpush.bf16.msra.mxu0 0
      %2739 = vmatpush.bf16.msra.mxu0 %v2730
      %2740 = vmatmul.bf16.gmra.mxu0 %v2727
      %v2741 = vpop.f32.mrf.mxu0
      %v2742 = vadd.f32 0.0, %v2741
      %v2743 = vpop.f32.mrf.mxu0
      %2744 = vdwg.mxu0
      %2745 = vrot.lane.b32.xlu0 %v1635, 64
      %v2746 = vpop.permute.xlu0 %2745
      %v2748 = vsel %vm1681, %v2280, 0
      %v2751 = vsel %vm2287, %v2746, 0
      %2753 = vmatpush.bf16.msra.mxu0 0
      %2754 = vmatpush.bf16.msra.mxu0 0
      %2755 = vmatpush.bf16.msra.mxu0 0
      %2756 = vmatpush.bf16.msra.mxu0 0
      %2757 = vmatpush.bf16.msra.mxu0 0
      %2758 = vmatpush.bf16.msra.mxu0 0
      %2759 = vmatpush.bf16.msra.mxu0 0
      %2760 = vmatpush.bf16.msra.mxu0 %v2751
      %2761 = vmatmul.bf16.gmra.mxu0 %v2748
      %v2762 = vpop.f32.mrf.mxu0
      %v2763 = vadd.f32 0.0, %v2762
      %v2764 = vpop.f32.mrf.mxu0
      %2765 = vdwg.mxu0
      %2766 = vrot.lane.b32.xlu0 %v1659, 64
      %v2767 = vpop.permute.xlu0 %2766
      %v2769 = vsel %vm1681, %v2281, 0
      %v2772 = vsel %vm2287, %v2767, 0
      %2774 = vmatpush.bf16.msra.mxu0 0
      %2775 = vmatpush.bf16.msra.mxu0 0
      %2776 = vmatpush.bf16.msra.mxu0 0
      %2777 = vmatpush.bf16.msra.mxu0 0
      %2778 = vmatpush.bf16.msra.mxu0 0
      %2779 = vmatpush.bf16.msra.mxu0 0
      %2780 = vmatpush.bf16.msra.mxu0 0
      %2781 = vmatpush.bf16.msra.mxu0 %v2772
      %2782 = vmatmul.bf16.gmra.mxu0 %v2769
      %v2783 = vpop.f32.mrf.mxu0
      %v2784 = vadd.f32 0.0, %v2783
      %v2785 = vpop.f32.mrf.mxu0
      %2786 = vdwg.mxu0
      %v2787 = vpack.c.bf16 %v2322, %v2301
      %v2788 = vpack.c.bf16 %v2343, %v2343
      %v2789 = vld [vmem:[%s701] sm:$0x3]
      %v2790 = vpack.c.bf16 %v2385, %v2364
      %v2791 = vpack.c.bf16 %v2406, %v2406
      %s2792 = scalar_lea.vmem %s701, 2
      %v2793 = vld [vmem:[%s2792] sm:$0x3]
      %v2795 = vsel %vm1109, %v2790, 0
      %v2798 = vsel %vm1109, %v2791, 0
      %vm2800 = vcmask 1041408
      %v2802 = vsel %vm2800, %v2793, 0
      %2804 = vmatpush.bf16.msra.mxu0 0
      %2805 = vmatpush.bf16.msra.mxu0 0
      %2806 = vmatpush.bf16.msra.mxu0 0
      %2807 = vmatpush.bf16.msra.mxu0 0
      %2808 = vmatpush.bf16.msra.mxu0 0
      %2809 = vmatpush.bf16.msra.mxu0 0
      %2810 = vmatpush.bf16.msra.mxu0 0
      %2811 = vmatpush.bf16.msra.mxu0 %v2802
      %2812 = vmatmul.bf16.gmra.mxu0 %v2795
      %v2813 = vpop.f32.mrf.mxu0
      %v2814 = vadd.f32 0.0, %v2813
      %v2815 = vpop.f32.mrf.mxu0
      %v2816 = vadd.f32 0.0, %v2815
      %2817 = vmatmul.bf16.gmra.mxu0 %v2798
      %v2818 = vpop.f32.mrf.mxu0
      %v2819 = vadd.f32 0.0, %v2818
      %v2820 = vpop.f32.mrf.mxu0
      %2821 = vdwg.mxu0
      %v2823 = vsel %vm1109, %v2787, 0
      %v2826 = vsel %vm1109, %v2788, 0
      %v2829 = vsel %vm2800, %v2789, 0
      %2831 = vmatpush.bf16.msra.mxu0 0
      %2832 = vmatpush.bf16.msra.mxu0 0
      %2833 = vmatpush.bf16.msra.mxu0 0
      %2834 = vmatpush.bf16.msra.mxu0 0
      %2835 = vmatpush.bf16.msra.mxu0 0
      %2836 = vmatpush.bf16.msra.mxu0 0
      %2837 = vmatpush.bf16.msra.mxu0 0
      %2838 = vmatpush.bf16.msra.mxu0 %v2829
      %2839 = vmatmul.bf16.gmra.mxu0 %v2823
      %v2840 = vpop.f32.mrf.mxu0
      %v2841 = vadd.f32 %v2814, %v2840
      %v2842 = vpop.f32.mrf.mxu0
      %v2843 = vadd.f32 %v2816, %v2842
      %2844 = vmatmul.bf16.gmra.mxu0 %v2826
      %v2845 = vpop.f32.mrf.mxu0
      %v2846 = vadd.f32 %v2819, %v2845
      %v2847 = vpop.f32.mrf.mxu0
      %2848 = vdwg.mxu0
      %v2849 = vpack.c.bf16 %v2448, %v2427
      %v2850 = vpack.c.bf16 %v2469, %v2469
      %s2851 = scalar_lea.vmem %s701, 4
      %v2852 = vld [vmem:[%s2851] sm:$0x3]
      %v2854 = vsel %vm1109, %v2849, 0
      %v2857 = vsel %vm1109, %v2850, 0
      %v2860 = vsel %vm2800, %v2852, 0
      %2862 = vmatpush.bf16.msra.mxu0 0
      %2863 = vmatpush.bf16.msra.mxu0 0
      %2864 = vmatpush.bf16.msra.mxu0 0
      %2865 = vmatpush.bf16.msra.mxu0 0
      %2866 = vmatpush.bf16.msra.mxu0 0
      %2867 = vmatpush.bf16.msra.mxu0 0
      %2868 = vmatpush.bf16.msra.mxu0 0
      %2869 = vmatpush.bf16.msra.mxu0 %v2860
      %2870 = vmatmul.bf16.gmra.mxu0 %v2854
      %v2871 = vpop.f32.mrf.mxu0
      %v2872 = vadd.f32 0.0, %v2871
      %v2873 = vpop.f32.mrf.mxu0
      %v2874 = vadd.f32 0.0, %v2873
      %2875 = vmatmul.bf16.gmra.mxu0 %v2857
      %v2876 = vpop.f32.mrf.mxu0
      %v2877 = vadd.f32 0.0, %v2876
      %v2878 = vpop.f32.mrf.mxu0
      %2879 = vdwg.mxu0
      %v2880 = vadd.f32 %v2841, %v2872
      %v2881 = vadd.f32 %v2843, %v2874
      %v2882 = vadd.f32 %v2846, %v2877
      %v2883 = vpack.c.bf16 %v2511, %v2490
      %v2884 = vpack.c.bf16 %v2532, %v2532
      %s2885 = scalar_lea.vmem %s701, 6
      %v2886 = vld [vmem:[%s2885] sm:$0x3]
      %v2888 = vsel %vm1109, %v2883, 0
      %v2891 = vsel %vm1109, %v2884, 0
      %v2894 = vsel %vm2800, %v2886, 0
      %2896 = vmatpush.bf16.msra.mxu0 0
      %2897 = vmatpush.bf16.msra.mxu0 0
      %2898 = vmatpush.bf16.msra.mxu0 0
      %2899 = vmatpush.bf16.msra.mxu0 0
      %2900 = vmatpush.bf16.msra.mxu0 0
      %2901 = vmatpush.bf16.msra.mxu0 0
      %2902 = vmatpush.bf16.msra.mxu0 0
      %2903 = vmatpush.bf16.msra.mxu0 %v2894
      %2904 = vmatmul.bf16.gmra.mxu0 %v2888
      %v2905 = vpop.f32.mrf.mxu0
      %v2906 = vadd.f32 0.0, %v2905
      %v2907 = vpop.f32.mrf.mxu0
      %v2908 = vadd.f32 0.0, %v2907
      %2909 = vmatmul.bf16.gmra.mxu0 %v2891
      %v2910 = vpop.f32.mrf.mxu0
      %v2911 = vadd.f32 0.0, %v2910
      %v2912 = vpop.f32.mrf.mxu0
      %2913 = vdwg.mxu0
      %v2914 = vadd.f32 %v2880, %v2906
      %v2915 = vadd.f32 %v2881, %v2908
      %v2916 = vadd.f32 %v2882, %v2911
      %v2917 = vpack.c.bf16 %v2574, %v2553
      %v2918 = vpack.c.bf16 %v2595, %v2595
      %s2919 = scalar_lea.vmem %s701, 8
      %v2920 = vld [vmem:[%s2919] sm:$0x3]
      %v2922 = vsel %vm1109, %v2917, 0
      %v2925 = vsel %vm1109, %v2918, 0
      %v2928 = vsel %vm2800, %v2920, 0
      %2930 = vmatpush.bf16.msra.mxu0 0
      %2931 = vmatpush.bf16.msra.mxu0 0
      %2932 = vmatpush.bf16.msra.mxu0 0
      %2933 = vmatpush.bf16.msra.mxu0 0
      %2934 = vmatpush.bf16.msra.mxu0 0
      %2935 = vmatpush.bf16.msra.mxu0 0
      %2936 = vmatpush.bf16.msra.mxu0 0
      %2937 = vmatpush.bf16.msra.mxu0 %v2928
      %2938 = vmatmul.bf16.gmra.mxu0 %v2922
      %v2939 = vpop.f32.mrf.mxu0
      %v2940 = vadd.f32 0.0, %v2939
      %v2941 = vpop.f32.mrf.mxu0
      %v2942 = vadd.f32 0.0, %v2941
      %2943 = vmatmul.bf16.gmra.mxu0 %v2925
      %v2944 = vpop.f32.mrf.mxu0
      %v2945 = vadd.f32 0.0, %v2944
      %v2946 = vpop.f32.mrf.mxu0
      %2947 = vdwg.mxu0
      %v2948 = vadd.f32 %v2914, %v2940
      %v2949 = vadd.f32 %v2915, %v2942
      %v2950 = vadd.f32 %v2916, %v2945
      %v2951 = vpack.c.bf16 %v2637, %v2616
      %v2952 = vpack.c.bf16 %v2658, %v2658
      %s2953 = scalar_lea.vmem %s701, 10
      %v2954 = vld [vmem:[%s2953] sm:$0x3]
      %v2956 = vsel %vm1109, %v2951, 0
      %v2959 = vsel %vm1109, %v2952, 0
      %v2962 = vsel %vm2800, %v2954, 0
      %2964 = vmatpush.bf16.msra.mxu0 0
      %2965 = vmatpush.bf16.msra.mxu0 0
      %2966 = vmatpush.bf16.msra.mxu0 0
      %2967 = vmatpush.bf16.msra.mxu0 0
      %2968 = vmatpush.bf16.msra.mxu0 0
      %2969 = vmatpush.bf16.msra.mxu0 0
      %2970 = vmatpush.bf16.msra.mxu0 0
      %2971 = vmatpush.bf16.msra.mxu0 %v2962
      %2972 = vmatmul.bf16.gmra.mxu0 %v2956
      %v2973 = vpop.f32.mrf.mxu0
      %v2974 = vadd.f32 0.0, %v2973
      %v2975 = vpop.f32.mrf.mxu0
      %v2976 = vadd.f32 0.0, %v2975
      %2977 = vmatmul.bf16.gmra.mxu0 %v2959
      %v2978 = vpop.f32.mrf.mxu0
      %v2979 = vadd.f32 0.0, %v2978
      %v2980 = vpop.f32.mrf.mxu0
      %2981 = vdwg.mxu0
      %v2982 = vadd.f32 %v2948, %v2974
      %v2983 = vadd.f32 %v2949, %v2976
      %v2984 = vadd.f32 %v2950, %v2979
      %v2985 = vpack.c.bf16 %v2700, %v2679
      %v2986 = vpack.c.bf16 %v2721, %v2721
      %s2987 = scalar_lea.vmem %s701, 12
      %v2988 = vld [vmem:[%s2987] sm:$0x3]
      %v2990 = vsel %vm1109, %v2985, 0
      %v2993 = vsel %vm1109, %v2986, 0
      %v2996 = vsel %vm2800, %v2988, 0
      %2998 = vmatpush.bf16.msra.mxu0 0
      %2999 = vmatpush.bf16.msra.mxu0 0
      %3000 = vmatpush.bf16.msra.mxu0 0
      %3001 = vmatpush.bf16.msra.mxu0 0
      %3002 = vmatpush.bf16.msra.mxu0 0
      %3003 = vmatpush.bf16.msra.mxu0 0
      %3004 = vmatpush.bf16.msra.mxu0 0
      %3005 = vmatpush.bf16.msra.mxu0 %v2996
      %3006 = vmatmul.bf16.gmra.mxu0 %v2990
      %v3007 = vpop.f32.mrf.mxu0
      %v3008 = vadd.f32 0.0, %v3007
      %v3009 = vpop.f32.mrf.mxu0
      %v3010 = vadd.f32 0.0, %v3009
      %3011 = vmatmul.bf16.gmra.mxu0 %v2993
      %v3012 = vpop.f32.mrf.mxu0
      %v3013 = vadd.f32 0.0, %v3012
      %v3014 = vpop.f32.mrf.mxu0
      %3015 = vdwg.mxu0
      %v3016 = vadd.f32 %v2982, %v3008
      %v3017 = vadd.f32 %v2983, %v3010
      %v3018 = vadd.f32 %v2984, %v3013
      %v3019 = vpack.c.bf16 %v2763, %v2742
      %v3020 = vpack.c.bf16 %v2784, %v2784
      %s3021 = scalar_lea.vmem %s701, 14
      %v3022 = vld [vmem:[%s3021] sm:$0x3]
      %v3024 = vsel %vm1109, %v3019, 0
      %v3027 = vsel %vm1109, %v3020, 0
      %v3030 = vsel %vm2800, %v3022, 0
      %3032 = vmatpush.bf16.msra.mxu0 0
      %3033 = vmatpush.bf16.msra.mxu0 0
      %3034 = vmatpush.bf16.msra.mxu0 0
      %3035 = vmatpush.bf16.msra.mxu0 0
      %3036 = vmatpush.bf16.msra.mxu0 0
      %3037 = vmatpush.bf16.msra.mxu0 0
      %3038 = vmatpush.bf16.msra.mxu0 0
      %3039 = vmatpush.bf16.msra.mxu0 %v3030
      %3040 = vmatmul.bf16.gmra.mxu0 %v3024
      %v3041 = vpop.f32.mrf.mxu0
      %v3042 = vadd.f32 0.0, %v3041
      %v3043 = vpop.f32.mrf.mxu0
      %v3044 = vadd.f32 0.0, %v3043
      %3045 = vmatmul.bf16.gmra.mxu0 %v3027
      %v3046 = vpop.f32.mrf.mxu0
      %v3047 = vadd.f32 0.0, %v3046
      %v3048 = vpop.f32.mrf.mxu0
      %3049 = vdwg.mxu0
      %v3050 = vadd.f32 %v3016, %v3042
      %v3051 = vadd.f32 %v3017, %v3044
      %v3052 = vadd.f32 %v3018, %v3047
      %v3053 = vld [vmem:[%s704] sm:$0x1]
      %v3055 = vperm.slane %v3053, 0
      %v3057 = vadd.f32 %v3050, %v3055
      %v3058 = vadd.f32 %v3051, %v3055
      %v3059 = vadd.f32 %v3052, %v3055
      %v3060 = vadd.f32 %v868, %v3057
      %v3061 = vadd.f32 %v869, %v3058
      %v3062 = vadd.f32 %v870, %v3059
      %v3063 = vld [vmem:[%s723] sm:$0x1]
      %v3064 = vld [vmem:[%s726] sm:$0x1]
      %v3065 = vsel %vm893, %v3060, 0.0
      %3066 = vadd.xlane.f32.xlu0 %v3065
      %v3067 = vpop.xlane.xlu0 %3066
      %v3068 = vsel %vm893, %v3061, 0.0
      %3069 = vadd.xlane.f32.xlu0 %v3068
      %v3070 = vpop.xlane.xlu0 %3069
      %v3071 = vsel %vm893, %v3062, 0.0
      %3072 = vadd.xlane.f32.xlu0 %v3071
      %v3073 = vpop.xlane.xlu0 %3072
      %v3074 = vrcp.pop 32.0
      %v3075 = vmul.f32 32.0, %v3074
      %v3076 = vsub.f32 1.0, %v3075
      %v3077 = vmul.f32 %v3074, %v3076
      %v3078 = vadd.f32 %v3074, %v3077
      %vm3079 = vweird.f32 %v3074
      %v3080 = vsel %vm3079, %v3074, %v3078
      %v3081 = vmul.f32 %v3067, %v3080
      %v3082 = vmul.f32 %v3070, %v3080
      %v3083 = vmul.f32 %v3073, %v3080
      %v3084 = vsub.f32 %v3060, %v3081
      %v3085 = vsub.f32 %v3061, %v3082
      %v3086 = vsub.f32 %v3062, %v3083
      %v3087 = vmul.f32 %v3084, %v3084
      %v3088 = vmul.f32 %v3085, %v3085
      %v3089 = vmul.f32 %v3086, %v3086
      %v3090 = vsel %vm893, %v3087, 0.0
      %3091 = vadd.xlane.f32.xlu0 %v3090
      %v3092 = vpop.xlane.xlu0 %3091
      %v3093 = vsel %vm893, %v3088, 0.0
      %3094 = vadd.xlane.f32.xlu0 %v3093
      %v3095 = vpop.xlane.xlu0 %3094
      %v3096 = vsel %vm893, %v3089, 0.0
      %3097 = vadd.xlane.f32.xlu0 %v3096
      %v3098 = vpop.xlane.xlu0 %3097
      %v3099 = vmul.f32 %v3092, %v3080
      %v3100 = vmul.f32 %v3095, %v3080
      %v3101 = vmul.f32 %v3098, %v3080
      %v3102 = vadd.f32 %v3099, 1e-05
      %v3103 = vadd.f32 %v3100, 1e-05
      %v3104 = vadd.f32 %v3101, 1e-05
      %v3105 = vrsqrt.pop %v3102
      %v3106 = vmul.f32 %v3105, %v3102
      %v3107 = vmul.f32 %v3106, %v3105
      %v3108 = vmul.f32 0.5, %v3107
      %v3109 = vsub.f32 1.5, %v3108
      %v3110 = vmul.f32 %v3105, %v3109
      %vm3111 = vweird.f32 %v3102
      %vm3112 = vweird.f32 %v3105
      %vm3113 = vmor %vm3111, %vm3112
      %v3114 = vsel %vm3113, %v3105, %v3110
      %v3115 = vrsqrt.pop %v3103
      %v3116 = vmul.f32 %v3115, %v3103
      %v3117 = vmul.f32 %v3116, %v3115
      %v3118 = vmul.f32 0.5, %v3117
      %v3119 = vsub.f32 1.5, %v3118
      %v3120 = vmul.f32 %v3115, %v3119
      %vm3121 = vweird.f32 %v3103
      %vm3122 = vweird.f32 %v3115
      %vm3123 = vmor %vm3121, %vm3122
      %v3124 = vsel %vm3123, %v3115, %v3120
      %v3125 = vrsqrt.pop %v3104
      %v3126 = vmul.f32 %v3125, %v3104
      %v3127 = vmul.f32 %v3126, %v3125
      %v3128 = vmul.f32 0.5, %v3127
      %v3129 = vsub.f32 1.5, %v3128
      %v3130 = vmul.f32 %v3125, %v3129
      %vm3131 = vweird.f32 %v3104
      %vm3132 = vweird.f32 %v3125
      %vm3133 = vmor %vm3131, %vm3132
      %v3134 = vsel %vm3133, %v3125, %v3130
      %v3135 = vmul.f32 %v3084, %v3114
      %v3136 = vmul.f32 %v3085, %v3124
      %v3137 = vmul.f32 %v3086, %v3134
      %v3139 = vperm.slane %v3063, 0
      %v3141 = vmul.f32 %v3135, %v3139
      %v3142 = vmul.f32 %v3136, %v3139
      %v3143 = vmul.f32 %v3137, %v3139
      %v3145 = vperm.slane %v3064, 0
      %v3147 = vadd.f32 %v3141, %v3145
      %v3148 = vadd.f32 %v3142, %v3145
      %v3149 = vadd.f32 %v3143, %v3145
      %v3150 = vpack.c.bf16 %v3148, %v3147
      %v3151 = vpack.c.bf16 %v3149, %v3149
      %v3152 = vld [vmem:[%s709] sm:$0xf]
      %v3153 = vld [vmem:[%s709 + $0x4] sm:$0xf]
      %v3154 = vld [vmem:[%s709 + $0x8] sm:$0xf]
      %v3155 = vld [vmem:[%s709 + $0xc] sm:$0xf]
      %v3156 = vld [vmem:[%s712] sm:$0x1]
      %v3158 = vperm.slane %v3156, 0
      %v3164 = vunpack.c.l.b16 %v3152
      %v3165 = vunpack.c.l.b16 %v3153
      %v3166 = vunpack.c.l.b16 %v3154
      %v3167 = vunpack.c.l.b16 %v3155
      %v3168 = vpack.c.b16 %v3165, %v3164
      %v3169 = vpack.c.b16 %v3167, %v3166
      %v3173 = vsel %vm893, %v3150, 0
      %v3176 = vsel %vm893, %v3151, 0
      %3178 = vmatpush.bf16.msra.mxu0 0
      %3179 = vmatpush.bf16.msra.mxu0 0
      %3180 = vmatpush.bf16.msra.mxu0 0
      %3181 = vmatpush.bf16.msra.mxu0 0
      %3182 = vmatpush.bf16.msra.mxu0 0
      %3183 = vmatpush.bf16.msra.mxu0 0
      %3184 = vmatpush.bf16.msra.mxu0 %v3169
      %3185 = vmatpush.bf16.msra.mxu0 %v3168
      %3186 = vmatmul.bf16.gmra.mxu0 %v3173
      %v3187 = vpop.f32.mrf.mxu0
      %v3188 = vadd.f32 %v3158, %v3187
      %v3189 = vpop.f32.mrf.mxu0
      %v3190 = vadd.f32 %v3158, %v3189
      %3191 = vmatmul.bf16.gmra.mxu0 %v3176
      %v3192 = vpop.f32.mrf.mxu0
      %v3193 = vadd.f32 %v3158, %v3192
      %v3194 = vpop.f32.mrf.mxu0
      %3195 = vdwg.mxu0
      %v3196 = vmax.f32 %v3188, 0.0
      %v3197 = vmax.f32 %v3190, 0.0
      %v3198 = vmax.f32 %v3193, 0.0
      %v3199 = vpack.c.bf16 %v3197, %v3196
      %v3200 = vpack.c.bf16 %v3198, %v3198
      %v3201 = vld [vmem:[%s717] sm:$0xf]
      %v3202 = vld [vmem:[%s717 + $0x4] sm:$0xf]
      %v3203 = vld [vmem:[%s717 + $0x8] sm:$0xf]
      %v3204 = vld [vmem:[%s717 + $0xc] sm:$0xf]
      %v3205 = vld [vmem:[%s717 + $0x10] sm:$0xf]
      %v3206 = vld [vmem:[%s717 + $0x14] sm:$0xf]
      %v3207 = vld [vmem:[%s717 + $0x18] sm:$0xf]
      %v3208 = vld [vmem:[%s717 + $0x1c] sm:$0xf]
      %v3209 = vld [vmem:[%s717 + $0x20] sm:$0xf]
      %v3210 = vld [vmem:[%s717 + $0x24] sm:$0xf]
      %v3211 = vld [vmem:[%s717 + $0x28] sm:$0xf]
      %v3212 = vld [vmem:[%s717 + $0x2c] sm:$0xf]
      %v3213 = vld [vmem:[%s717 + $0x30] sm:$0xf]
      %v3214 = vld [vmem:[%s717 + $0x34] sm:$0xf]
      %v3215 = vld [vmem:[%s717 + $0x38] sm:$0xf]
      %v3216 = vld [vmem:[%s717 + $0x3c] sm:$0xf]
      %v3217 = vld [vmem:[%s720] sm:$0x1]
      %v3219 = vperm.slane %v3217, 0
      %v3237 = vunpack.c.l.b16 %v3201
      %v3238 = vunpack.c.l.b16 %v3202
      %v3239 = vunpack.c.l.b16 %v3203
      %v3240 = vunpack.c.l.b16 %v3204
      %v3241 = vunpack.c.l.b16 %v3205
      %v3242 = vunpack.c.l.b16 %v3206
      %v3243 = vunpack.c.l.b16 %v3207
      %v3244 = vunpack.c.l.b16 %v3208
      %v3245 = vunpack.c.l.b16 %v3209
      %v3246 = vunpack.c.l.b16 %v3210
      %v3247 = vunpack.c.l.b16 %v3211
      %v3248 = vunpack.c.l.b16 %v3212
      %v3249 = vunpack.c.l.b16 %v3213
      %v3250 = vunpack.c.l.b16 %v3214
      %v3251 = vunpack.c.l.b16 %v3215
      %v3252 = vunpack.c.l.b16 %v3216
      %v3253 = vpack.c.b16 %v3238, %v3237
      %v3254 = vpack.c.b16 %v3240, %v3239
      %v3255 = vpack.c.b16 %v3242, %v3241
      %v3256 = vpack.c.b16 %v3244, %v3243
      %v3257 = vpack.c.b16 %v3246, %v3245
      %v3258 = vpack.c.b16 %v3248, %v3247
      %v3259 = vpack.c.b16 %v3250, %v3249
      %v3260 = vpack.c.b16 %v3252, %v3251
      %3269 = vmatpush.bf16.msra.mxu0 %v3260
      %3270 = vmatpush.bf16.msra.mxu0 %v3259
      %3271 = vmatpush.bf16.msra.mxu0 %v3258
      %3272 = vmatpush.bf16.msra.mxu0 %v3257
      %3273 = vmatpush.bf16.msra.mxu0 %v3256
      %3274 = vmatpush.bf16.msra.mxu0 %v3255
      %3275 = vmatpush.bf16.msra.mxu0 %v3254
      %3276 = vmatpush.bf16.msra.mxu0 %v3253
      %3277 = vmatmul.bf16.gmra.mxu0 %v3199
      %v3278 = vpop.f32.mrf.mxu0
      %v3279 = vadd.f32 %v3219, %v3278
      %v3280 = vpop.f32.mrf.mxu0
      %v3281 = vadd.f32 %v3219, %v3280
      %3282 = vmatmul.bf16.gmra.mxu0 %v3200
      %v3283 = vpop.f32.mrf.mxu0
      %v3284 = vadd.f32 %v3219, %v3283
      %v3285 = vpop.f32.mrf.mxu0
      %3286 = vdwg.mxu0
      %v3287 = vadd.f32 %v3147, %v3279
      %v3288 = vadd.f32 %v3148, %v3281
      %v3289 = vadd.f32 %v3149, %v3284
      %v3290 = vld [vmem:[%s729] sm:$0x1]
      %v3291 = vld [vmem:[%s732] sm:$0x1]
      %v3292 = vsel %vm893, %v3287, 0.0
      %3293 = vadd.xlane.f32.xlu0 %v3292
      %v3294 = vpop.xlane.xlu0 %3293
      %v3295 = vsel %vm893, %v3288, 0.0
      %3296 = vadd.xlane.f32.xlu0 %v3295
      %v3297 = vpop.xlane.xlu0 %3296
      %v3298 = vsel %vm893, %v3289, 0.0
      %3299 = vadd.xlane.f32.xlu0 %v3298
      %v3300 = vpop.xlane.xlu0 %3299
      %v3301 = vmul.f32 %v3294, %v3080
      %v3302 = vmul.f32 %v3297, %v3080
      %v3303 = vmul.f32 %v3300, %v3080
      %v3304 = vsub.f32 %v3287, %v3301
      %v3305 = vsub.f32 %v3288, %v3302
      %v3306 = vsub.f32 %v3289, %v3303
      %v3307 = vmul.f32 %v3304, %v3304
      %v3308 = vmul.f32 %v3305, %v3305
      %v3309 = vmul.f32 %v3306, %v3306
      %v3310 = vsel %vm893, %v3307, 0.0
      %3311 = vadd.xlane.f32.xlu0 %v3310
      %v3312 = vpop.xlane.xlu0 %3311
      %v3313 = vsel %vm893, %v3308, 0.0
      %3314 = vadd.xlane.f32.xlu0 %v3313
      %v3315 = vpop.xlane.xlu0 %3314
      %v3316 = vsel %vm893, %v3309, 0.0
      %3317 = vadd.xlane.f32.xlu0 %v3316
      %v3318 = vpop.xlane.xlu0 %3317
      %v3319 = vmul.f32 %v3312, %v3080
      %v3320 = vmul.f32 %v3315, %v3080
      %v3321 = vmul.f32 %v3318, %v3080
      %v3322 = vadd.f32 %v3319, 1e-05
      %v3323 = vadd.f32 %v3320, 1e-05
      %v3324 = vadd.f32 %v3321, 1e-05
      %v3325 = vrsqrt.pop %v3322
      %v3326 = vmul.f32 %v3325, %v3322
      %v3327 = vmul.f32 %v3326, %v3325
      %v3328 = vmul.f32 0.5, %v3327
      %v3329 = vsub.f32 1.5, %v3328
      %v3330 = vmul.f32 %v3325, %v3329
      %vm3331 = vweird.f32 %v3322
      %vm3332 = vweird.f32 %v3325
      %vm3333 = vmor %vm3331, %vm3332
      %v3334 = vsel %vm3333, %v3325, %v3330
      %v3335 = vrsqrt.pop %v3323
      %v3336 = vmul.f32 %v3335, %v3323
      %v3337 = vmul.f32 %v3336, %v3335
      %v3338 = vmul.f32 0.5, %v3337
      %v3339 = vsub.f32 1.5, %v3338
      %v3340 = vmul.f32 %v3335, %v3339
      %vm3341 = vweird.f32 %v3323
      %vm3342 = vweird.f32 %v3335
      %vm3343 = vmor %vm3341, %vm3342
      %v3344 = vsel %vm3343, %v3335, %v3340
      %v3345 = vrsqrt.pop %v3324
      %v3346 = vmul.f32 %v3345, %v3324
      %v3347 = vmul.f32 %v3346, %v3345
      %v3348 = vmul.f32 0.5, %v3347
      %v3349 = vsub.f32 1.5, %v3348
      %v3350 = vmul.f32 %v3345, %v3349
      %vm3351 = vweird.f32 %v3324
      %vm3352 = vweird.f32 %v3345
      %vm3353 = vmor %vm3351, %vm3352
      %v3354 = vsel %vm3353, %v3345, %v3350
      %v3355 = vmul.f32 %v3304, %v3334
      %v3356 = vmul.f32 %v3305, %v3344
      %v3357 = vmul.f32 %v3306, %v3354
      %v3359 = vperm.slane %v3290, 0
      %v3361 = vmul.f32 %v3355, %v3359
      %v3362 = vmul.f32 %v3356, %v3359
      %v3363 = vmul.f32 %v3357, %v3359
      %v3365 = vperm.slane %v3291, 0
      %v3367 = vadd.f32 %v3361, %v3365
      %v3368 = vadd.f32 %v3362, %v3365
      %v3369 = vadd.f32 %v3363, %v3365
      %3370 = vst.msk [vmem:[#allocation2] sm:$0xff] %vm893, %v3367
      %3371 = vst.msk [vmem:[#allocation2 + $0x8] sm:$0xff] %vm893, %v3368
      %3372 = vst.msk [vmem:[#allocation2 + $0x10] sm:$0xff] %vm893, %v3369
      %p3373 = scmp.eq.s32.totalorder %s29, 3
      // Predicated region
      $region97: #{forward.1} parent=91 // pred_check
        %p3374 = pneg %p3373
      $region98: #{forward.1} parent=91 // pred_check_branch
        %3376 = sbr.rel (%p3374) target = $region100
      $region99: #{forward.1} parent=91 // pred_region
        %v3377 = vld [vmem:[%s3] sm:$0xff]
        %v3378 = vld [vmem:[%s3 + $0x8] sm:$0x3f]
        %vm3379 = vcmask 195584
        %v3381 = vsel %vm3379, %v3377, 0
        %v3384 = vsel %vm3379, %v3378, 0
        %3386 = vmatpush.msra.mxu0 0.0
        %3387 = vmatpush.msra.mxu0 0.0
        %3388 = vmatpush.msra.mxu0 0.0
        %3389 = vmatpush.msra.mxu0 0.0
        %3390 = vmatpush.msra.mxu0 0.0
        %3391 = vmatpush.msra.mxu0 0.0
        %3392 = vmatpush.msra.mxu0 0.0
        %3393 = vmatpush.msra.mxu0 0.0
        %3394 = vmatpush.msra.mxu0 0.0
        %3395 = vmatpush.msra.mxu0 0.0
        %3396 = vmatpush.msra.mxu0 0.0
        %3397 = vmatpush.msra.mxu0 0.0
        %3398 = vmatpush.msra.mxu0 0.0
        %3399 = vmatpush.msra.mxu0 %v3369
        %3400 = vmatpush.msra.mxu0 %v3368
        %3401 = vmatpush.msra.mxu0 %v3367
        %3402 = vmatmul.f32.gmra.mxu0 %v3381
        %v3403 = vpop.f32.mrf.mxu0
        %v3404 = vadd.f32 0.0, %v3403
        %3405 = vmatmul.f32.gmra.mxu0 %v3384
        %v3406 = vpop.f32.mrf.mxu0
        %v3407 = vadd.f32 0.0, %v3406
        %3408 = vdwg.mxu0
        %v3409 = vld [vmem:[%s5] sm:$0xff]
        %v3410 = vld [vmem:[%s5 + $0x8] sm:$0xff]
        %v3411 = vld [vmem:[%s5 + $0x10] sm:$0xff]
        %v3412 = vld [vmem:[%s5 + $0x18] sm:$0xff]
        %v3413 = vld [vmem:[%s5 + $0x20] sm:$0xff]
        %v3414 = vld [vmem:[%s5 + $0x28] sm:$0xff]
        %v3415 = vld [vmem:[%s5 + $0x30] sm:$0xff]
        %v3417 = vsel %vm893, %v3404, 0
        %v3420 = vsel %vm893, %v3407, 0
        %v3423 = vsel %vm893, %v3409, 0
        %v3426 = vsel %vm893, %v3410, 0
        %v3429 = vsel %vm893, %v3411, 0
        %v3432 = vsel %vm893, %v3412, 0
        %v3435 = vsel %vm893, %v3413, 0
        %v3438 = vsel %vm893, %v3414, 0
        %v3441 = vsel %vm893, %v3415, 0
        %3443 = vmatpush.xpose.msra.mxu0 0.0
        %3444 = vmatpush.xpose.msra.mxu0 0.0
        %3445 = vmatpush.xpose.msra.mxu0 0.0
        %3446 = vmatpush.xpose.msra.mxu0 0.0
        %3447 = vmatpush.xpose.msra.mxu0 0.0
        %3448 = vmatpush.xpose.msra.mxu0 0.0
        %3449 = vmatpush.xpose.msra.mxu0 0.0
        %3450 = vmatpush.xpose.msra.mxu0 0.0
        %3451 = vmatpush.xpose.msra.mxu0 0.0
        %3452 = vmatpush.xpose.msra.mxu0 %v3441
        %3453 = vmatpush.xpose.msra.mxu0 %v3438
        %3454 = vmatpush.xpose.msra.mxu0 %v3435
        %3455 = vmatpush.xpose.msra.mxu0 %v3432
        %3456 = vmatpush.xpose.msra.mxu0 %v3429
        %3457 = vmatpush.xpose.msra.mxu0 %v3426
        %3458 = vmatpush.xpose.msra.mxu0 %v3423
        %3459 = vmatmul.f32.gmra.mxu0 %v3417
        %v3460 = vpop.f32.mrf.mxu0
        %v3461 = vadd.f32 0.0, %v3460
        %3462 = vmatmul.f32.gmra.mxu0 %v3420
        %v3463 = vpop.f32.mrf.mxu0
        %v3464 = vadd.f32 0.0, %v3463
        %3465 = vdwg.mxu0
        %vm3466 = vcmask 457728
        %3467 = vst.msk [vmem:[%s18] sm:$0xff] %vm3466, %v3461
        %vm3468 = vcmask 455680
        %3469 = vst.msk [vmem:[%s18 + $0x8] sm:$0x3f] %vm3468, %v3464
      $region100: #{forward.1} parent=91 // pred_fallthru
        _
      // Predicated region
      $region101: #{forward.1} parent=91 // pred_check
        %p3470 = pneg %p480
      $region102: #{forward.1} parent=91 // pred_check_branch
        %3472 = sbr.rel (%p3470) target = $region104
      $region103: #{forward.1} parent=91 // pred_region
        _
      $region104: #{forward.1} parent=91 // pred_fallthru
        _
      // Predicated region
      $region105: #{forward.1} parent=91 // pred_check
        %p3473 = pneg %p480
      $region106: #{forward.1} parent=91 // pred_check_branch
        %3475 = sbr.rel (%p3473) target = $region108
      $region107: #{forward.1} parent=91 // pred_region
        _
      $region108: #{forward.1} parent=91 // pred_fallthru
        _
    $region92: #{forward.1} parent=5 // pred_fallthru
      _
    %p3476 = scmp.le.s32.totalorder 2, %s24
    // Predicated region
    $region109: #{forward.1} parent=5 // pred_check
      %p3477 = pneg %p3476
    $region110: #{forward.1} parent=5 // pred_check_branch
      %3479 = sbr.rel (%p3477) target = $region112
    $region111: #{forward.1} parent=5 // pred_region
      %s3480 = ssub.s32 %s24, 2
    $region112: #{forward.1} parent=5 // pred_fallthru
      _
  $region6: #{forward.1} parent=0 // loop_footer
    %s28 = sadd.s32 1, %s24
  $region7: #{forward.1} parent=0 // loop_footer_branch
    %23 = sbr.rel target = $region3
  $region8: #{forward.1} parent=0 // loop_exit
    _

</llo_original>
